<compile_context>
chip_gen: v7x
topology: tpu7x:2x2x1
jax: 0.10.0
libtpu: 0.0.40
codegen_flags: <defaults>
</compile_context>

<pallas_src>
import functools

import jax
import jax.numpy as jnp
from jax.experimental import pallas as pl
from jax.experimental.pallas import tpu as pltpu

# ----------------------------- hyper-params ---------------------------------
EMB_DIM = 1024          # hard-coded in Upsampler
VOCAB_SIZE = 8194       # hard-coded in Upsampler
UP1_OUT = 200
UP2_OUT = 100
NOISE_DIM = 8           # hp.gen.noise_dim (small synthetic choice)
CHANNEL_SIZE = 16       # hp.gen.channel_size (small synthetic choice)
LRELU_SLOPE = 0.2       # hp.gen.lReLU_slope


def _round_up(n, m):
    return ((n + m - 1) // m) * m


# ----------------------------- Pallas kernels --------------------------------
def emb_gather_kernel(tok_ref, emb_hbm_ref, out_ref, sem, *, depth):
    """Gather rows of the (VOCAB, EMB_DIM) table with `depth` DMAs in flight.

    Each row DMA is only ~4 KiB, so the gather is HBM-latency bound; keeping
    several descriptors outstanding (disjoint destination rows -> no hazard)
    hides that latency.
    """
    rows = out_ref.shape[0]
    base = pl.program_id(0) * rows
    d = min(depth, rows)

    def cp(j, slot):
        return pltpu.make_async_copy(emb_hbm_ref.at[tok_ref[base + j]],
                                     out_ref.at[j], sem.at[slot])

    # prime the pipeline: issue the first `d` row DMAs
    for j in range(d):
        cp(j, j).start()

    def body(j, carry):
        slot = jax.lax.rem(j, d)
        cp(j, slot).wait()

        # reuse the freed semaphore slot to keep `d` DMAs outstanding
        @pl.when(j + d < rows)
        def _():
            cp(j + d, slot).start()

        return carry

    jax.lax.fori_loop(0, rows, body, 0)


def upsample_mm_kernel(x_ref, w1_ref, b1_ref, w2_ref, b2_ref, o_ref):
    """Both ConvTranspose1d (k=2, s=2) stages fused into two lane-dense matmuls.

    x_ref:  (Tt, 1024)  f32 embedding tile (time-major)
    w1_ref: (1024, N1)  bf16, N1 = round_up(2*200, 128) = 512, tap-fused stage 1
    b1_ref: (1, N1)     f32
    w2_ref: (N1, N2)    bf16, N2 = round_up(4*100, 128) = 512, block matrix that
                         applies stage 2 directly on the tap-fused layout
    b2_ref: (1, N2)     f32
    o_ref:  (Tt, N2)    f32; o[t, m*100 + c] = p2[4t + m, c]  (m = 2*k1 + k2)
    """
    x = x_ref[...].astype(jnp.bfloat16)
    y1 = jnp.dot(x, w1_ref[...], preferred_element_type=jnp.float32) + b1_ref[...]
    y1 = y1.astype(jnp.bfloat16)
    y2 = jnp.dot(y1, w2_ref[...], preferred_element_type=jnp.float32) + b2_ref[...]
    o_ref[...] = y2.astype(o_ref.dtype)


def gen_convs_fused_kernel(zp_ref, wpre_ref, bpre_ref, wpost_ref, bpost_ref,
                           o_ref, zcat_scr, h_scr, *, leaky_slope):
    """Fused  conv_pre(k=7, reflect) -> LeakyReLU -> conv_post(k=7, reflect) -> tanh.
    Everything is channel-major (channels on sublanes, time on lanes).
    zp_ref:   (1, Cin, L+6)   z reflect-padded by 3 on each side
    wpre_ref: (Cmid, 7*Cin)   im2col conv_pre weight (columns ordered k*Cin + c)
    bpre_ref: (Cmid, 1)
    wpost_ref:(Cmid, 7)       conv_post weight (Cout = 1)
    bpost_ref:(1, 1)
    o_ref:    (1, 1, L)       lane-dense output (already NCW)
    zcat_scr: (7*Cin, L)      VMEM scratch holding the staged im2col matrix
    h_scr:    (Cmid, L+6)     VMEM scratch holding the reflect-padded activation
    """
    L = o_ref.shape[2]
    Cin = zp_ref.shape[1]
    Cmid = h_scr.shape[0]
    zp = zp_ref[0]                                               # (Cin, L+6)

    # im2col staged into VMEM scratch with 7 static stores:
    # row (k*Cin + c) holds z[c, l - 3 + k]
    for k in range(7):
        zcat_scr[k * Cin:(k + 1) * Cin, :] = zp[:, k:k + L]

    # conv_pre: one K=7*Cin MXU matmul -> (Cmid, L)
    h = jnp.dot(wpre_ref[...], zcat_scr[...], preferred_element_type=jnp.float32)
    h = h + bpre_ref[...]
    # LeakyReLU (reference applies it before the reflect pad of conv_post)
    h = jnp.where(h >= 0, h, leaky_slope * h)

    # reflect-pad the activation along time into VMEM scratch (pad = 3)
    h_scr[:, 3:3 + L] = h
    h_scr[:, 0:1] = h[:, 3:4]
    h_scr[:, 1:2] = h[:, 2:3]
    h_scr[:, 2:3] = h[:, 1:2]
    h_scr[:, L + 3:L + 4] = h[:, L - 2:L - 1]
    h_scr[:, L + 4:L + 5] = h[:, L - 3:L - 2]
    h_scr[:, L + 5:L + 6] = h[:, L - 4:L - 3]

    # conv_post (Cout=1): accumulate the 7 taps on the VPU as (Cmid, L), then a
    # SINGLE cross-sublane (XLU) reduction at the end.
    acc = jnp.zeros((Cmid, L), jnp.float32)
    for k in range(7):
        acc = acc + h_scr[:, k:k + L] * wpost_ref[:, k:k + 1]
    y = jnp.sum(acc, axis=0, keepdims=True) + bpost_ref[...]     # (1, L)
    o_ref[0] = jnp.tanh(y).astype(o_ref.dtype)


# ----------------------------- wrappers ---------------------------------------
def embedding_lookup(tokens, emb_table, *, max_rows_per_block=128, dma_depth=8):
    """tokens: (T,) int32 (already clamped)  ->  (T, EMB_DIM) f32 (time-major)."""
    T = tokens.shape[0]
    assert T >= 1, "empty token sequence"
    rows = min(max_rows_per_block, _round_up(T, 8))
    Tpad = _round_up(T, rows)
    if Tpad != T:
        tokens = jnp.pad(tokens, (0, Tpad - T))          # pad with valid index 0

    kern = functools.partial(emb_gather_kernel, depth=dma_depth)
    out = pl.pallas_call(
        kern,
        out_shape=jax.ShapeDtypeStruct((Tpad, EMB_DIM), jnp.float32),
        grid_spec=pltpu.PrefetchScalarGridSpec(
            num_scalar_prefetch=1,
            grid=(Tpad // rows,),
            in_specs=[pl.BlockSpec(memory_space=pl.ANY)],        # table stays in HBM
            out_specs=pl.BlockSpec((rows, EMB_DIM), lambda i, tok: (i, 0)),
            scratch_shapes=[pltpu.SemaphoreType.DMA((dma_depth,))],
        ),
        compiler_params=pltpu.CompilerParams(
            dimension_semantics=("parallel",)),                  # split across TCs on v7x
    )(tokens, emb_table)
    return out[:T] if Tpad != T else out


def upsampler_matmuls(emb_tc, w1_pt, b1, w2_pt, b2, *, tile_t=1024):
    """Both ConvTranspose1d (k=2, s=2) stages fused into a single pallas_call.

    emb_tc: (T, 1024)  w1_pt: (1024, 200, 2)  w2_pt: (200, 100, 2)   (PyTorch layout)
    returns p2 time-major: (4T, 100)
    """
    T, Cin = emb_tc.shape
    C1 = w1_pt.shape[1]
    C2 = w2_pt.shape[1]
    N1 = _round_up(2 * C1, 128)                 # 512 (lane-dense intermediate)
    N2 = _round_up(4 * C2, 128)                 # 512 (lane-dense output)

    # stage 1: Wcat1[e, k1*C1 + c1] = W1[e, c1, k1], zero-padded to N1 lanes
    wcat1 = jnp.transpose(w1_pt, (0, 2, 1)).reshape(Cin, 2 * C1)
    wcat1 = jnp.pad(wcat1, ((0, 0), (0, N1 - 2 * C1))).astype(jnp.bfloat16)
    bcat1 = jnp.pad(jnp.tile(b1, 2), (0, N1 - 2 * C1)).reshape(1, N1)

    # stage 2 applied on the tap-fused stage-1 layout:
    #   W2big[k1*C1 + c1, (2*k1 + k2)*C2 + c2] = W2[c1, c2, k2]
    wcat2 = jnp.transpose(w2_pt, (0, 2, 1)).reshape(C1, 2 * C2)
    w2big = jnp.zeros((N1, N2), jnp.float32)
    w2big = w2big.at[0:C1, 0:2 * C2].set(wcat2)
    w2big = w2big.at[C1:2 * C1, 2 * C2:4 * C2].set(wcat2)
    w2big = w2big.astype(jnp.bfloat16)
    bcat2 = jnp.pad(jnp.tile(b2, 4), (0, N2 - 4 * C2)).reshape(1, N2)

    # v5e/v6e (128 MiB VMEM): tile_t up to 2048 with ~64 MiB budget is fine;
    # v7x (64 MiB VMEM): keep tile_t <= 1024 and the 32 MiB scoped default.
    tile = min(tile_t, _round_up(T, 8))
    Tpad = _round_up(T, tile)
    if Tpad != T:
        emb_tc = jnp.pad(emb_tc, ((0, Tpad - T), (0, 0)))

    y2 = pl.pallas_call(
        upsample_mm_kernel,
        out_shape=jax.ShapeDtypeStruct((Tpad, N2), jnp.float32),
        grid=(Tpad // tile,),
        in_specs=[
            pl.BlockSpec((tile, Cin), lambda i: (i, 0)),
            pl.BlockSpec((Cin, N1), lambda i: (0, 0)),
            pl.BlockSpec((1, N1), lambda i: (0, 0)),
            pl.BlockSpec((N1, N2), lambda i: (0, 0)),
            pl.BlockSpec((1, N2), lambda i: (0, 0)),
        ],
        out_specs=pl.BlockSpec((tile, N2), lambda i: (i, 0)),
        compiler_params=pltpu.CompilerParams(
            dimension_semantics=("parallel",),
            vmem_limit_bytes=32 * 1024 * 1024),
    )(emb_tc, wcat1, bcat1, w2big, bcat2)

    # (T, 4*C2) -> (4T, C2): row-major reshape un-interleaves the 4 taps (free).
    return y2[:T, :4 * C2].reshape(4 * T, C2)


def generator_convs(z_ncw, params, *, leaky_slope=LRELU_SLOPE):
    """z_ncw: (B, noise_dim, L)  ->  (B, 1, L).
    Fused conv_pre -> LeakyReLU -> conv_post -> tanh; stays channel-major (NCW)."""
    B, Cin, L = z_ncw.shape
    Cmid = params['pre_w'].shape[0]
    zpad = jnp.pad(z_ncw, ((0, 0), (0, 0), (3, 3)), mode='reflect')  # (B, Cin, L+6)
    # wpre_flat[m, k*Cin + c] = W_pre[m, c, k]
    wpre = jnp.transpose(params['pre_w'], (0, 2, 1)).reshape(Cmid, 7 * Cin)
    bpre = params['pre_b'].reshape(Cmid, 1)
    wpost = params['post_w'][0]                                      # (Cmid, 7)
    bpost = params['post_b'].reshape(1, 1)

    kern = functools.partial(gen_convs_fused_kernel, leaky_slope=leaky_slope)
    return pl.pallas_call(
        kern,
        out_shape=jax.ShapeDtypeStruct((B, 1, L), jnp.float32),
        grid=(B,),
        in_specs=[
            pl.BlockSpec((1, Cin, L + 6), lambda b: (b, 0, 0)),
            pl.BlockSpec((Cmid, 7 * Cin), lambda b: (0, 0)),
            pl.BlockSpec((Cmid, 1), lambda b: (0, 0)),
            pl.BlockSpec((Cmid, 7), lambda b: (0, 0)),
            pl.BlockSpec((1, 1), lambda b: (0, 0)),
        ],
        out_specs=pl.BlockSpec((1, 1, L), lambda b: (b, 0, 0)),
        scratch_shapes=[pltpu.VMEM((7 * Cin, L), jnp.float32),
                        pltpu.VMEM((Cmid, L + 6), jnp.float32)],
        compiler_params=pltpu.CompilerParams(
            dimension_semantics=("parallel",),
            vmem_limit_bytes=32 * 1024 * 1024),
    )(zpad, wpre, bpre, wpost, bpost)


@jax.jit
def upsampler_forward(x_tokens, params):
    """x_tokens: (1, 1, T) int32 token ids  ->  c_emb (1, 100, 4T)."""
    tokens = jnp.clip(x_tokens.reshape(-1).astype(jnp.int32), 0, VOCAB_SIZE - 1)
    emb = embedding_lookup(tokens, params['emb'])                     # (T, 1024)
    # both ConvTranspose stages fused; no HBM intermediate, stays time-major
    p2 = upsampler_matmuls(emb, params['up1_w'], params['up1_b'],
                           params['up2_w'], params['up2_b'])          # (4T, 100)
    # TODO(synk): emit channel-major directly from the kernel to drop this transpose.
    return jnp.transpose(p2, (1, 0))[None]                            # (1, 100, 4T)


@jax.jit
def generator_forward(c, z, params):
    """c: (1, 1, T) int token ids, z: (B, NOISE_DIM, L) noise -> (B, 1, L)."""
    c_emb = upsampler_forward(c, params)                              # (1, 100, 4T)
    # TODO(synk): res_stack (LVCBlock) source not provided; skipped, so c_emb is
    #             dead code here (XLA will DCE the conditioning path under jit).
    del c_emb
    return generator_convs(z, params)


# ----------------------------- pure-JAX reference -----------------------------
def _ref_conv1d(x_bct, w_pt, b, leaky=None, tanh=False):
    x = jnp.transpose(x_bct, (0, 2, 1))
    if leaky is not None:
        x = jnp.where(x >= 0, x, leaky * x)
    xp = jnp.pad(x, ((0, 0), (3, 3), (0, 0)), mode='reflect')
    w = jnp.transpose(w_pt, (2, 1, 0))
    L = x.shape[1]
    y = sum(jnp.einsum('blc,cd->bld', xp[:, k:k + L, :], w[k]) for k in range(7)) + b
    if tanh:
        y = jnp.tanh(y)
    return jnp.transpose(y, (0, 2, 1))


def _ref_convt(x_bct, w_pt, b):
    y = jnp.einsum('bct,cok->btko', x_bct, w_pt) + b          # (B, T, 2, Cout)
    B, T, K, Cout = y.shape
    return jnp.transpose(y.reshape(B, T * K, Cout), (0, 2, 1))


def _ref_upsampler(c, params):
    emb = params['emb'][c.reshape(-1)]
    e = jnp.transpose(emb, (1, 0))[None]
    p1 = _ref_convt(e, params['up1_w'], params['up1_b'])
    return _ref_convt(p1, params['up2_w'], params['up2_b'])


# ----------------------------- main -------------------------------------------
if __name__ == "__main__":
    T = 8          # number of conditioning tokens
    L = 32         # noise sequence length
    B = 2          # batch for the noise path

    key = jax.random.PRNGKey(0)
    ks = jax.random.split(key, 10)
    params = {
        'emb':    0.02 * jax.random.normal(ks[0], (VOCAB_SIZE, EMB_DIM), jnp.float32),
        'up1_w':  0.02 * jax.random.normal(ks[1], (EMB_DIM, UP1_OUT, 2), jnp.float32),
        'up1_b':  0.02 * jax.random.normal(ks[2], (UP1_OUT,), jnp.float32),
        'up2_w':  0.02 * jax.random.normal(ks[3], (UP1_OUT, UP2_OUT, 2), jnp.float32),
        'up2_b':  0.02 * jax.random.normal(ks[4], (UP2_OUT,), jnp.float32),
        'pre_w':  0.05 * jax.random.normal(ks[5], (CHANNEL_SIZE, NOISE_DIM, 7), jnp.float32),
        'pre_b':  jnp.zeros((CHANNEL_SIZE,), jnp.float32),
        'post_w': 0.05 * jax.random.normal(ks[6], (1, CHANNEL_SIZE, 7), jnp.float32),
        'post_b': jnp.zeros((1,), jnp.float32),
    }

    c = jax.random.randint(ks[7], (1, 1, T), 0, VOCAB_SIZE, dtype=jnp.int32)
    z = jax.random.normal(ks[8], (B, NOISE_DIM, L), jnp.float32)

    # Pallas path
    c_emb = upsampler_forward(c, params)
    audio = generator_forward(c, z, params)
    jax.block_until_ready((c_emb, audio))

    # shape checks
    assert c_emb.shape == (1, UP2_OUT, 4 * T), c_emb.shape
    assert audio.shape == (B, 1, L), audio.shape

    # numerical check against pure-JAX f32 reference
    # (c_emb tolerance loosened because the upsampler matmuls use bf16 operands
    #  with f32 accumulation)
    c_emb_ref = _ref_upsampler(c, params)
    z_ref = _ref_conv1d(z, params['pre_w'], params['pre_b'])
    audio_ref = _ref_conv1d(z_ref, params['post_w'], params['post_b'],
                            leaky=LRELU_SLOPE, tanh=True)
    assert jnp.allclose(c_emb, c_emb_ref, atol=1e-3, rtol=1e-2), \
        float(jnp.max(jnp.abs(c_emb - c_emb_ref)))
    assert jnp.allclose(audio, audio_ref, atol=5e-4, rtol=5e-4), \
        float(jnp.max(jnp.abs(audio - audio_ref)))

    print("KERNEL_OK")
</pallas_src>

<mosaic_0001>
module attributes {stable_mosaic.version = 11 : i64} {
  func.func @emb_gather_kernel(%arg0: i32, %arg1: memref<8xi32, #tpu.memory_space<smem>>, %arg2: memref<8194x1024xf32, #tpu.memory_space<any>>, %arg3: memref<8x1024xf32, #tpu.memory_space<vmem>>, %arg4: memref<8x!tpu.dma_semaphore, #tpu.memory_space<semaphore_mem>>) attributes {dimension_semantics = [#tpu.dimension_semantics<parallel>], iteration_bounds = array<i64: 1>, scalar_prefetch = 1 : i64, scratch_operands = 1 : i64, tpu.core_type = #tpu.core_type<tc>, window_params = [{}, {transform_indices = @transform_1, window_bounds = array<i64: 8, 1024>}]} {
    %c8_i32 = arith.constant 8 : i32
    %0 = arith.muli %arg0, %c8_i32 : i32
    %c0_i32 = arith.constant 0 : i32
    %1 = arith.addi %0, %c0_i32 : i32
    %2 = arith.index_cast %1 : i32 to index
    %3 = memref.load %arg1[%2] : memref<8xi32, #tpu.memory_space<smem>>
    %c0_i32_0 = arith.constant 0 : i32
    %c0_i32_1 = arith.constant 0 : i32
    %c0_i32_2 = arith.constant 0 : i32
    %4 = tpu.memref_slice %arg2[%3, %c0_i32_2] : memref<8194x1024xf32, #tpu.memory_space<any>> -> memref<1x1024xf32, #tpu.memory_space<any>>
    %5 = tpu.memref_squeeze %4 : memref<1x1024xf32, #tpu.memory_space<any>> -> memref<1024xf32, #tpu.memory_space<any>>
    %c0_i32_3 = arith.constant 0 : i32
    %6 = tpu.memref_slice %arg3[%c0_i32_0, %c0_i32_3] : memref<8x1024xf32, #tpu.memory_space<vmem>> -> memref<1x1024xf32, #tpu.memory_space<vmem>>
    %7 = tpu.memref_squeeze %6 : memref<1x1024xf32, #tpu.memory_space<vmem>> -> memref<1024xf32, #tpu.memory_space<vmem>>
    %8 = tpu.memref_slice %arg4[%c0_i32_1] : memref<8x!tpu.dma_semaphore, #tpu.memory_space<semaphore_mem>> -> memref<1x!tpu.dma_semaphore, #tpu.memory_space<semaphore_mem>>
    %9 = tpu.memref_squeeze %8 : memref<1x!tpu.dma_semaphore, #tpu.memory_space<semaphore_mem>> -> memref<!tpu.dma_semaphore, #tpu.memory_space<semaphore_mem>>
    tpu.enqueue_dma source(%5 : memref<1024xf32, #tpu.memory_space<any>>) target(%7 : memref<1024xf32, #tpu.memory_space<vmem>>) target_semaphore(%9 : memref<!tpu.dma_semaphore, #tpu.memory_space<semaphore_mem>>)
    %c1_i32 = arith.constant 1 : i32
    %10 = arith.addi %0, %c1_i32 : i32
    %11 = arith.index_cast %10 : i32 to index
    %12 = memref.load %arg1[%11] : memref<8xi32, #tpu.memory_space<smem>>
    %c1_i32_4 = arith.constant 1 : i32
    %c1_i32_5 = arith.constant 1 : i32
    %c0_i32_6 = arith.constant 0 : i32
    %13 = tpu.memref_slice %arg2[%12, %c0_i32_6] : memref<8194x1024xf32, #tpu.memory_space<any>> -> memref<1x1024xf32, #tpu.memory_space<any>>
    %14 = tpu.memref_squeeze %13 : memref<1x1024xf32, #tpu.memory_space<any>> -> memref<1024xf32, #tpu.memory_space<any>>
    %c0_i32_7 = arith.constant 0 : i32
    %15 = tpu.memref_slice %arg3[%c1_i32_4, %c0_i32_7] : memref<8x1024xf32, #tpu.memory_space<vmem>> -> memref<1x1024xf32, #tpu.memory_space<vmem>>
    %16 = tpu.memref_squeeze %15 : memref<1x1024xf32, #tpu.memory_space<vmem>> -> memref<1024xf32, #tpu.memory_space<vmem>>
    %17 = tpu.memref_slice %arg4[%c1_i32_5] : memref<8x!tpu.dma_semaphore, #tpu.memory_space<semaphore_mem>> -> memref<1x!tpu.dma_semaphore, #tpu.memory_space<semaphore_mem>>
    %18 = tpu.memref_squeeze %17 : memref<1x!tpu.dma_semaphore, #tpu.memory_space<semaphore_mem>> -> memref<!tpu.dma_semaphore, #tpu.memory_space<semaphore_mem>>
    tpu.enqueue_dma source(%14 : memref<1024xf32, #tpu.memory_space<any>>) target(%16 : memref<1024xf32, #tpu.memory_space<vmem>>) target_semaphore(%18 : memref<!tpu.dma_semaphore, #tpu.memory_space<semaphore_mem>>)
    %c2_i32 = arith.constant 2 : i32
    %19 = arith.addi %0, %c2_i32 : i32
    %20 = arith.index_cast %19 : i32 to index
    %21 = memref.load %arg1[%20] : memref<8xi32, #tpu.memory_space<smem>>
    %c2_i32_8 = arith.constant 2 : i32
    %c2_i32_9 = arith.constant 2 : i32
    %c0_i32_10 = arith.constant 0 : i32
    %22 = tpu.memref_slice %arg2[%21, %c0_i32_10] : memref<8194x1024xf32, #tpu.memory_space<any>> -> memref<1x1024xf32, #tpu.memory_space<any>>
    %23 = tpu.memref_squeeze %22 : memref<1x1024xf32, #tpu.memory_space<any>> -> memref<1024xf32, #tpu.memory_space<any>>
    %c0_i32_11 = arith.constant 0 : i32
    %24 = tpu.memref_slice %arg3[%c2_i32_8, %c0_i32_11] : memref<8x1024xf32, #tpu.memory_space<vmem>> -> memref<1x1024xf32, #tpu.memory_space<vmem>>
    %25 = tpu.memref_squeeze %24 : memref<1x1024xf32, #tpu.memory_space<vmem>> -> memref<1024xf32, #tpu.memory_space<vmem>>
    %26 = tpu.memref_slice %arg4[%c2_i32_9] : memref<8x!tpu.dma_semaphore, #tpu.memory_space<semaphore_mem>> -> memref<1x!tpu.dma_semaphore, #tpu.memory_space<semaphore_mem>>
    %27 = tpu.memref_squeeze %26 : memref<1x!tpu.dma_semaphore, #tpu.memory_space<semaphore_mem>> -> memref<!tpu.dma_semaphore, #tpu.memory_space<semaphore_mem>>
    tpu.enqueue_dma source(%23 : memref<1024xf32, #tpu.memory_space<any>>) target(%25 : memref<1024xf32, #tpu.memory_space<vmem>>) target_semaphore(%27 : memref<!tpu.dma_semaphore, #tpu.memory_space<semaphore_mem>>)
    %c3_i32 = arith.constant 3 : i32
    %28 = arith.addi %0, %c3_i32 : i32
    %29 = arith.index_cast %28 : i32 to index
    %30 = memref.load %arg1[%29] : memref<8xi32, #tpu.memory_space<smem>>
    %c3_i32_12 = arith.constant 3 : i32
    %c3_i32_13 = arith.constant 3 : i32
    %c0_i32_14 = arith.constant 0 : i32
    %31 = tpu.memref_slice %arg2[%30, %c0_i32_14] : memref<8194x1024xf32, #tpu.memory_space<any>> -> memref<1x1024xf32, #tpu.memory_space<any>>
    %32 = tpu.memref_squeeze %31 : memref<1x1024xf32, #tpu.memory_space<any>> -> memref<1024xf32, #tpu.memory_space<any>>
    %c0_i32_15 = arith.constant 0 : i32
    %33 = tpu.memref_slice %arg3[%c3_i32_12, %c0_i32_15] : memref<8x1024xf32, #tpu.memory_space<vmem>> -> memref<1x1024xf32, #tpu.memory_space<vmem>>
    %34 = tpu.memref_squeeze %33 : memref<1x1024xf32, #tpu.memory_space<vmem>> -> memref<1024xf32, #tpu.memory_space<vmem>>
    %35 = tpu.memref_slice %arg4[%c3_i32_13] : memref<8x!tpu.dma_semaphore, #tpu.memory_space<semaphore_mem>> -> memref<1x!tpu.dma_semaphore, #tpu.memory_space<semaphore_mem>>
    %36 = tpu.memref_squeeze %35 : memref<1x!tpu.dma_semaphore, #tpu.memory_space<semaphore_mem>> -> memref<!tpu.dma_semaphore, #tpu.memory_space<semaphore_mem>>
    tpu.enqueue_dma source(%32 : memref<1024xf32, #tpu.memory_space<any>>) target(%34 : memref<1024xf32, #tpu.memory_space<vmem>>) target_semaphore(%36 : memref<!tpu.dma_semaphore, #tpu.memory_space<semaphore_mem>>)
    %c4_i32 = arith.constant 4 : i32
    %37 = arith.addi %0, %c4_i32 : i32
    %38 = arith.index_cast %37 : i32 to index
    %39 = memref.load %arg1[%38] : memref<8xi32, #tpu.memory_space<smem>>
    %c4_i32_16 = arith.constant 4 : i32
    %c4_i32_17 = arith.constant 4 : i32
    %c0_i32_18 = arith.constant 0 : i32
    %40 = tpu.memref_slice %arg2[%39, %c0_i32_18] : memref<8194x1024xf32, #tpu.memory_space<any>> -> memref<1x1024xf32, #tpu.memory_space<any>>
    %41 = tpu.memref_squeeze %40 : memref<1x1024xf32, #tpu.memory_space<any>> -> memref<1024xf32, #tpu.memory_space<any>>
    %c0_i32_19 = arith.constant 0 : i32
    %42 = tpu.memref_slice %arg3[%c4_i32_16, %c0_i32_19] : memref<8x1024xf32, #tpu.memory_space<vmem>> -> memref<1x1024xf32, #tpu.memory_space<vmem>>
    %43 = tpu.memref_squeeze %42 : memref<1x1024xf32, #tpu.memory_space<vmem>> -> memref<1024xf32, #tpu.memory_space<vmem>>
    %44 = tpu.memref_slice %arg4[%c4_i32_17] : memref<8x!tpu.dma_semaphore, #tpu.memory_space<semaphore_mem>> -> memref<1x!tpu.dma_semaphore, #tpu.memory_space<semaphore_mem>>
    %45 = tpu.memref_squeeze %44 : memref<1x!tpu.dma_semaphore, #tpu.memory_space<semaphore_mem>> -> memref<!tpu.dma_semaphore, #tpu.memory_space<semaphore_mem>>
    tpu.enqueue_dma source(%41 : memref<1024xf32, #tpu.memory_space<any>>) target(%43 : memref<1024xf32, #tpu.memory_space<vmem>>) target_semaphore(%45 : memref<!tpu.dma_semaphore, #tpu.memory_space<semaphore_mem>>)
    %c5_i32 = arith.constant 5 : i32
    %46 = arith.addi %0, %c5_i32 : i32
    %47 = arith.index_cast %46 : i32 to index
    %48 = memref.load %arg1[%47] : memref<8xi32, #tpu.memory_space<smem>>
    %c5_i32_20 = arith.constant 5 : i32
    %c5_i32_21 = arith.constant 5 : i32
    %c0_i32_22 = arith.constant 0 : i32
    %49 = tpu.memref_slice %arg2[%48, %c0_i32_22] : memref<8194x1024xf32, #tpu.memory_space<any>> -> memref<1x1024xf32, #tpu.memory_space<any>>
    %50 = tpu.memref_squeeze %49 : memref<1x1024xf32, #tpu.memory_space<any>> -> memref<1024xf32, #tpu.memory_space<any>>
    %c0_i32_23 = arith.constant 0 : i32
    %51 = tpu.memref_slice %arg3[%c5_i32_20, %c0_i32_23] : memref<8x1024xf32, #tpu.memory_space<vmem>> -> memref<1x1024xf32, #tpu.memory_space<vmem>>
    %52 = tpu.memref_squeeze %51 : memref<1x1024xf32, #tpu.memory_space<vmem>> -> memref<1024xf32, #tpu.memory_space<vmem>>
    %53 = tpu.memref_slice %arg4[%c5_i32_21] : memref<8x!tpu.dma_semaphore, #tpu.memory_space<semaphore_mem>> -> memref<1x!tpu.dma_semaphore, #tpu.memory_space<semaphore_mem>>
    %54 = tpu.memref_squeeze %53 : memref<1x!tpu.dma_semaphore, #tpu.memory_space<semaphore_mem>> -> memref<!tpu.dma_semaphore, #tpu.memory_space<semaphore_mem>>
    tpu.enqueue_dma source(%50 : memref<1024xf32, #tpu.memory_space<any>>) target(%52 : memref<1024xf32, #tpu.memory_space<vmem>>) target_semaphore(%54 : memref<!tpu.dma_semaphore, #tpu.memory_space<semaphore_mem>>)
    %c6_i32 = arith.constant 6 : i32
    %55 = arith.addi %0, %c6_i32 : i32
    %56 = arith.index_cast %55 : i32 to index
    %57 = memref.load %arg1[%56] : memref<8xi32, #tpu.memory_space<smem>>
    %c6_i32_24 = arith.constant 6 : i32
    %c6_i32_25 = arith.constant 6 : i32
    %c0_i32_26 = arith.constant 0 : i32
    %58 = tpu.memref_slice %arg2[%57, %c0_i32_26] : memref<8194x1024xf32, #tpu.memory_space<any>> -> memref<1x1024xf32, #tpu.memory_space<any>>
    %59 = tpu.memref_squeeze %58 : memref<1x1024xf32, #tpu.memory_space<any>> -> memref<1024xf32, #tpu.memory_space<any>>
    %c0_i32_27 = arith.constant 0 : i32
    %60 = tpu.memref_slice %arg3[%c6_i32_24, %c0_i32_27] : memref<8x1024xf32, #tpu.memory_space<vmem>> -> memref<1x1024xf32, #tpu.memory_space<vmem>>
    %61 = tpu.memref_squeeze %60 : memref<1x1024xf32, #tpu.memory_space<vmem>> -> memref<1024xf32, #tpu.memory_space<vmem>>
    %62 = tpu.memref_slice %arg4[%c6_i32_25] : memref<8x!tpu.dma_semaphore, #tpu.memory_space<semaphore_mem>> -> memref<1x!tpu.dma_semaphore, #tpu.memory_space<semaphore_mem>>
    %63 = tpu.memref_squeeze %62 : memref<1x!tpu.dma_semaphore, #tpu.memory_space<semaphore_mem>> -> memref<!tpu.dma_semaphore, #tpu.memory_space<semaphore_mem>>
    tpu.enqueue_dma source(%59 : memref<1024xf32, #tpu.memory_space<any>>) target(%61 : memref<1024xf32, #tpu.memory_space<vmem>>) target_semaphore(%63 : memref<!tpu.dma_semaphore, #tpu.memory_space<semaphore_mem>>)
    %c7_i32 = arith.constant 7 : i32
    %64 = arith.addi %0, %c7_i32 : i32
    %65 = arith.index_cast %64 : i32 to index
    %66 = memref.load %arg1[%65] : memref<8xi32, #tpu.memory_space<smem>>
    %c7_i32_28 = arith.constant 7 : i32
    %c7_i32_29 = arith.constant 7 : i32
    %c0_i32_30 = arith.constant 0 : i32
    %67 = tpu.memref_slice %arg2[%66, %c0_i32_30] : memref<8194x1024xf32, #tpu.memory_space<any>> -> memref<1x1024xf32, #tpu.memory_space<any>>
    %68 = tpu.memref_squeeze %67 : memref<1x1024xf32, #tpu.memory_space<any>> -> memref<1024xf32, #tpu.memory_space<any>>
    %c0_i32_31 = arith.constant 0 : i32
    %69 = tpu.memref_slice %arg3[%c7_i32_28, %c0_i32_31] : memref<8x1024xf32, #tpu.memory_space<vmem>> -> memref<1x1024xf32, #tpu.memory_space<vmem>>
    %70 = tpu.memref_squeeze %69 : memref<1x1024xf32, #tpu.memory_space<vmem>> -> memref<1024xf32, #tpu.memory_space<vmem>>
    %71 = tpu.memref_slice %arg4[%c7_i32_29] : memref<8x!tpu.dma_semaphore, #tpu.memory_space<semaphore_mem>> -> memref<1x!tpu.dma_semaphore, #tpu.memory_space<semaphore_mem>>
    %72 = tpu.memref_squeeze %71 : memref<1x!tpu.dma_semaphore, #tpu.memory_space<semaphore_mem>> -> memref<!tpu.dma_semaphore, #tpu.memory_space<semaphore_mem>>
    tpu.enqueue_dma source(%68 : memref<1024xf32, #tpu.memory_space<any>>) target(%70 : memref<1024xf32, #tpu.memory_space<vmem>>) target_semaphore(%72 : memref<!tpu.dma_semaphore, #tpu.memory_space<semaphore_mem>>)
    %c0_i32_32 = arith.constant 0 : i32
    %c8_i32_33 = arith.constant 8 : i32
    %73 = arith.addi %c0_i32_32, %c8_i32_33 : i32
    %c1_i32_34 = arith.constant 1 : i32
    scf.for %arg5 = %c0_i32_32 to %73 step %c1_i32_34  : i32 {
      %c8_i32_36 = arith.constant 8 : i32
      %74 = arith.remsi %arg5, %c8_i32_36 : i32
      %75 = arith.addi %0, %arg5 : i32
      %76 = arith.index_cast %75 : i32 to index
      %77 = memref.load %arg1[%76] : memref<8xi32, #tpu.memory_space<smem>>
      %c0_i32_37 = arith.constant 0 : i32
      %78 = tpu.memref_slice %arg2[%77, %c0_i32_37] : memref<8194x1024xf32, #tpu.memory_space<any>> -> memref<1x1024xf32, #tpu.memory_space<any>>
      %79 = tpu.memref_squeeze %78 : memref<1x1024xf32, #tpu.memory_space<any>> -> memref<1024xf32, #tpu.memory_space<any>>
      %c0_i32_38 = arith.constant 0 : i32
      %80 = tpu.memref_slice %arg3[%arg5, %c0_i32_38] : memref<8x1024xf32, #tpu.memory_space<vmem>> -> memref<1x1024xf32, #tpu.memory_space<vmem>>
      %81 = tpu.memref_squeeze %80 : memref<1x1024xf32, #tpu.memory_space<vmem>> -> memref<1024xf32, #tpu.memory_space<vmem>>
      %82 = tpu.memref_slice %arg4[%74] : memref<8x!tpu.dma_semaphore, #tpu.memory_space<semaphore_mem>> -> memref<1x!tpu.dma_semaphore, #tpu.memory_space<semaphore_mem>>
      %83 = tpu.memref_squeeze %82 : memref<1x!tpu.dma_semaphore, #tpu.memory_space<semaphore_mem>> -> memref<!tpu.dma_semaphore, #tpu.memory_space<semaphore_mem>>
      tpu.wait_dma2 semaphore(%83 : memref<!tpu.dma_semaphore, #tpu.memory_space<semaphore_mem>>) src(%79 : memref<1024xf32, #tpu.memory_space<any>>) dst(%81 : memref<1024xf32, #tpu.memory_space<vmem>>)
      %c8_i32_39 = arith.constant 8 : i32
      %84 = arith.addi %arg5, %c8_i32_39 : i32
      %c8_i32_40 = arith.constant 8 : i32
      %85 = arith.cmpi slt, %84, %c8_i32_40 : i32
      %86 = arith.extui %85 : i1 to i32
      %c0_i32_41 = arith.constant 0 : i32
      %87 = arith.cmpi ne, %86, %c0_i32_41 : i32
      scf.if %87 {
        %c8_i32_42 = arith.constant 8 : i32
        %88 = arith.addi %arg5, %c8_i32_42 : i32
        %89 = arith.addi %0, %88 : i32
        %90 = arith.index_cast %89 : i32 to index
        %91 = memref.load %arg1[%90] : memref<8xi32, #tpu.memory_space<smem>>
        %c0_i32_43 = arith.constant 0 : i32
        %92 = tpu.memref_slice %arg2[%91, %c0_i32_43] : memref<8194x1024xf32, #tpu.memory_space<any>> -> memref<1x1024xf32, #tpu.memory_space<any>>
        %93 = tpu.memref_squeeze %92 : memref<1x1024xf32, #tpu.memory_space<any>> -> memref<1024xf32, #tpu.memory_space<any>>
        %c0_i32_44 = arith.constant 0 : i32
        %94 = tpu.memref_slice %arg3[%88, %c0_i32_44] : memref<8x1024xf32, #tpu.memory_space<vmem>> -> memref<1x1024xf32, #tpu.memory_space<vmem>>
        %95 = tpu.memref_squeeze %94 : memref<1x1024xf32, #tpu.memory_space<vmem>> -> memref<1024xf32, #tpu.memory_space<vmem>>
        %96 = tpu.memref_slice %arg4[%74] : memref<8x!tpu.dma_semaphore, #tpu.memory_space<semaphore_mem>> -> memref<1x!tpu.dma_semaphore, #tpu.memory_space<semaphore_mem>>
        %97 = tpu.memref_squeeze %96 : memref<1x!tpu.dma_semaphore, #tpu.memory_space<semaphore_mem>> -> memref<!tpu.dma_semaphore, #tpu.memory_space<semaphore_mem>>
        tpu.enqueue_dma source(%93 : memref<1024xf32, #tpu.memory_space<any>>) target(%95 : memref<1024xf32, #tpu.memory_space<vmem>>) target_semaphore(%97 : memref<!tpu.dma_semaphore, #tpu.memory_space<semaphore_mem>>)
      } else {
      }
    }
    %c8_i32_35 = arith.constant 8 : i32
    return
  }
  func.func @transform_1(%arg0: i32, %arg1: memref<8xi32, #tpu.memory_space<smem>>) -> (i32, i32) {
    %c0_i32 = arith.constant 0 : i32
    %c0_i32_0 = arith.constant 0 : i32
    return %arg0, %c0_i32 : i32, i32
  }
}

module attributes {stable_mosaic.version = 11 : i64} {
  func.func @upsample_mm_kernel(%arg0: i32, %arg1: memref<8x1024xf32, #tpu.memory_space<vmem>>, %arg2: memref<1024x512xbf16, #tpu.memory_space<vmem>>, %arg3: memref<1x512xf32, #tpu.memory_space<vmem>>, %arg4: memref<512x512xbf16, #tpu.memory_space<vmem>>, %arg5: memref<1x512xf32, #tpu.memory_space<vmem>>, %arg6: memref<8x512xf32, #tpu.memory_space<vmem>>) attributes {dimension_semantics = [#tpu.dimension_semantics<parallel>], iteration_bounds = array<i64: 1>, scalar_prefetch = 0 : i64, scratch_operands = 0 : i64, tpu.core_type = #tpu.core_type<tc>, window_params = [{transform_indices = @transform_0, window_bounds = array<i64: 8, 1024>}, {pipeline_mode = #tpu.pipeline_mode<synchronous>, transform_indices = @transform_1, window_bounds = array<i64: 1024, 512>}, {pipeline_mode = #tpu.pipeline_mode<synchronous>, transform_indices = @transform_2, window_bounds = array<i64: 1, 512>}, {pipeline_mode = #tpu.pipeline_mode<synchronous>, transform_indices = @transform_3, window_bounds = array<i64: 512, 512>}, {pipeline_mode = #tpu.pipeline_mode<synchronous>, transform_indices = @transform_4, window_bounds = array<i64: 1, 512>}, {transform_indices = @transform_5, window_bounds = array<i64: 8, 512>}]} {
    %c0 = arith.constant 0 : index
    %c0_0 = arith.constant 0 : index
    %0 = vector.load %arg1[%c0, %c0_0] : memref<8x1024xf32, #tpu.memory_space<vmem>>, vector<8x1024xf32>
    %1 = arith.truncf %0 : vector<8x1024xf32> to vector<8x1024xbf16>
    %c0_1 = arith.constant 0 : index
    %c0_2 = arith.constant 0 : index
    %2 = vector.load %arg2[%c0_1, %c0_2] : memref<1024x512xbf16, #tpu.memory_space<vmem>>, vector<1024x512xbf16>
    %cst = arith.constant dense<0.000000e+00> : vector<8x512xf32>
    %3 = tpu.matmul %1, %2, %cst {dimension_numbers = #tpu.dot_dimension_numbers<[1], [0], [0], [1], [0, 0, 1, 1], [], []>} : vector<8x1024xbf16>, vector<1024x512xbf16>, vector<8x512xf32> -> vector<8x512xf32>
    %c0_3 = arith.constant 0 : index
    %c0_4 = arith.constant 0 : index
    %4 = vector.load %arg3[%c0_3, %c0_4] : memref<1x512xf32, #tpu.memory_space<vmem>>, vector<1x512xf32>
    %5 = vector.broadcast %4 : vector<1x512xf32> to vector<8x512xf32>
    %6 = arith.addf %3, %5 : vector<8x512xf32>
    %7 = arith.truncf %6 : vector<8x512xf32> to vector<8x512xbf16>
    %c0_5 = arith.constant 0 : index
    %c0_6 = arith.constant 0 : index
    %8 = vector.load %arg4[%c0_5, %c0_6] : memref<512x512xbf16, #tpu.memory_space<vmem>>, vector<512x512xbf16>
    %cst_7 = arith.constant dense<0.000000e+00> : vector<8x512xf32>
    %9 = tpu.matmul %7, %8, %cst_7 {dimension_numbers = #tpu.dot_dimension_numbers<[1], [0], [0], [1], [0, 0, 1, 1], [], []>} : vector<8x512xbf16>, vector<512x512xbf16>, vector<8x512xf32> -> vector<8x512xf32>
    %c0_8 = arith.constant 0 : index
    %c0_9 = arith.constant 0 : index
    %10 = vector.load %arg5[%c0_8, %c0_9] : memref<1x512xf32, #tpu.memory_space<vmem>>, vector<1x512xf32>
    %11 = vector.broadcast %10 : vector<1x512xf32> to vector<8x512xf32>
    %12 = arith.addf %9, %11 : vector<8x512xf32>
    %c0_10 = arith.constant 0 : index
    %c0_11 = arith.constant 0 : index
    %13 = vector.load %arg6[%c0_10, %c0_11] : memref<8x512xf32, #tpu.memory_space<vmem>>, vector<8x512xf32>
    tpu.vector_store %arg6[%c0_10, %c0_11], %12 {strides = array<i32>} : memref<8x512xf32, #tpu.memory_space<vmem>>, vector<8x512xf32>,
    return
  }
  func.func @transform_0(%arg0: i32) -> (i32, i32) {
    %c0_i32 = arith.constant 0 : i32
    %c0_i32_0 = arith.constant 0 : i32
    return %arg0, %c0_i32 : i32, i32
  }
  func.func @transform_1(%arg0: i32) -> (i32, i32) {
    %c0_i32 = arith.constant 0 : i32
    %c0_i32_0 = arith.constant 0 : i32
    %c0_i32_1 = arith.constant 0 : i32
    return %c0_i32, %c0_i32_0 : i32, i32
  }
  func.func @transform_2(%arg0: i32) -> (i32, i32) {
    %c0_i32 = arith.constant 0 : i32
    %c0_i32_0 = arith.constant 0 : i32
    %c0_i32_1 = arith.constant 0 : i32
    return %c0_i32, %c0_i32_0 : i32, i32
  }
  func.func @transform_3(%arg0: i32) -> (i32, i32) {
    %c0_i32 = arith.constant 0 : i32
    %c0_i32_0 = arith.constant 0 : i32
    %c0_i32_1 = arith.constant 0 : i32
    return %c0_i32, %c0_i32_0 : i32, i32
  }
  func.func @transform_4(%arg0: i32) -> (i32, i32) {
    %c0_i32 = arith.constant 0 : i32
    %c0_i32_0 = arith.constant 0 : i32
    %c0_i32_1 = arith.constant 0 : i32
    return %c0_i32, %c0_i32_0 : i32, i32
  }
  func.func @transform_5(%arg0: i32) -> (i32, i32) {
    %c0_i32 = arith.constant 0 : i32
    %c0_i32_0 = arith.constant 0 : i32
    return %arg0, %c0_i32 : i32, i32
  }
}

</mosaic_0001>

<llo_original>
// kernel: upsampler_forward.2
$region0: #{upsampler_forward.2}
  #allocation0 [shape = 'u32[]', space=smem, size = 0x4, offset = 0x4, fixed_abs, tag = 'smem constant byte address 0x4 - core index']
  #allocation1 [shape = 'u32[144,128]{1,0:T(1,128)}', space=vmem, size = 0x12000, scoped, tag = 'internal scratch']
  #allocation2 [shape = 's32[8]{0}', space=sflag, size = 0x20, scoped, tag = 'scratch operand']
  #allocation3 [shape = 's32[1]{0}', space=sflag, size = 0x4, scoped, tag = 'scoped memory for upsampler_forward.2']
  #allocation4 [shape = 'u8[512]{0}', space=smem, size = 0x200, scoped, tag = 'prefetched SMEM operand 0']
  #allocation5 [shape = 's32[]', space=sflag, size = 0x4, offset = 0, fixed_abs, tag = 'sflag constant byte address 0x0 - dummy sync flag']
  #allocation6 [shape = 's32[]', space=sflag, size = 0x4, offset = 0, fixed_abs, tag = 'sflag constant byte address 0x0 - dummy sync flag']
  #allocation7 [shape = 's32[]', space=sflag, size = 0x4, offset = 0, fixed_abs, tag = 'sflag constant byte address 0x0 - dummy sync flag']
  #allocation8 [shape = 's32[]', space=sflag, size = 0x4, offset = 0, fixed_abs, tag = 'sflag constant byte address 0x0 - dummy sync flag']
  #allocation9 [shape = 's32[]', space=sflag, size = 0x4, offset = 0, fixed_abs, tag = 'sflag constant byte address 0x0 - dummy sync flag']
  #allocation10 [shape = 's32[]', space=sflag, size = 0x4, offset = 0, fixed_abs, tag = 'sflag constant byte address 0x0 - dummy sync flag']
  #allocation11 [shape = 's32[]', space=sflag, size = 0x4, offset = 0, fixed_abs, tag = 'sflag constant byte address 0x0 - dummy sync flag']
  #allocation12 [shape = 's32[]', space=sflag, size = 0x4, offset = 0, fixed_abs, tag = 'sflag constant byte address 0x0 - dummy sync flag']
  #allocation13 [shape = 's32[]', space=sflag, size = 0x4, offset = 0, fixed_abs, tag = 'sflag constant byte address 0x0 - dummy sync flag']
  %s0 = inlined_call_operand.vmem [shape: s32[8], index: 0, kind: input, shape index: {}]
  %s1 = inlined_call_operand.hbm [shape: f32[8194,1024], index: 1, kind: input, shape index: {}]
  %s2 = inlined_call_operand.vmem [shape: f32[8,1024], index: 2, kind: output, shape index: {}]
  %s3 = sld [smem:[#allocation0]]
  $region21: #{upsampler_forward.2} parent=0
    _
  %s5 = ssub.s32 1, %s3
  %s6 = scalar_select 0, %s5, %s3
  %s7 = sshll.u32 %s0, 4
  %s8 = int_to_ptr.vmem [resolvable:$true] %s7
  %10 = dma.vmem_to_smem %s8, 16, [#allocation4], [#allocation3]
  %11 = dma.done [#allocation3], 16
  %12 = sfence
  %s13 = smul.u32 0, 8
  %s14 = sld [smem:[#allocation4 + %s13]]
  %s15 = sshrl.u32 %s14, 3
  %s16 = sand.u32 %s14, 7
  %s17 = smul.u32 %s15, 64
  %s18 = sadd.s32 %s16, %s17
  %s19 = smul.addr %s18, 16
  %s20 = scalar_lea.hbm %s1, %s19
  %s22 = sshll.u32 %s2, 4
  %s23 = int_to_ptr.vmem [resolvable:$true] %s22
  %25 = dma.hbm_to_vmem [thread:$0]  %s20, 128, %s23, [#allocation2], 128, 128, 1
  %s26 = sadd.s32 %s13, 1
  %s27 = sld [smem:[#allocation4 + %s26]]
  %s28 = sshrl.u32 %s27, 3
  %s29 = sand.u32 %s27, 7
  %s30 = smul.u32 %s28, 64
  %s31 = sadd.s32 %s29, %s30
  %s32 = smul.addr %s31, 16
  %s33 = scalar_lea.hbm %s1, %s32
  %s34 = scalar_lea.vmem %s2, 1
  %s35 = scalar_lea.sflag [#allocation2], 1
  %s37 = sshll.u32 %s34, 4
  %s38 = int_to_ptr.vmem [resolvable:$true] %s37
  %40 = dma.hbm_to_vmem [thread:$0]  %s33, 128, %s38, %s35, 128, 128, 1
  %s41 = sadd.s32 %s13, 2
  %s42 = sld [smem:[#allocation4 + %s41]]
  %s43 = sshrl.u32 %s42, 3
  %s44 = sand.u32 %s42, 7
  %s45 = smul.u32 %s43, 64
  %s46 = sadd.s32 %s44, %s45
  %s47 = smul.addr %s46, 16
  %s48 = scalar_lea.hbm %s1, %s47
  %s49 = scalar_lea.vmem %s2, 2
  %s50 = scalar_lea.sflag [#allocation2], 2
  %s52 = sshll.u32 %s49, 4
  %s53 = int_to_ptr.vmem [resolvable:$true] %s52
  %55 = dma.hbm_to_vmem [thread:$0]  %s48, 128, %s53, %s50, 128, 128, 1
  %s56 = sadd.s32 %s13, 3
  %s57 = sld [smem:[#allocation4 + %s56]]
  %s58 = sshrl.u32 %s57, 3
  %s59 = sand.u32 %s57, 7
  %s60 = smul.u32 %s58, 64
  %s61 = sadd.s32 %s59, %s60
  %s62 = smul.addr %s61, 16
  %s63 = scalar_lea.hbm %s1, %s62
  %s64 = scalar_lea.vmem %s2, 3
  %s65 = scalar_lea.sflag [#allocation2], 3
  %s67 = sshll.u32 %s64, 4
  %s68 = int_to_ptr.vmem [resolvable:$true] %s67
  %70 = dma.hbm_to_vmem [thread:$0]  %s63, 128, %s68, %s65, 128, 128, 1
  %s71 = sadd.s32 %s13, 4
  %s72 = sld [smem:[#allocation4 + %s71]]
  %s73 = sshrl.u32 %s72, 3
  %s74 = sand.u32 %s72, 7
  %s75 = smul.u32 %s73, 64
  %s76 = sadd.s32 %s74, %s75
  %s77 = smul.addr %s76, 16
  %s78 = scalar_lea.hbm %s1, %s77
  %s79 = scalar_lea.vmem %s2, 4
  %s80 = scalar_lea.sflag [#allocation2], 4
  %s82 = sshll.u32 %s79, 4
  %s83 = int_to_ptr.vmem [resolvable:$true] %s82
  %85 = dma.hbm_to_vmem [thread:$0]  %s78, 128, %s83, %s80, 128, 128, 1
  %s86 = sadd.s32 %s13, 5
  %s87 = sld [smem:[#allocation4 + %s86]]
  %s88 = sshrl.u32 %s87, 3
  %s89 = sand.u32 %s87, 7
  %s90 = smul.u32 %s88, 64
  %s91 = sadd.s32 %s89, %s90
  %s92 = smul.addr %s91, 16
  %s93 = scalar_lea.hbm %s1, %s92
  %s94 = scalar_lea.vmem %s2, 5
  %s95 = scalar_lea.sflag [#allocation2], 5
  %s97 = sshll.u32 %s94, 4
  %s98 = int_to_ptr.vmem [resolvable:$true] %s97
  %100 = dma.hbm_to_vmem [thread:$0]  %s93, 128, %s98, %s95, 128, 128, 1
  %s101 = sadd.s32 %s13, 6
  %s102 = sld [smem:[#allocation4 + %s101]]
  %s103 = sshrl.u32 %s102, 3
  %s104 = sand.u32 %s102, 7
  %s105 = smul.u32 %s103, 64
  %s106 = sadd.s32 %s104, %s105
  %s107 = smul.addr %s106, 16
  %s108 = scalar_lea.hbm %s1, %s107
  %s109 = scalar_lea.vmem %s2, 6
  %s110 = scalar_lea.sflag [#allocation2], 6
  %s112 = sshll.u32 %s109, 4
  %s113 = int_to_ptr.vmem [resolvable:$true] %s112
  %115 = dma.hbm_to_vmem [thread:$0]  %s108, 128, %s113, %s110, 128, 128, 1
  %s116 = sadd.s32 %s13, 7
  %s117 = sld [smem:[#allocation4 + %s116]]
  %s118 = sshrl.u32 %s117, 3
  %s119 = sand.u32 %s117, 7
  %s120 = smul.u32 %s118, 64
  %s121 = sadd.s32 %s119, %s120
  %s122 = smul.addr %s121, 16
  %s123 = scalar_lea.hbm %s1, %s122
  %s124 = scalar_lea.vmem %s2, 7
  %s125 = scalar_lea.sflag [#allocation2], 7
  %s127 = sshll.u32 %s124, 4
  %s128 = int_to_ptr.vmem [resolvable:$true] %s127
  %130 = dma.hbm_to_vmem [thread:$0]  %s123, 128, %s128, %s125, 128, 128, 1
  loop: start=0, step=1, limit=8
  $region2: #{upsampler_forward.2} parent=0 // loop_pre_header
    _
  $region3: #{upsampler_forward.2} parent=0 // loop_header
    %s132 = sphi 0, %s136
    %p133 = scmp.ge.s32.totalorder %s132, 8
  $region4: #{upsampler_forward.2} parent=0 // loop_header_branch
    %135 = sbr.rel (%p133) target = $region8
  $region5: #{upsampler_forward.2} parent=0 // loop_body
    %p137 = scmp.lt.s32.totalorder %s132, 0
    %s138 = ssub.s32 0, %s132
    %s139 = scalar_select %p137, %s138, %s132
    %s140 = sand.u32 %s139, 7
    %s141 = ssub.s32 0, %s140
    %s142 = scalar_select %p137, %s141, %s140
    %s143 = sadd.s32 %s13, %s132
    %s144 = sld [smem:[#allocation4 + %s143]]
    %s145 = scalar_lea.sflag [#allocation2], %s142
    %147 = dma.done %s145, 128
    %s148 = sadd.s32 %s132, 8
    %p149 = scmp.lt.s32.totalorder %s148, 8
    // Predicated region
    $region9: #{upsampler_forward.2} parent=5 // pred_check
      %p150 = pneg %p149
    $region10: #{upsampler_forward.2} parent=5 // pred_check_branch
      %152 = sbr.rel (%p150) target = $region12
    $region11: #{upsampler_forward.2} parent=5 // pred_region
      %s153 = sadd.s32 %s13, %s148
      %s154 = sld [smem:[#allocation4 + %s153]]
      %s155 = sshrl.u32 %s154, 3
      %s156 = sand.u32 %s154, 7
      %s157 = smul.u32 %s155, 64
      %s158 = sadd.s32 %s156, %s157
      %s159 = smul.addr %s158, 16
      %s160 = scalar_lea.hbm %s1, %s159
      %s161 = sshrl.u32 %s148, 3
      %s162 = sand.u32 %s148, 7
      %s163 = smul.u32 %s161, 64
      %s164 = sadd.s32 %s162, %s163
      %s165 = scalar_lea.vmem %s2, %s164
      %s167 = sshll.u32 %s165, 4
      %s168 = int_to_ptr.vmem [resolvable:$true] %s167
      %170 = dma.hbm_to_vmem [thread:$0]  %s160, 128, %s168, %s145, 128, 128, 1
    $region12: #{upsampler_forward.2} parent=5 // pred_fallthru
      _
  $region6: #{upsampler_forward.2} parent=0 // loop_footer
    %s136 = sadd.s32 1, %s132
  $region7: #{upsampler_forward.2} parent=0 // loop_footer_branch
    %131 = sbr.rel target = $region3
  $region8: #{upsampler_forward.2} parent=0 // loop_exit
    _
  // Predicated region
  $region13: #{upsampler_forward.2} parent=0 // pred_check
    _
  $region14: #{upsampler_forward.2} parent=0 // pred_check_branch
    %172 = sbr.rel (0) target = $region16
  $region15: #{upsampler_forward.2} parent=0 // pred_region
    _
  $region16: #{upsampler_forward.2} parent=0 // pred_fallthru
    _
  // Predicated region
  $region17: #{upsampler_forward.2} parent=0 // pred_check
    _
  $region18: #{upsampler_forward.2} parent=0 // pred_check_branch
    %174 = sbr.rel (0) target = $region20
  $region19: #{upsampler_forward.2} parent=0 // pred_region
    _
  $region20: #{upsampler_forward.2} parent=0 // pred_fallthru
    _
  %175 = vsyncmov [#allocation2]
  %s176 = vpop.sfrf %175
  %p177 = scmp.eq.s32.totalorder %s176, 0
  %p178 = pneg %p177
  %180 = shalt.err (%p178)
  %s181 = scalar_lea.sflag [#allocation2], 1
  %182 = vsyncmov %s181
  %s183 = vpop.sfrf %182
  %p184 = scmp.eq.s32.totalorder %s183, 0
  %p185 = pneg %p184
  %187 = shalt.err (%p185)
  %s188 = scalar_lea.sflag [#allocation2], 2
  %189 = vsyncmov %s188
  %s190 = vpop.sfrf %189
  %p191 = scmp.eq.s32.totalorder %s190, 0
  %p192 = pneg %p191
  %194 = shalt.err (%p192)
  %s195 = scalar_lea.sflag [#allocation2], 3
  %196 = vsyncmov %s195
  %s197 = vpop.sfrf %196
  %p198 = scmp.eq.s32.totalorder %s197, 0
  %p199 = pneg %p198
  %201 = shalt.err (%p199)
  %s202 = scalar_lea.sflag [#allocation2], 4
  %203 = vsyncmov %s202
  %s204 = vpop.sfrf %203
  %p205 = scmp.eq.s32.totalorder %s204, 0
  %p206 = pneg %p205
  %208 = shalt.err (%p206)
  %s209 = scalar_lea.sflag [#allocation2], 5
  %210 = vsyncmov %s209
  %s211 = vpop.sfrf %210
  %p212 = scmp.eq.s32.totalorder %s211, 0
  %p213 = pneg %p212
  %215 = shalt.err (%p213)
  %s216 = scalar_lea.sflag [#allocation2], 6
  %217 = vsyncmov %s216
  %s218 = vpop.sfrf %217
  %p219 = scmp.eq.s32.totalorder %s218, 0
  %p220 = pneg %p219
  %222 = shalt.err (%p220)
  %s223 = scalar_lea.sflag [#allocation2], 7
  %224 = vsyncmov %s223
  %s225 = vpop.sfrf %224
  %p226 = scmp.eq.s32.totalorder %s225, 0
  %p227 = pneg %p226
  %229 = shalt.err (%p227)

// kernel: tile.13
$region0: #{tile.13}
  #allocation0 [shape = 's32[1]{0}', space=sflag, size = 0x4, scoped, tag = 'scoped memory for tile.13']
  %s0 = inlined_call_operand.vmem [shape: f32[200], index: 0, kind: input, shape index: {}]
  %s1 = inlined_call_operand.vmem [shape: f32[2,200], index: 1, kind: output, shape index: {}]
  // Predicated region
  $region2: #{tile.13} parent=0 // pred_check
    _
  $region3: #{tile.13} parent=0 // pred_check_branch
    %3 = sbr.rel (0) target = $region5
  $region4: #{tile.13} parent=0 // pred_region
    _
  $region5: #{tile.13} parent=0 // pred_fallthru
    _
  %v4 = vld [vmem:[%s0] ss:$0 sm:$0xff]
  %5 = vst [vmem:[%s1] sm:$0x3] %v4
  %s6 = scalar_lea.vmem %s0, 1
  %v7 = vld [vmem:[%s6] ss:$0 sm:$0xff]
  %s8 = scalar_lea.vmem %s1, 2
  %9 = vst [vmem:[%s8] sm:$0x3] %v7

// kernel: tile.14
$region0: #{tile.14}
  %s0 = inlined_call_operand.vmem [shape: f32[2,200], index: 0, kind: input, shape index: {}]
  %s1 = inlined_call_operand.vmem [shape: f32[400], index: 1, kind: output, shape index: {}]
  $region1: #{tile.14} parent=0
    #allocation0 [shape = 'u8[4096]{0}', space=vmem, size = 0x1000, scoped, tag = 'scoped mem for output reshape']
    #allocation1 [shape = 'u8[8192]{0}', space=vmem, size = 0x2000, scoped, tag = 'scoped mem for input reshape']
    %s3 = sshllo.u32 0, 2
    %s4 = scalar_lea.vmem %s0, 2
    %v5 = vld [vmem:[%s4] sm:%s3]
    %s6 = scalar_lea.vmem [#allocation1], 8
    %7 = vst [vmem:[%s6] sm:%s3] %v5
    %v8 = vld [vmem:[%s0] sm:%s3]
    %9 = vst [vmem:[#allocation1] sm:%s3] %v8
    %s10 = scalar_lea.vmem [#allocation1], 8
    %v11 = vld [vmem:[%s10] sm:$0x1]
    %vm12 = vcmask 588800
    %s13 = scalar_lea.vmem [#allocation0], 1
    %14 = vst.msk [vmem:[%s13] sm:$0x1] %vm12, %v11
    %v15 = vld [vmem:[#allocation1] sm:$0x1]
    %16 = vst [vmem:[#allocation0] sm:$0x1] %v15
    %s17 = scalar_lea.vmem [#allocation1], 9
    %v18 = vld [vmem:[%s17] sm:$0x1]
    %s19 = scalar_lea.vmem [#allocation1], 1
    %s20 = smov 3
    %v21 = vld [vmem:[%s19] ss:$8 sm:%s20]
    %vm22 = vcmask 457728
    %v23 = vsel %vm22, %v21, %v18
    %24 = vrot.lane.b32.xlu0 %v23, 72
    %v25 = vpop.permute.xlu0 %24
    %vm26 = vcmask 130048
    %s27 = scalar_lea.vmem [#allocation0], 3
    %28 = vst.msk [vmem:[%s27] sm:$0x1] %vm26, %v25
    %vm29 = vcmask 1048128
    %s30 = scalar_lea.vmem [#allocation0], 1
    %31 = vst.msk [vmem:[%s30] sm:$0x3] %vm29, %v25
    %s32 = scalar_lea.vmem [#allocation1], 1
    %v33 = vld [vmem:[%s32] sm:$0x1]
    %34 = vrot.lane.b32.xlu0 %v33, 72
    %v35 = vpop.permute.xlu0 %34
    %vm36 = vcmask 588800
    %s37 = scalar_lea.vmem [#allocation0], 2
    %38 = vst.msk [vmem:[%s37] sm:$0x1] %vm36, %v35
    %s40 = sshllo.u32 0, 4
    %v42 = vld [vmem:[#allocation0] sm:%s40]
    %s43 = sshllo.u32 0, 4
    %44 = vst [vmem:[%s1] sm:%s43] %v42

// kernel: tile.18
$region0: #{tile.18}
  #allocation0 [shape = 's32[1]{0}', space=sflag, size = 0x4, scoped, tag = 'scoped memory for tile.18']
  %s0 = inlined_call_operand.vmem [shape: f32[100], index: 0, kind: input, shape index: {}]
  %s1 = inlined_call_operand.vmem [shape: f32[4,100], index: 1, kind: output, shape index: {}]
  // Predicated region
  $region2: #{tile.18} parent=0 // pred_check
    _
  $region3: #{tile.18} parent=0 // pred_check_branch
    %3 = sbr.rel (0) target = $region5
  $region4: #{tile.18} parent=0 // pred_region
    _
  $region5: #{tile.18} parent=0 // pred_fallthru
    _
  %v4 = vld [vmem:[%s0] ss:$0 sm:$0xff]
  %5 = vst [vmem:[%s1] sm:$0xf] %v4

// kernel: tile.19
$region0: #{tile.19}
  %s0 = inlined_call_operand.vmem [shape: f32[4,100], index: 0, kind: input, shape index: {}]
  %s1 = inlined_call_operand.vmem [shape: f32[400], index: 1, kind: output, shape index: {}]
  $region1: #{tile.19} parent=0
    #allocation0 [shape = 'u8[4096]{0}', space=vmem, size = 0x1000, scoped, tag = 'scoped mem for output reshape']
    #allocation1 [shape = 'u8[4096]{0}', space=vmem, size = 0x1000, scoped, tag = 'scoped mem for input reshape']
    %s3 = sshllo.u32 0, 4
    %v4 = vld [vmem:[%s0] sm:%s3]
    %5 = vst [vmem:[#allocation1] sm:%s3] %v4
    %v6 = vld [vmem:[#allocation1] sm:$0x1]
    %vm7 = vcmask 818176
    %8 = vst.msk [vmem:[#allocation0] sm:$0x1] %vm7, %v6
    %s9 = scalar_lea.vmem [#allocation1], 1
    %v10 = vld [vmem:[%s9] sm:$0x1]
    %s11 = scalar_lea.vmem [#allocation1], 1
    %v12 = vld [vmem:[%s11] sm:$0x1]
    %vm13 = vcmask 228352
    %v14 = vsel %vm13, %v12, %v10
    %15 = vrot.lane.b32.xlu0 %v14, 100
    %v16 = vpop.permute.xlu0 %15
    %vm17 = vcmask 588800
    %s18 = scalar_lea.vmem [#allocation0], 1
    %19 = vst.msk [vmem:[%s18] sm:$0x1] %vm17, %v16
    %vm20 = vcmask 1048352
    %21 = vst.msk [vmem:[#allocation0] sm:$0x1] %vm20, %v16
    %s22 = scalar_lea.vmem [#allocation1], 2
    %v23 = vld [vmem:[%s22] sm:$0x1]
    %s24 = scalar_lea.vmem [#allocation1], 2
    %v25 = vld [vmem:[%s24] sm:$0x1]
    %vm26 = vcmask 457728
    %v27 = vsel %vm26, %v25, %v23
    %28 = vrot.lane.b32.xlu0 %v27, 72
    %v29 = vpop.permute.xlu0 %28
    %vm30 = vcmask 359424
    %s31 = scalar_lea.vmem [#allocation0], 2
    %32 = vst.msk [vmem:[%s31] sm:$0x1] %vm30, %v29
    %vm33 = vcmask 1048128
    %s34 = scalar_lea.vmem [#allocation0], 1
    %35 = vst.msk [vmem:[%s34] sm:$0x1] %vm33, %v29
    %s36 = scalar_lea.vmem [#allocation1], 3
    %v37 = vld [vmem:[%s36] sm:$0x1]
    %s38 = scalar_lea.vmem [#allocation1], 3
    %v39 = vld [vmem:[%s38] sm:$0x1]
    %vm40 = vcmask 687104
    %v41 = vsel %vm40, %v39, %v37
    %42 = vrot.lane.b32.xlu0 %v41, 44
    %v43 = vpop.permute.xlu0 %42
    %vm44 = vcmask 130048
    %s45 = scalar_lea.vmem [#allocation0], 3
    %46 = vst.msk [vmem:[%s45] sm:$0x1] %vm44, %v43
    %vm47 = vcmask 1047904
    %s48 = scalar_lea.vmem [#allocation0], 2
    %49 = vst.msk [vmem:[%s48] sm:$0x1] %vm47, %v43
    %s51 = sshllo.u32 0, 4
    %v53 = vld [vmem:[#allocation0] sm:%s51]
    %s54 = sshllo.u32 0, 4
    %55 = vst [vmem:[%s1] sm:%s54] %v53

// kernel: upsampler_forward.3
$region0: #{upsampler_forward.3}
  #allocation0 [shape = 'u32[]', space=smem, size = 0x4, offset = 0x4, fixed_abs, tag = 'smem constant byte address 0x4 - core index']
  #allocation1 [shape = 'u32[144,128]{1,0:T(1,128)}', space=vmem, size = 0x12000, scoped, tag = 'internal scratch']
  %s0 = inlined_call_operand.vmem [shape: f32[8,1024], index: 0, kind: input, shape index: {}]
  %s1 = inlined_call_operand.vmem [shape: bf16[1024,512], index: 1, kind: input, shape index: {}]
  %s2 = inlined_call_operand.vmem [shape: f32[1,512], index: 2, kind: input, shape index: {}]
  %s3 = inlined_call_operand.vmem [shape: bf16[512,512], index: 3, kind: input, shape index: {}]
  %s4 = inlined_call_operand.vmem [shape: f32[1,512], index: 4, kind: input, shape index: {}]
  %s5 = inlined_call_operand.vmem [shape: f32[8,512], index: 5, kind: output, shape index: {}]
  %s6 = sld [smem:[#allocation0]]
  $region30: #{upsampler_forward.3} parent=0
    _
  %s8 = ssub.s32 1, %s6
  %s9 = scalar_select 0, %s8, %s6
  // Predicated region
  $region2: #{upsampler_forward.3} parent=0 // pred_check
    _
  $region3: #{upsampler_forward.3} parent=0 // pred_check_branch
    %11 = sbr.rel (0) target = $region5
  $region4: #{upsampler_forward.3} parent=0 // pred_region
    _
  $region5: #{upsampler_forward.3} parent=0 // pred_fallthru
    _
  // Predicated region
  $region6: #{upsampler_forward.3} parent=0 // pred_check
    _
  $region7: #{upsampler_forward.3} parent=0 // pred_check_branch
    %13 = sbr.rel (0) target = $region9
  $region8: #{upsampler_forward.3} parent=0 // pred_region
    _
  $region9: #{upsampler_forward.3} parent=0 // pred_fallthru
    _
  // Predicated region
  $region10: #{upsampler_forward.3} parent=0 // pred_check
    _
  $region11: #{upsampler_forward.3} parent=0 // pred_check_branch
    %15 = sbr.rel (0) target = $region13
  $region12: #{upsampler_forward.3} parent=0 // pred_region
    _
  $region13: #{upsampler_forward.3} parent=0 // pred_fallthru
    _
  // Predicated region
  $region14: #{upsampler_forward.3} parent=0 // pred_check
    _
  $region15: #{upsampler_forward.3} parent=0 // pred_check_branch
    %17 = sbr.rel (0) target = $region17
  $region16: #{upsampler_forward.3} parent=0 // pred_region
    _
  $region17: #{upsampler_forward.3} parent=0 // pred_fallthru
    _
  // Predicated region
  $region18: #{upsampler_forward.3} parent=0 // pred_check
    _
  $region19: #{upsampler_forward.3} parent=0 // pred_check_branch
    %19 = sbr.rel (0) target = $region21
  $region20: #{upsampler_forward.3} parent=0 // pred_region
    _
  $region21: #{upsampler_forward.3} parent=0 // pred_fallthru
    _
  %v20 = vld [vmem:[%s0] sm:$0xff]
  %v21 = vld [vmem:[%s0 + $0x8] sm:$0xff]
  %v22 = vld [vmem:[%s0 + $0x10] sm:$0xff]
  %v23 = vld [vmem:[%s0 + $0x18] sm:$0xff]
  %v24 = vld [vmem:[%s0 + $0x20] sm:$0xff]
  %v25 = vld [vmem:[%s0 + $0x28] sm:$0xff]
  %v26 = vld [vmem:[%s0 + $0x30] sm:$0xff]
  %v27 = vld [vmem:[%s0 + $0x38] sm:$0xff]
  %v28 = vpack.c.bf16 %v20, %v20
  %v29 = vpack.c.bf16 %v21, %v21
  %v30 = vpack.c.bf16 %v22, %v22
  %v31 = vpack.c.bf16 %v23, %v23
  %v32 = vpack.c.bf16 %v24, %v24
  %v33 = vpack.c.bf16 %v25, %v25
  %v34 = vpack.c.bf16 %v26, %v26
  %v35 = vpack.c.bf16 %v27, %v27
  %v36 = vld [vmem:[%s1] sm:$0xff]
  %v37 = vld [vmem:[%s1 + $0x8] sm:$0xff]
  %v38 = vld [vmem:[%s1 + $0x10] sm:$0xff]
  %v39 = vld [vmem:[%s1 + $0x18] sm:$0xff]
  %v40 = vld [vmem:[%s1 + $0x20] sm:$0xff]
  %v41 = vld [vmem:[%s1 + $0x28] sm:$0xff]
  %v42 = vld [vmem:[%s1 + $0x30] sm:$0xff]
  %v43 = vld [vmem:[%s1 + $0x38] sm:$0xff]
  %v44 = vld [vmem:[%s1 + $0x40] sm:$0xff]
  %v45 = vld [vmem:[%s1 + $0x48] sm:$0xff]
  %v46 = vld [vmem:[%s1 + $0x50] sm:$0xff]
  %v47 = vld [vmem:[%s1 + $0x58] sm:$0xff]
  %v48 = vld [vmem:[%s1 + $0x60] sm:$0xff]
  %v49 = vld [vmem:[%s1 + $0x68] sm:$0xff]
  %v50 = vld [vmem:[%s1 + $0x70] sm:$0xff]
  %v51 = vld [vmem:[%s1 + $0x78] sm:$0xff]
  %v52 = vld [vmem:[%s1 + $0x80] sm:$0xff]
  %v53 = vld [vmem:[%s1 + $0x88] sm:$0xff]
  %v54 = vld [vmem:[%s1 + $0x90] sm:$0xff]
  %v55 = vld [vmem:[%s1 + $0x98] sm:$0xff]
  %v56 = vld [vmem:[%s1 + $0xa0] sm:$0xff]
  %v57 = vld [vmem:[%s1 + $0xa8] sm:$0xff]
  %v58 = vld [vmem:[%s1 + $0xb0] sm:$0xff]
  %v59 = vld [vmem:[%s1 + $0xb8] sm:$0xff]
  %v60 = vld [vmem:[%s1 + $0xc0] sm:$0xff]
  %v61 = vld [vmem:[%s1 + $0xc8] sm:$0xff]
  %v62 = vld [vmem:[%s1 + $0xd0] sm:$0xff]
  %v63 = vld [vmem:[%s1 + $0xd8] sm:$0xff]
  %v64 = vld [vmem:[%s1 + $0xe0] sm:$0xff]
  %v65 = vld [vmem:[%s1 + $0xe8] sm:$0xff]
  %v66 = vld [vmem:[%s1 + $0xf0] sm:$0xff]
  %v67 = vld [vmem:[%s1 + $0xf8] sm:$0xff]
  %v68 = vld [vmem:[%s1 + $0x100] sm:$0xff]
  %v69 = vld [vmem:[%s1 + $0x108] sm:$0xff]
  %v70 = vld [vmem:[%s1 + $0x110] sm:$0xff]
  %v71 = vld [vmem:[%s1 + $0x118] sm:$0xff]
  %v72 = vld [vmem:[%s1 + $0x120] sm:$0xff]
  %v73 = vld [vmem:[%s1 + $0x128] sm:$0xff]
  %v74 = vld [vmem:[%s1 + $0x130] sm:$0xff]
  %v75 = vld [vmem:[%s1 + $0x138] sm:$0xff]
  %v76 = vld [vmem:[%s1 + $0x140] sm:$0xff]
  %v77 = vld [vmem:[%s1 + $0x148] sm:$0xff]
  %v78 = vld [vmem:[%s1 + $0x150] sm:$0xff]
  %v79 = vld [vmem:[%s1 + $0x158] sm:$0xff]
  %v80 = vld [vmem:[%s1 + $0x160] sm:$0xff]
  %v81 = vld [vmem:[%s1 + $0x168] sm:$0xff]
  %v82 = vld [vmem:[%s1 + $0x170] sm:$0xff]
  %v83 = vld [vmem:[%s1 + $0x178] sm:$0xff]
  %v84 = vld [vmem:[%s1 + $0x180] sm:$0xff]
  %v85 = vld [vmem:[%s1 + $0x188] sm:$0xff]
  %v86 = vld [vmem:[%s1 + $0x190] sm:$0xff]
  %v87 = vld [vmem:[%s1 + $0x198] sm:$0xff]
  %v88 = vld [vmem:[%s1 + $0x1a0] sm:$0xff]
  %v89 = vld [vmem:[%s1 + $0x1a8] sm:$0xff]
  %v90 = vld [vmem:[%s1 + $0x1b0] sm:$0xff]
  %v91 = vld [vmem:[%s1 + $0x1b8] sm:$0xff]
  %v92 = vld [vmem:[%s1 + $0x1c0] sm:$0xff]
  %v93 = vld [vmem:[%s1 + $0x1c8] sm:$0xff]
  %v94 = vld [vmem:[%s1 + $0x1d0] sm:$0xff]
  %v95 = vld [vmem:[%s1 + $0x1d8] sm:$0xff]
  %v96 = vld [vmem:[%s1 + $0x1e0] sm:$0xff]
  %v97 = vld [vmem:[%s1 + $0x1e8] sm:$0xff]
  %v98 = vld [vmem:[%s1 + $0x1f0] sm:$0xff]
  %v99 = vld [vmem:[%s1 + $0x1f8] sm:$0xff]
  %v100 = vld [vmem:[%s1 + $0x200] sm:$0xff]
  %v101 = vld [vmem:[%s1 + $0x208] sm:$0xff]
  %v102 = vld [vmem:[%s1 + $0x210] sm:$0xff]
  %v103 = vld [vmem:[%s1 + $0x218] sm:$0xff]
  %v104 = vld [vmem:[%s1 + $0x220] sm:$0xff]
  %v105 = vld [vmem:[%s1 + $0x228] sm:$0xff]
  %v106 = vld [vmem:[%s1 + $0x230] sm:$0xff]
  %v107 = vld [vmem:[%s1 + $0x238] sm:$0xff]
  %v108 = vld [vmem:[%s1 + $0x240] sm:$0xff]
  %v109 = vld [vmem:[%s1 + $0x248] sm:$0xff]
  %v110 = vld [vmem:[%s1 + $0x250] sm:$0xff]
  %v111 = vld [vmem:[%s1 + $0x258] sm:$0xff]
  %v112 = vld [vmem:[%s1 + $0x260] sm:$0xff]
  %v113 = vld [vmem:[%s1 + $0x268] sm:$0xff]
  %v114 = vld [vmem:[%s1 + $0x270] sm:$0xff]
  %v115 = vld [vmem:[%s1 + $0x278] sm:$0xff]
  %v116 = vld [vmem:[%s1 + $0x280] sm:$0xff]
  %v117 = vld [vmem:[%s1 + $0x288] sm:$0xff]
  %v118 = vld [vmem:[%s1 + $0x290] sm:$0xff]
  %v119 = vld [vmem:[%s1 + $0x298] sm:$0xff]
  %v120 = vld [vmem:[%s1 + $0x2a0] sm:$0xff]
  %v121 = vld [vmem:[%s1 + $0x2a8] sm:$0xff]
  %v122 = vld [vmem:[%s1 + $0x2b0] sm:$0xff]
  %v123 = vld [vmem:[%s1 + $0x2b8] sm:$0xff]
  %v124 = vld [vmem:[%s1 + $0x2c0] sm:$0xff]
  %v125 = vld [vmem:[%s1 + $0x2c8] sm:$0xff]
  %v126 = vld [vmem:[%s1 + $0x2d0] sm:$0xff]
  %v127 = vld [vmem:[%s1 + $0x2d8] sm:$0xff]
  %v128 = vld [vmem:[%s1 + $0x2e0] sm:$0xff]
  %v129 = vld [vmem:[%s1 + $0x2e8] sm:$0xff]
  %v130 = vld [vmem:[%s1 + $0x2f0] sm:$0xff]
  %v131 = vld [vmem:[%s1 + $0x2f8] sm:$0xff]
  %v132 = vld [vmem:[%s1 + $0x300] sm:$0xff]
  %v133 = vld [vmem:[%s1 + $0x308] sm:$0xff]
  %v134 = vld [vmem:[%s1 + $0x310] sm:$0xff]
  %v135 = vld [vmem:[%s1 + $0x318] sm:$0xff]
  %v136 = vld [vmem:[%s1 + $0x320] sm:$0xff]
  %v137 = vld [vmem:[%s1 + $0x328] sm:$0xff]
  %v138 = vld [vmem:[%s1 + $0x330] sm:$0xff]
  %v139 = vld [vmem:[%s1 + $0x338] sm:$0xff]
  %v140 = vld [vmem:[%s1 + $0x340] sm:$0xff]
  %v141 = vld [vmem:[%s1 + $0x348] sm:$0xff]
  %v142 = vld [vmem:[%s1 + $0x350] sm:$0xff]
  %v143 = vld [vmem:[%s1 + $0x358] sm:$0xff]
  %v144 = vld [vmem:[%s1 + $0x360] sm:$0xff]
  %v145 = vld [vmem:[%s1 + $0x368] sm:$0xff]
  %v146 = vld [vmem:[%s1 + $0x370] sm:$0xff]
  %v147 = vld [vmem:[%s1 + $0x378] sm:$0xff]
  %v148 = vld [vmem:[%s1 + $0x380] sm:$0xff]
  %v149 = vld [vmem:[%s1 + $0x388] sm:$0xff]
  %v150 = vld [vmem:[%s1 + $0x390] sm:$0xff]
  %v151 = vld [vmem:[%s1 + $0x398] sm:$0xff]
  %v152 = vld [vmem:[%s1 + $0x3a0] sm:$0xff]
  %v153 = vld [vmem:[%s1 + $0x3a8] sm:$0xff]
  %v154 = vld [vmem:[%s1 + $0x3b0] sm:$0xff]
  %v155 = vld [vmem:[%s1 + $0x3b8] sm:$0xff]
  %v156 = vld [vmem:[%s1 + $0x3c0] sm:$0xff]
  %v157 = vld [vmem:[%s1 + $0x3c8] sm:$0xff]
  %v158 = vld [vmem:[%s1 + $0x3d0] sm:$0xff]
  %v159 = vld [vmem:[%s1 + $0x3d8] sm:$0xff]
  %v160 = vld [vmem:[%s1 + $0x3e0] sm:$0xff]
  %v161 = vld [vmem:[%s1 + $0x3e8] sm:$0xff]
  %v162 = vld [vmem:[%s1 + $0x3f0] sm:$0xff]
  %v163 = vld [vmem:[%s1 + $0x3f8] sm:$0xff]
  %v164 = vld [vmem:[%s1 + $0x400] sm:$0xff]
  %v165 = vld [vmem:[%s1 + $0x408] sm:$0xff]
  %v166 = vld [vmem:[%s1 + $0x410] sm:$0xff]
  %v167 = vld [vmem:[%s1 + $0x418] sm:$0xff]
  %v168 = vld [vmem:[%s1 + $0x420] sm:$0xff]
  %v169 = vld [vmem:[%s1 + $0x428] sm:$0xff]
  %v170 = vld [vmem:[%s1 + $0x430] sm:$0xff]
  %v171 = vld [vmem:[%s1 + $0x438] sm:$0xff]
  %v172 = vld [vmem:[%s1 + $0x440] sm:$0xff]
  %v173 = vld [vmem:[%s1 + $0x448] sm:$0xff]
  %v174 = vld [vmem:[%s1 + $0x450] sm:$0xff]
  %v175 = vld [vmem:[%s1 + $0x458] sm:$0xff]
  %v176 = vld [vmem:[%s1 + $0x460] sm:$0xff]
  %v177 = vld [vmem:[%s1 + $0x468] sm:$0xff]
  %v178 = vld [vmem:[%s1 + $0x470] sm:$0xff]
  %v179 = vld [vmem:[%s1 + $0x478] sm:$0xff]
  %v180 = vld [vmem:[%s1 + $0x480] sm:$0xff]
  %v181 = vld [vmem:[%s1 + $0x488] sm:$0xff]
  %v182 = vld [vmem:[%s1 + $0x490] sm:$0xff]
  %v183 = vld [vmem:[%s1 + $0x498] sm:$0xff]
  %v184 = vld [vmem:[%s1 + $0x4a0] sm:$0xff]
  %v185 = vld [vmem:[%s1 + $0x4a8] sm:$0xff]
  %v186 = vld [vmem:[%s1 + $0x4b0] sm:$0xff]
  %v187 = vld [vmem:[%s1 + $0x4b8] sm:$0xff]
  %v188 = vld [vmem:[%s1 + $0x4c0] sm:$0xff]
  %v189 = vld [vmem:[%s1 + $0x4c8] sm:$0xff]
  %v190 = vld [vmem:[%s1 + $0x4d0] sm:$0xff]
  %v191 = vld [vmem:[%s1 + $0x4d8] sm:$0xff]
  %v192 = vld [vmem:[%s1 + $0x4e0] sm:$0xff]
  %v193 = vld [vmem:[%s1 + $0x4e8] sm:$0xff]
  %v194 = vld [vmem:[%s1 + $0x4f0] sm:$0xff]
  %v195 = vld [vmem:[%s1 + $0x4f8] sm:$0xff]
  %v196 = vld [vmem:[%s1 + $0x500] sm:$0xff]
  %v197 = vld [vmem:[%s1 + $0x508] sm:$0xff]
  %v198 = vld [vmem:[%s1 + $0x510] sm:$0xff]
  %v199 = vld [vmem:[%s1 + $0x518] sm:$0xff]
  %v200 = vld [vmem:[%s1 + $0x520] sm:$0xff]
  %v201 = vld [vmem:[%s1 + $0x528] sm:$0xff]
  %v202 = vld [vmem:[%s1 + $0x530] sm:$0xff]
  %v203 = vld [vmem:[%s1 + $0x538] sm:$0xff]
  %v204 = vld [vmem:[%s1 + $0x540] sm:$0xff]
  %v205 = vld [vmem:[%s1 + $0x548] sm:$0xff]
  %v206 = vld [vmem:[%s1 + $0x550] sm:$0xff]
  %v207 = vld [vmem:[%s1 + $0x558] sm:$0xff]
  %v208 = vld [vmem:[%s1 + $0x560] sm:$0xff]
  %v209 = vld [vmem:[%s1 + $0x568] sm:$0xff]
  %v210 = vld [vmem:[%s1 + $0x570] sm:$0xff]
  %v211 = vld [vmem:[%s1 + $0x578] sm:$0xff]
  %v212 = vld [vmem:[%s1 + $0x580] sm:$0xff]
  %v213 = vld [vmem:[%s1 + $0x588] sm:$0xff]
  %v214 = vld [vmem:[%s1 + $0x590] sm:$0xff]
  %v215 = vld [vmem:[%s1 + $0x598] sm:$0xff]
  %v216 = vld [vmem:[%s1 + $0x5a0] sm:$0xff]
  %v217 = vld [vmem:[%s1 + $0x5a8] sm:$0xff]
  %v218 = vld [vmem:[%s1 + $0x5b0] sm:$0xff]
  %v219 = vld [vmem:[%s1 + $0x5b8] sm:$0xff]
  %v220 = vld [vmem:[%s1 + $0x5c0] sm:$0xff]
  %v221 = vld [vmem:[%s1 + $0x5c8] sm:$0xff]
  %v222 = vld [vmem:[%s1 + $0x5d0] sm:$0xff]
  %v223 = vld [vmem:[%s1 + $0x5d8] sm:$0xff]
  %v224 = vld [vmem:[%s1 + $0x5e0] sm:$0xff]
  %v225 = vld [vmem:[%s1 + $0x5e8] sm:$0xff]
  %v226 = vld [vmem:[%s1 + $0x5f0] sm:$0xff]
  %v227 = vld [vmem:[%s1 + $0x5f8] sm:$0xff]
  %v228 = vld [vmem:[%s1 + $0x600] sm:$0xff]
  %v229 = vld [vmem:[%s1 + $0x608] sm:$0xff]
  %v230 = vld [vmem:[%s1 + $0x610] sm:$0xff]
  %v231 = vld [vmem:[%s1 + $0x618] sm:$0xff]
  %v232 = vld [vmem:[%s1 + $0x620] sm:$0xff]
  %v233 = vld [vmem:[%s1 + $0x628] sm:$0xff]
  %v234 = vld [vmem:[%s1 + $0x630] sm:$0xff]
  %v235 = vld [vmem:[%s1 + $0x638] sm:$0xff]
  %v236 = vld [vmem:[%s1 + $0x640] sm:$0xff]
  %v237 = vld [vmem:[%s1 + $0x648] sm:$0xff]
  %v238 = vld [vmem:[%s1 + $0x650] sm:$0xff]
  %v239 = vld [vmem:[%s1 + $0x658] sm:$0xff]
  %v240 = vld [vmem:[%s1 + $0x660] sm:$0xff]
  %v241 = vld [vmem:[%s1 + $0x668] sm:$0xff]
  %v242 = vld [vmem:[%s1 + $0x670] sm:$0xff]
  %v243 = vld [vmem:[%s1 + $0x678] sm:$0xff]
  %v244 = vld [vmem:[%s1 + $0x680] sm:$0xff]
  %v245 = vld [vmem:[%s1 + $0x688] sm:$0xff]
  %v246 = vld [vmem:[%s1 + $0x690] sm:$0xff]
  %v247 = vld [vmem:[%s1 + $0x698] sm:$0xff]
  %v248 = vld [vmem:[%s1 + $0x6a0] sm:$0xff]
  %v249 = vld [vmem:[%s1 + $0x6a8] sm:$0xff]
  %v250 = vld [vmem:[%s1 + $0x6b0] sm:$0xff]
  %v251 = vld [vmem:[%s1 + $0x6b8] sm:$0xff]
  %v252 = vld [vmem:[%s1 + $0x6c0] sm:$0xff]
  %v253 = vld [vmem:[%s1 + $0x6c8] sm:$0xff]
  %v254 = vld [vmem:[%s1 + $0x6d0] sm:$0xff]
  %v255 = vld [vmem:[%s1 + $0x6d8] sm:$0xff]
  %v256 = vld [vmem:[%s1 + $0x6e0] sm:$0xff]
  %v257 = vld [vmem:[%s1 + $0x6e8] sm:$0xff]
  %v258 = vld [vmem:[%s1 + $0x6f0] sm:$0xff]
  %v259 = vld [vmem:[%s1 + $0x6f8] sm:$0xff]
  %v260 = vld [vmem:[%s1 + $0x700] sm:$0xff]
  %v261 = vld [vmem:[%s1 + $0x708] sm:$0xff]
  %v262 = vld [vmem:[%s1 + $0x710] sm:$0xff]
  %v263 = vld [vmem:[%s1 + $0x718] sm:$0xff]
  %v264 = vld [vmem:[%s1 + $0x720] sm:$0xff]
  %v265 = vld [vmem:[%s1 + $0x728] sm:$0xff]
  %v266 = vld [vmem:[%s1 + $0x730] sm:$0xff]
  %v267 = vld [vmem:[%s1 + $0x738] sm:$0xff]
  %v268 = vld [vmem:[%s1 + $0x740] sm:$0xff]
  %v269 = vld [vmem:[%s1 + $0x748] sm:$0xff]
  %v270 = vld [vmem:[%s1 + $0x750] sm:$0xff]
  %v271 = vld [vmem:[%s1 + $0x758] sm:$0xff]
  %v272 = vld [vmem:[%s1 + $0x760] sm:$0xff]
  %v273 = vld [vmem:[%s1 + $0x768] sm:$0xff]
  %v274 = vld [vmem:[%s1 + $0x770] sm:$0xff]
  %v275 = vld [vmem:[%s1 + $0x778] sm:$0xff]
  %v276 = vld [vmem:[%s1 + $0x780] sm:$0xff]
  %v277 = vld [vmem:[%s1 + $0x788] sm:$0xff]
  %v278 = vld [vmem:[%s1 + $0x790] sm:$0xff]
  %v279 = vld [vmem:[%s1 + $0x798] sm:$0xff]
  %v280 = vld [vmem:[%s1 + $0x7a0] sm:$0xff]
  %v281 = vld [vmem:[%s1 + $0x7a8] sm:$0xff]
  %v282 = vld [vmem:[%s1 + $0x7b0] sm:$0xff]
  %v283 = vld [vmem:[%s1 + $0x7b8] sm:$0xff]
  %v284 = vld [vmem:[%s1 + $0x7c0] sm:$0xff]
  %v285 = vld [vmem:[%s1 + $0x7c8] sm:$0xff]
  %v286 = vld [vmem:[%s1 + $0x7d0] sm:$0xff]
  %v287 = vld [vmem:[%s1 + $0x7d8] sm:$0xff]
  %v288 = vld [vmem:[%s1 + $0x7e0] sm:$0xff]
  %v289 = vld [vmem:[%s1 + $0x7e8] sm:$0xff]
  %v290 = vld [vmem:[%s1 + $0x7f0] sm:$0xff]
  %v291 = vld [vmem:[%s1 + $0x7f8] sm:$0xff]
  %v292 = vld [vmem:[%s2] sm:$0xf]
  %v294 = vlaneseq
  %v295 = vshrl.u32 %v294, 7
  %v296 = vsub.s32 0, %v295
  %v297 = vrot.slane %v292, %v296
  %v298 = vlaneseq
  %v299 = vshrl.u32 %v298, 7
  %v300 = vsub.s32 1, %v299
  %v301 = vrot.slane %v292, %v300
  %v302 = vlaneseq
  %v303 = vshrl.u32 %v302, 7
  %v304 = vsub.s32 2, %v303
  %v305 = vrot.slane %v292, %v304
  %v306 = vlaneseq
  %v307 = vshrl.u32 %v306, 7
  %v308 = vsub.s32 3, %v307
  %v309 = vrot.slane %v292, %v308
  %v570 = vunpack.c.l.b16 %v36
  %v571 = vunpack.c.h.b16 %v36
  %v572 = vunpack.c.l.b16 %v37
  %v573 = vunpack.c.h.b16 %v37
  %v574 = vunpack.c.l.b16 %v38
  %v575 = vunpack.c.h.b16 %v38
  %v576 = vunpack.c.l.b16 %v39
  %v577 = vunpack.c.h.b16 %v39
  %v578 = vunpack.c.l.b16 %v40
  %v579 = vunpack.c.h.b16 %v40
  %v580 = vunpack.c.l.b16 %v41
  %v581 = vunpack.c.h.b16 %v41
  %v582 = vunpack.c.l.b16 %v42
  %v583 = vunpack.c.h.b16 %v42
  %v584 = vunpack.c.l.b16 %v43
  %v585 = vunpack.c.h.b16 %v43
  %v586 = vunpack.c.l.b16 %v44
  %v587 = vunpack.c.h.b16 %v44
  %v588 = vunpack.c.l.b16 %v45
  %v589 = vunpack.c.h.b16 %v45
  %v590 = vunpack.c.l.b16 %v46
  %v591 = vunpack.c.h.b16 %v46
  %v592 = vunpack.c.l.b16 %v47
  %v593 = vunpack.c.h.b16 %v47
  %v594 = vunpack.c.l.b16 %v48
  %v595 = vunpack.c.h.b16 %v48
  %v596 = vunpack.c.l.b16 %v49
  %v597 = vunpack.c.h.b16 %v49
  %v598 = vunpack.c.l.b16 %v50
  %v599 = vunpack.c.h.b16 %v50
  %v600 = vunpack.c.l.b16 %v51
  %v601 = vunpack.c.h.b16 %v51
  %v602 = vunpack.c.l.b16 %v52
  %v603 = vunpack.c.h.b16 %v52
  %v604 = vunpack.c.l.b16 %v53
  %v605 = vunpack.c.h.b16 %v53
  %v606 = vunpack.c.l.b16 %v54
  %v607 = vunpack.c.h.b16 %v54
  %v608 = vunpack.c.l.b16 %v55
  %v609 = vunpack.c.h.b16 %v55
  %v610 = vunpack.c.l.b16 %v56
  %v611 = vunpack.c.h.b16 %v56
  %v612 = vunpack.c.l.b16 %v57
  %v613 = vunpack.c.h.b16 %v57
  %v614 = vunpack.c.l.b16 %v58
  %v615 = vunpack.c.h.b16 %v58
  %v616 = vunpack.c.l.b16 %v59
  %v617 = vunpack.c.h.b16 %v59
  %v618 = vunpack.c.l.b16 %v60
  %v619 = vunpack.c.h.b16 %v60
  %v620 = vunpack.c.l.b16 %v61
  %v621 = vunpack.c.h.b16 %v61
  %v622 = vunpack.c.l.b16 %v62
  %v623 = vunpack.c.h.b16 %v62
  %v624 = vunpack.c.l.b16 %v63
  %v625 = vunpack.c.h.b16 %v63
  %v626 = vunpack.c.l.b16 %v64
  %v627 = vunpack.c.h.b16 %v64
  %v628 = vunpack.c.l.b16 %v65
  %v629 = vunpack.c.h.b16 %v65
  %v630 = vunpack.c.l.b16 %v66
  %v631 = vunpack.c.h.b16 %v66
  %v632 = vunpack.c.l.b16 %v67
  %v633 = vunpack.c.h.b16 %v67
  %v634 = vunpack.c.l.b16 %v68
  %v635 = vunpack.c.h.b16 %v68
  %v636 = vunpack.c.l.b16 %v69
  %v637 = vunpack.c.h.b16 %v69
  %v638 = vunpack.c.l.b16 %v70
  %v639 = vunpack.c.h.b16 %v70
  %v640 = vunpack.c.l.b16 %v71
  %v641 = vunpack.c.h.b16 %v71
  %v642 = vunpack.c.l.b16 %v72
  %v643 = vunpack.c.h.b16 %v72
  %v644 = vunpack.c.l.b16 %v73
  %v645 = vunpack.c.h.b16 %v73
  %v646 = vunpack.c.l.b16 %v74
  %v647 = vunpack.c.h.b16 %v74
  %v648 = vunpack.c.l.b16 %v75
  %v649 = vunpack.c.h.b16 %v75
  %v650 = vunpack.c.l.b16 %v76
  %v651 = vunpack.c.h.b16 %v76
  %v652 = vunpack.c.l.b16 %v77
  %v653 = vunpack.c.h.b16 %v77
  %v654 = vunpack.c.l.b16 %v78
  %v655 = vunpack.c.h.b16 %v78
  %v656 = vunpack.c.l.b16 %v79
  %v657 = vunpack.c.h.b16 %v79
  %v658 = vunpack.c.l.b16 %v80
  %v659 = vunpack.c.h.b16 %v80
  %v660 = vunpack.c.l.b16 %v81
  %v661 = vunpack.c.h.b16 %v81
  %v662 = vunpack.c.l.b16 %v82
  %v663 = vunpack.c.h.b16 %v82
  %v664 = vunpack.c.l.b16 %v83
  %v665 = vunpack.c.h.b16 %v83
  %v666 = vunpack.c.l.b16 %v84
  %v667 = vunpack.c.h.b16 %v84
  %v668 = vunpack.c.l.b16 %v85
  %v669 = vunpack.c.h.b16 %v85
  %v670 = vunpack.c.l.b16 %v86
  %v671 = vunpack.c.h.b16 %v86
  %v672 = vunpack.c.l.b16 %v87
  %v673 = vunpack.c.h.b16 %v87
  %v674 = vunpack.c.l.b16 %v88
  %v675 = vunpack.c.h.b16 %v88
  %v676 = vunpack.c.l.b16 %v89
  %v677 = vunpack.c.h.b16 %v89
  %v678 = vunpack.c.l.b16 %v90
  %v679 = vunpack.c.h.b16 %v90
  %v680 = vunpack.c.l.b16 %v91
  %v681 = vunpack.c.h.b16 %v91
  %v682 = vunpack.c.l.b16 %v92
  %v683 = vunpack.c.h.b16 %v92
  %v684 = vunpack.c.l.b16 %v93
  %v685 = vunpack.c.h.b16 %v93
  %v686 = vunpack.c.l.b16 %v94
  %v687 = vunpack.c.h.b16 %v94
  %v688 = vunpack.c.l.b16 %v95
  %v689 = vunpack.c.h.b16 %v95
  %v690 = vunpack.c.l.b16 %v96
  %v691 = vunpack.c.h.b16 %v96
  %v692 = vunpack.c.l.b16 %v97
  %v693 = vunpack.c.h.b16 %v97
  %v694 = vunpack.c.l.b16 %v98
  %v695 = vunpack.c.h.b16 %v98
  %v696 = vunpack.c.l.b16 %v99
  %v697 = vunpack.c.h.b16 %v99
  %v698 = vunpack.c.l.b16 %v100
  %v699 = vunpack.c.h.b16 %v100
  %v700 = vunpack.c.l.b16 %v101
  %v701 = vunpack.c.h.b16 %v101
  %v702 = vunpack.c.l.b16 %v102
  %v703 = vunpack.c.h.b16 %v102
  %v704 = vunpack.c.l.b16 %v103
  %v705 = vunpack.c.h.b16 %v103
  %v706 = vunpack.c.l.b16 %v104
  %v707 = vunpack.c.h.b16 %v104
  %v708 = vunpack.c.l.b16 %v105
  %v709 = vunpack.c.h.b16 %v105
  %v710 = vunpack.c.l.b16 %v106
  %v711 = vunpack.c.h.b16 %v106
  %v712 = vunpack.c.l.b16 %v107
  %v713 = vunpack.c.h.b16 %v107
  %v714 = vunpack.c.l.b16 %v108
  %v715 = vunpack.c.h.b16 %v108
  %v716 = vunpack.c.l.b16 %v109
  %v717 = vunpack.c.h.b16 %v109
  %v718 = vunpack.c.l.b16 %v110
  %v719 = vunpack.c.h.b16 %v110
  %v720 = vunpack.c.l.b16 %v111
  %v721 = vunpack.c.h.b16 %v111
  %v722 = vunpack.c.l.b16 %v112
  %v723 = vunpack.c.h.b16 %v112
  %v724 = vunpack.c.l.b16 %v113
  %v725 = vunpack.c.h.b16 %v113
  %v726 = vunpack.c.l.b16 %v114
  %v727 = vunpack.c.h.b16 %v114
  %v728 = vunpack.c.l.b16 %v115
  %v729 = vunpack.c.h.b16 %v115
  %v730 = vunpack.c.l.b16 %v116
  %v731 = vunpack.c.h.b16 %v116
  %v732 = vunpack.c.l.b16 %v117
  %v733 = vunpack.c.h.b16 %v117
  %v734 = vunpack.c.l.b16 %v118
  %v735 = vunpack.c.h.b16 %v118
  %v736 = vunpack.c.l.b16 %v119
  %v737 = vunpack.c.h.b16 %v119
  %v738 = vunpack.c.l.b16 %v120
  %v739 = vunpack.c.h.b16 %v120
  %v740 = vunpack.c.l.b16 %v121
  %v741 = vunpack.c.h.b16 %v121
  %v742 = vunpack.c.l.b16 %v122
  %v743 = vunpack.c.h.b16 %v122
  %v744 = vunpack.c.l.b16 %v123
  %v745 = vunpack.c.h.b16 %v123
  %v746 = vunpack.c.l.b16 %v124
  %v747 = vunpack.c.h.b16 %v124
  %v748 = vunpack.c.l.b16 %v125
  %v749 = vunpack.c.h.b16 %v125
  %v750 = vunpack.c.l.b16 %v126
  %v751 = vunpack.c.h.b16 %v126
  %v752 = vunpack.c.l.b16 %v127
  %v753 = vunpack.c.h.b16 %v127
  %v754 = vunpack.c.l.b16 %v128
  %v755 = vunpack.c.h.b16 %v128
  %v756 = vunpack.c.l.b16 %v129
  %v757 = vunpack.c.h.b16 %v129
  %v758 = vunpack.c.l.b16 %v130
  %v759 = vunpack.c.h.b16 %v130
  %v760 = vunpack.c.l.b16 %v131
  %v761 = vunpack.c.h.b16 %v131
  %v762 = vunpack.c.l.b16 %v132
  %v763 = vunpack.c.h.b16 %v132
  %v764 = vunpack.c.l.b16 %v133
  %v765 = vunpack.c.h.b16 %v133
  %v766 = vunpack.c.l.b16 %v134
  %v767 = vunpack.c.h.b16 %v134
  %v768 = vunpack.c.l.b16 %v135
  %v769 = vunpack.c.h.b16 %v135
  %v770 = vunpack.c.l.b16 %v136
  %v771 = vunpack.c.h.b16 %v136
  %v772 = vunpack.c.l.b16 %v137
  %v773 = vunpack.c.h.b16 %v137
  %v774 = vunpack.c.l.b16 %v138
  %v775 = vunpack.c.h.b16 %v138
  %v776 = vunpack.c.l.b16 %v139
  %v777 = vunpack.c.h.b16 %v139
  %v778 = vunpack.c.l.b16 %v140
  %v779 = vunpack.c.h.b16 %v140
  %v780 = vunpack.c.l.b16 %v141
  %v781 = vunpack.c.h.b16 %v141
  %v782 = vunpack.c.l.b16 %v142
  %v783 = vunpack.c.h.b16 %v142
  %v784 = vunpack.c.l.b16 %v143
  %v785 = vunpack.c.h.b16 %v143
  %v786 = vunpack.c.l.b16 %v144
  %v787 = vunpack.c.h.b16 %v144
  %v788 = vunpack.c.l.b16 %v145
  %v789 = vunpack.c.h.b16 %v145
  %v790 = vunpack.c.l.b16 %v146
  %v791 = vunpack.c.h.b16 %v146
  %v792 = vunpack.c.l.b16 %v147
  %v793 = vunpack.c.h.b16 %v147
  %v794 = vunpack.c.l.b16 %v148
  %v795 = vunpack.c.h.b16 %v148
  %v796 = vunpack.c.l.b16 %v149
  %v797 = vunpack.c.h.b16 %v149
  %v798 = vunpack.c.l.b16 %v150
  %v799 = vunpack.c.h.b16 %v150
  %v800 = vunpack.c.l.b16 %v151
  %v801 = vunpack.c.h.b16 %v151
  %v802 = vunpack.c.l.b16 %v152
  %v803 = vunpack.c.h.b16 %v152
  %v804 = vunpack.c.l.b16 %v153
  %v805 = vunpack.c.h.b16 %v153
  %v806 = vunpack.c.l.b16 %v154
  %v807 = vunpack.c.h.b16 %v154
  %v808 = vunpack.c.l.b16 %v155
  %v809 = vunpack.c.h.b16 %v155
  %v810 = vunpack.c.l.b16 %v156
  %v811 = vunpack.c.h.b16 %v156
  %v812 = vunpack.c.l.b16 %v157
  %v813 = vunpack.c.h.b16 %v157
  %v814 = vunpack.c.l.b16 %v158
  %v815 = vunpack.c.h.b16 %v158
  %v816 = vunpack.c.l.b16 %v159
  %v817 = vunpack.c.h.b16 %v159
  %v818 = vunpack.c.l.b16 %v160
  %v819 = vunpack.c.h.b16 %v160
  %v820 = vunpack.c.l.b16 %v161
  %v821 = vunpack.c.h.b16 %v161
  %v822 = vunpack.c.l.b16 %v162
  %v823 = vunpack.c.h.b16 %v162
  %v824 = vunpack.c.l.b16 %v163
  %v825 = vunpack.c.h.b16 %v163
  %v826 = vunpack.c.l.b16 %v164
  %v827 = vunpack.c.h.b16 %v164
  %v828 = vunpack.c.l.b16 %v165
  %v829 = vunpack.c.h.b16 %v165
  %v830 = vunpack.c.l.b16 %v166
  %v831 = vunpack.c.h.b16 %v166
  %v832 = vunpack.c.l.b16 %v167
  %v833 = vunpack.c.h.b16 %v167
  %v834 = vunpack.c.l.b16 %v168
  %v835 = vunpack.c.h.b16 %v168
  %v836 = vunpack.c.l.b16 %v169
  %v837 = vunpack.c.h.b16 %v169
  %v838 = vunpack.c.l.b16 %v170
  %v839 = vunpack.c.h.b16 %v170
  %v840 = vunpack.c.l.b16 %v171
  %v841 = vunpack.c.h.b16 %v171
  %v842 = vunpack.c.l.b16 %v172
  %v843 = vunpack.c.h.b16 %v172
  %v844 = vunpack.c.l.b16 %v173
  %v845 = vunpack.c.h.b16 %v173
  %v846 = vunpack.c.l.b16 %v174
  %v847 = vunpack.c.h.b16 %v174
  %v848 = vunpack.c.l.b16 %v175
  %v849 = vunpack.c.h.b16 %v175
  %v850 = vunpack.c.l.b16 %v176
  %v851 = vunpack.c.h.b16 %v176
  %v852 = vunpack.c.l.b16 %v177
  %v853 = vunpack.c.h.b16 %v177
  %v854 = vunpack.c.l.b16 %v178
  %v855 = vunpack.c.h.b16 %v178
  %v856 = vunpack.c.l.b16 %v179
  %v857 = vunpack.c.h.b16 %v179
  %v858 = vunpack.c.l.b16 %v180
  %v859 = vunpack.c.h.b16 %v180
  %v860 = vunpack.c.l.b16 %v181
  %v861 = vunpack.c.h.b16 %v181
  %v862 = vunpack.c.l.b16 %v182
  %v863 = vunpack.c.h.b16 %v182
  %v864 = vunpack.c.l.b16 %v183
  %v865 = vunpack.c.h.b16 %v183
  %v866 = vunpack.c.l.b16 %v184
  %v867 = vunpack.c.h.b16 %v184
  %v868 = vunpack.c.l.b16 %v185
  %v869 = vunpack.c.h.b16 %v185
  %v870 = vunpack.c.l.b16 %v186
  %v871 = vunpack.c.h.b16 %v186
  %v872 = vunpack.c.l.b16 %v187
  %v873 = vunpack.c.h.b16 %v187
  %v874 = vunpack.c.l.b16 %v188
  %v875 = vunpack.c.h.b16 %v188
  %v876 = vunpack.c.l.b16 %v189
  %v877 = vunpack.c.h.b16 %v189
  %v878 = vunpack.c.l.b16 %v190
  %v879 = vunpack.c.h.b16 %v190
  %v880 = vunpack.c.l.b16 %v191
  %v881 = vunpack.c.h.b16 %v191
  %v882 = vunpack.c.l.b16 %v192
  %v883 = vunpack.c.h.b16 %v192
  %v884 = vunpack.c.l.b16 %v193
  %v885 = vunpack.c.h.b16 %v193
  %v886 = vunpack.c.l.b16 %v194
  %v887 = vunpack.c.h.b16 %v194
  %v888 = vunpack.c.l.b16 %v195
  %v889 = vunpack.c.h.b16 %v195
  %v890 = vunpack.c.l.b16 %v196
  %v891 = vunpack.c.h.b16 %v196
  %v892 = vunpack.c.l.b16 %v197
  %v893 = vunpack.c.h.b16 %v197
  %v894 = vunpack.c.l.b16 %v198
  %v895 = vunpack.c.h.b16 %v198
  %v896 = vunpack.c.l.b16 %v199
  %v897 = vunpack.c.h.b16 %v199
  %v898 = vunpack.c.l.b16 %v200
  %v899 = vunpack.c.h.b16 %v200
  %v900 = vunpack.c.l.b16 %v201
  %v901 = vunpack.c.h.b16 %v201
  %v902 = vunpack.c.l.b16 %v202
  %v903 = vunpack.c.h.b16 %v202
  %v904 = vunpack.c.l.b16 %v203
  %v905 = vunpack.c.h.b16 %v203
  %v906 = vunpack.c.l.b16 %v204
  %v907 = vunpack.c.h.b16 %v204
  %v908 = vunpack.c.l.b16 %v205
  %v909 = vunpack.c.h.b16 %v205
  %v910 = vunpack.c.l.b16 %v206
  %v911 = vunpack.c.h.b16 %v206
  %v912 = vunpack.c.l.b16 %v207
  %v913 = vunpack.c.h.b16 %v207
  %v914 = vunpack.c.l.b16 %v208
  %v915 = vunpack.c.h.b16 %v208
  %v916 = vunpack.c.l.b16 %v209
  %v917 = vunpack.c.h.b16 %v209
  %v918 = vunpack.c.l.b16 %v210
  %v919 = vunpack.c.h.b16 %v210
  %v920 = vunpack.c.l.b16 %v211
  %v921 = vunpack.c.h.b16 %v211
  %v922 = vunpack.c.l.b16 %v212
  %v923 = vunpack.c.h.b16 %v212
  %v924 = vunpack.c.l.b16 %v213
  %v925 = vunpack.c.h.b16 %v213
  %v926 = vunpack.c.l.b16 %v214
  %v927 = vunpack.c.h.b16 %v214
  %v928 = vunpack.c.l.b16 %v215
  %v929 = vunpack.c.h.b16 %v215
  %v930 = vunpack.c.l.b16 %v216
  %v931 = vunpack.c.h.b16 %v216
  %v932 = vunpack.c.l.b16 %v217
  %v933 = vunpack.c.h.b16 %v217
  %v934 = vunpack.c.l.b16 %v218
  %v935 = vunpack.c.h.b16 %v218
  %v936 = vunpack.c.l.b16 %v219
  %v937 = vunpack.c.h.b16 %v219
  %v938 = vunpack.c.l.b16 %v220
  %v939 = vunpack.c.h.b16 %v220
  %v940 = vunpack.c.l.b16 %v221
  %v941 = vunpack.c.h.b16 %v221
  %v942 = vunpack.c.l.b16 %v222
  %v943 = vunpack.c.h.b16 %v222
  %v944 = vunpack.c.l.b16 %v223
  %v945 = vunpack.c.h.b16 %v223
  %v946 = vunpack.c.l.b16 %v224
  %v947 = vunpack.c.h.b16 %v224
  %v948 = vunpack.c.l.b16 %v225
  %v949 = vunpack.c.h.b16 %v225
  %v950 = vunpack.c.l.b16 %v226
  %v951 = vunpack.c.h.b16 %v226
  %v952 = vunpack.c.l.b16 %v227
  %v953 = vunpack.c.h.b16 %v227
  %v954 = vunpack.c.l.b16 %v228
  %v955 = vunpack.c.h.b16 %v228
  %v956 = vunpack.c.l.b16 %v229
  %v957 = vunpack.c.h.b16 %v229
  %v958 = vunpack.c.l.b16 %v230
  %v959 = vunpack.c.h.b16 %v230
  %v960 = vunpack.c.l.b16 %v231
  %v961 = vunpack.c.h.b16 %v231
  %v962 = vunpack.c.l.b16 %v232
  %v963 = vunpack.c.h.b16 %v232
  %v964 = vunpack.c.l.b16 %v233
  %v965 = vunpack.c.h.b16 %v233
  %v966 = vunpack.c.l.b16 %v234
  %v967 = vunpack.c.h.b16 %v234
  %v968 = vunpack.c.l.b16 %v235
  %v969 = vunpack.c.h.b16 %v235
  %v970 = vunpack.c.l.b16 %v236
  %v971 = vunpack.c.h.b16 %v236
  %v972 = vunpack.c.l.b16 %v237
  %v973 = vunpack.c.h.b16 %v237
  %v974 = vunpack.c.l.b16 %v238
  %v975 = vunpack.c.h.b16 %v238
  %v976 = vunpack.c.l.b16 %v239
  %v977 = vunpack.c.h.b16 %v239
  %v978 = vunpack.c.l.b16 %v240
  %v979 = vunpack.c.h.b16 %v240
  %v980 = vunpack.c.l.b16 %v241
  %v981 = vunpack.c.h.b16 %v241
  %v982 = vunpack.c.l.b16 %v242
  %v983 = vunpack.c.h.b16 %v242
  %v984 = vunpack.c.l.b16 %v243
  %v985 = vunpack.c.h.b16 %v243
  %v986 = vunpack.c.l.b16 %v244
  %v987 = vunpack.c.h.b16 %v244
  %v988 = vunpack.c.l.b16 %v245
  %v989 = vunpack.c.h.b16 %v245
  %v990 = vunpack.c.l.b16 %v246
  %v991 = vunpack.c.h.b16 %v246
  %v992 = vunpack.c.l.b16 %v247
  %v993 = vunpack.c.h.b16 %v247
  %v994 = vunpack.c.l.b16 %v248
  %v995 = vunpack.c.h.b16 %v248
  %v996 = vunpack.c.l.b16 %v249
  %v997 = vunpack.c.h.b16 %v249
  %v998 = vunpack.c.l.b16 %v250
  %v999 = vunpack.c.h.b16 %v250
  %v1000 = vunpack.c.l.b16 %v251
  %v1001 = vunpack.c.h.b16 %v251
  %v1002 = vunpack.c.l.b16 %v252
  %v1003 = vunpack.c.h.b16 %v252
  %v1004 = vunpack.c.l.b16 %v253
  %v1005 = vunpack.c.h.b16 %v253
  %v1006 = vunpack.c.l.b16 %v254
  %v1007 = vunpack.c.h.b16 %v254
  %v1008 = vunpack.c.l.b16 %v255
  %v1009 = vunpack.c.h.b16 %v255
  %v1010 = vunpack.c.l.b16 %v256
  %v1011 = vunpack.c.h.b16 %v256
  %v1012 = vunpack.c.l.b16 %v257
  %v1013 = vunpack.c.h.b16 %v257
  %v1014 = vunpack.c.l.b16 %v258
  %v1015 = vunpack.c.h.b16 %v258
  %v1016 = vunpack.c.l.b16 %v259
  %v1017 = vunpack.c.h.b16 %v259
  %v1018 = vunpack.c.l.b16 %v260
  %v1019 = vunpack.c.h.b16 %v260
  %v1020 = vunpack.c.l.b16 %v261
  %v1021 = vunpack.c.h.b16 %v261
  %v1022 = vunpack.c.l.b16 %v262
  %v1023 = vunpack.c.h.b16 %v262
  %v1024 = vunpack.c.l.b16 %v263
  %v1025 = vunpack.c.h.b16 %v263
  %v1026 = vunpack.c.l.b16 %v264
  %v1027 = vunpack.c.h.b16 %v264
  %v1028 = vunpack.c.l.b16 %v265
  %v1029 = vunpack.c.h.b16 %v265
  %v1030 = vunpack.c.l.b16 %v266
  %v1031 = vunpack.c.h.b16 %v266
  %v1032 = vunpack.c.l.b16 %v267
  %v1033 = vunpack.c.h.b16 %v267
  %v1034 = vunpack.c.l.b16 %v268
  %v1035 = vunpack.c.h.b16 %v268
  %v1036 = vunpack.c.l.b16 %v269
  %v1037 = vunpack.c.h.b16 %v269
  %v1038 = vunpack.c.l.b16 %v270
  %v1039 = vunpack.c.h.b16 %v270
  %v1040 = vunpack.c.l.b16 %v271
  %v1041 = vunpack.c.h.b16 %v271
  %v1042 = vunpack.c.l.b16 %v272
  %v1043 = vunpack.c.h.b16 %v272
  %v1044 = vunpack.c.l.b16 %v273
  %v1045 = vunpack.c.h.b16 %v273
  %v1046 = vunpack.c.l.b16 %v274
  %v1047 = vunpack.c.h.b16 %v274
  %v1048 = vunpack.c.l.b16 %v275
  %v1049 = vunpack.c.h.b16 %v275
  %v1050 = vunpack.c.l.b16 %v276
  %v1051 = vunpack.c.h.b16 %v276
  %v1052 = vunpack.c.l.b16 %v277
  %v1053 = vunpack.c.h.b16 %v277
  %v1054 = vunpack.c.l.b16 %v278
  %v1055 = vunpack.c.h.b16 %v278
  %v1056 = vunpack.c.l.b16 %v279
  %v1057 = vunpack.c.h.b16 %v279
  %v1058 = vunpack.c.l.b16 %v280
  %v1059 = vunpack.c.h.b16 %v280
  %v1060 = vunpack.c.l.b16 %v281
  %v1061 = vunpack.c.h.b16 %v281
  %v1062 = vunpack.c.l.b16 %v282
  %v1063 = vunpack.c.h.b16 %v282
  %v1064 = vunpack.c.l.b16 %v283
  %v1065 = vunpack.c.h.b16 %v283
  %v1066 = vunpack.c.l.b16 %v284
  %v1067 = vunpack.c.h.b16 %v284
  %v1068 = vunpack.c.l.b16 %v285
  %v1069 = vunpack.c.h.b16 %v285
  %v1070 = vunpack.c.l.b16 %v286
  %v1071 = vunpack.c.h.b16 %v286
  %v1072 = vunpack.c.l.b16 %v287
  %v1073 = vunpack.c.h.b16 %v287
  %v1074 = vunpack.c.l.b16 %v288
  %v1075 = vunpack.c.h.b16 %v288
  %v1076 = vunpack.c.l.b16 %v289
  %v1077 = vunpack.c.h.b16 %v289
  %v1078 = vunpack.c.l.b16 %v290
  %v1079 = vunpack.c.h.b16 %v290
  %v1080 = vunpack.c.l.b16 %v291
  %v1081 = vunpack.c.h.b16 %v291
  %v1082 = vpack.c.b16 %v574, %v570
  %v1083 = vpack.c.b16 %v575, %v571
  %v1084 = vpack.c.b16 %v576, %v572
  %v1085 = vpack.c.b16 %v577, %v573
  %v1086 = vpack.c.b16 %v582, %v578
  %v1087 = vpack.c.b16 %v583, %v579
  %v1088 = vpack.c.b16 %v584, %v580
  %v1089 = vpack.c.b16 %v585, %v581
  %v1090 = vpack.c.b16 %v590, %v586
  %v1091 = vpack.c.b16 %v591, %v587
  %v1092 = vpack.c.b16 %v592, %v588
  %v1093 = vpack.c.b16 %v593, %v589
  %v1094 = vpack.c.b16 %v598, %v594
  %v1095 = vpack.c.b16 %v599, %v595
  %v1096 = vpack.c.b16 %v600, %v596
  %v1097 = vpack.c.b16 %v601, %v597
  %v1098 = vpack.c.b16 %v606, %v602
  %v1099 = vpack.c.b16 %v607, %v603
  %v1100 = vpack.c.b16 %v608, %v604
  %v1101 = vpack.c.b16 %v609, %v605
  %v1102 = vpack.c.b16 %v614, %v610
  %v1103 = vpack.c.b16 %v615, %v611
  %v1104 = vpack.c.b16 %v616, %v612
  %v1105 = vpack.c.b16 %v617, %v613
  %v1106 = vpack.c.b16 %v622, %v618
  %v1107 = vpack.c.b16 %v623, %v619
  %v1108 = vpack.c.b16 %v624, %v620
  %v1109 = vpack.c.b16 %v625, %v621
  %v1110 = vpack.c.b16 %v630, %v626
  %v1111 = vpack.c.b16 %v631, %v627
  %v1112 = vpack.c.b16 %v632, %v628
  %v1113 = vpack.c.b16 %v633, %v629
  %v1114 = vpack.c.b16 %v638, %v634
  %v1115 = vpack.c.b16 %v639, %v635
  %v1116 = vpack.c.b16 %v640, %v636
  %v1117 = vpack.c.b16 %v641, %v637
  %v1118 = vpack.c.b16 %v646, %v642
  %v1119 = vpack.c.b16 %v647, %v643
  %v1120 = vpack.c.b16 %v648, %v644
  %v1121 = vpack.c.b16 %v649, %v645
  %v1122 = vpack.c.b16 %v654, %v650
  %v1123 = vpack.c.b16 %v655, %v651
  %v1124 = vpack.c.b16 %v656, %v652
  %v1125 = vpack.c.b16 %v657, %v653
  %v1126 = vpack.c.b16 %v662, %v658
  %v1127 = vpack.c.b16 %v663, %v659
  %v1128 = vpack.c.b16 %v664, %v660
  %v1129 = vpack.c.b16 %v665, %v661
  %v1130 = vpack.c.b16 %v670, %v666
  %v1131 = vpack.c.b16 %v671, %v667
  %v1132 = vpack.c.b16 %v672, %v668
  %v1133 = vpack.c.b16 %v673, %v669
  %v1134 = vpack.c.b16 %v678, %v674
  %v1135 = vpack.c.b16 %v679, %v675
  %v1136 = vpack.c.b16 %v680, %v676
  %v1137 = vpack.c.b16 %v681, %v677
  %v1138 = vpack.c.b16 %v686, %v682
  %v1139 = vpack.c.b16 %v687, %v683
  %v1140 = vpack.c.b16 %v688, %v684
  %v1141 = vpack.c.b16 %v689, %v685
  %v1142 = vpack.c.b16 %v694, %v690
  %v1143 = vpack.c.b16 %v695, %v691
  %v1144 = vpack.c.b16 %v696, %v692
  %v1145 = vpack.c.b16 %v697, %v693
  %v1146 = vpack.c.b16 %v702, %v698
  %v1147 = vpack.c.b16 %v703, %v699
  %v1148 = vpack.c.b16 %v704, %v700
  %v1149 = vpack.c.b16 %v705, %v701
  %v1150 = vpack.c.b16 %v710, %v706
  %v1151 = vpack.c.b16 %v711, %v707
  %v1152 = vpack.c.b16 %v712, %v708
  %v1153 = vpack.c.b16 %v713, %v709
  %v1154 = vpack.c.b16 %v718, %v714
  %v1155 = vpack.c.b16 %v719, %v715
  %v1156 = vpack.c.b16 %v720, %v716
  %v1157 = vpack.c.b16 %v721, %v717
  %v1158 = vpack.c.b16 %v726, %v722
  %v1159 = vpack.c.b16 %v727, %v723
  %v1160 = vpack.c.b16 %v728, %v724
  %v1161 = vpack.c.b16 %v729, %v725
  %v1162 = vpack.c.b16 %v734, %v730
  %v1163 = vpack.c.b16 %v735, %v731
  %v1164 = vpack.c.b16 %v736, %v732
  %v1165 = vpack.c.b16 %v737, %v733
  %v1166 = vpack.c.b16 %v742, %v738
  %v1167 = vpack.c.b16 %v743, %v739
  %v1168 = vpack.c.b16 %v744, %v740
  %v1169 = vpack.c.b16 %v745, %v741
  %v1170 = vpack.c.b16 %v750, %v746
  %v1171 = vpack.c.b16 %v751, %v747
  %v1172 = vpack.c.b16 %v752, %v748
  %v1173 = vpack.c.b16 %v753, %v749
  %v1174 = vpack.c.b16 %v758, %v754
  %v1175 = vpack.c.b16 %v759, %v755
  %v1176 = vpack.c.b16 %v760, %v756
  %v1177 = vpack.c.b16 %v761, %v757
  %v1178 = vpack.c.b16 %v766, %v762
  %v1179 = vpack.c.b16 %v767, %v763
  %v1180 = vpack.c.b16 %v768, %v764
  %v1181 = vpack.c.b16 %v769, %v765
  %v1182 = vpack.c.b16 %v774, %v770
  %v1183 = vpack.c.b16 %v775, %v771
  %v1184 = vpack.c.b16 %v776, %v772
  %v1185 = vpack.c.b16 %v777, %v773
  %v1186 = vpack.c.b16 %v782, %v778
  %v1187 = vpack.c.b16 %v783, %v779
  %v1188 = vpack.c.b16 %v784, %v780
  %v1189 = vpack.c.b16 %v785, %v781
  %v1190 = vpack.c.b16 %v790, %v786
  %v1191 = vpack.c.b16 %v791, %v787
  %v1192 = vpack.c.b16 %v792, %v788
  %v1193 = vpack.c.b16 %v793, %v789
  %v1194 = vpack.c.b16 %v798, %v794
  %v1195 = vpack.c.b16 %v799, %v795
  %v1196 = vpack.c.b16 %v800, %v796
  %v1197 = vpack.c.b16 %v801, %v797
  %v1198 = vpack.c.b16 %v806, %v802
  %v1199 = vpack.c.b16 %v807, %v803
  %v1200 = vpack.c.b16 %v808, %v804
  %v1201 = vpack.c.b16 %v809, %v805
  %v1202 = vpack.c.b16 %v814, %v810
  %v1203 = vpack.c.b16 %v815, %v811
  %v1204 = vpack.c.b16 %v816, %v812
  %v1205 = vpack.c.b16 %v817, %v813
  %v1206 = vpack.c.b16 %v822, %v818
  %v1207 = vpack.c.b16 %v823, %v819
  %v1208 = vpack.c.b16 %v824, %v820
  %v1209 = vpack.c.b16 %v825, %v821
  %v1210 = vpack.c.b16 %v830, %v826
  %v1211 = vpack.c.b16 %v831, %v827
  %v1212 = vpack.c.b16 %v832, %v828
  %v1213 = vpack.c.b16 %v833, %v829
  %v1214 = vpack.c.b16 %v838, %v834
  %v1215 = vpack.c.b16 %v839, %v835
  %v1216 = vpack.c.b16 %v840, %v836
  %v1217 = vpack.c.b16 %v841, %v837
  %v1218 = vpack.c.b16 %v846, %v842
  %v1219 = vpack.c.b16 %v847, %v843
  %v1220 = vpack.c.b16 %v848, %v844
  %v1221 = vpack.c.b16 %v849, %v845
  %v1222 = vpack.c.b16 %v854, %v850
  %v1223 = vpack.c.b16 %v855, %v851
  %v1224 = vpack.c.b16 %v856, %v852
  %v1225 = vpack.c.b16 %v857, %v853
  %v1226 = vpack.c.b16 %v862, %v858
  %v1227 = vpack.c.b16 %v863, %v859
  %v1228 = vpack.c.b16 %v864, %v860
  %v1229 = vpack.c.b16 %v865, %v861
  %v1230 = vpack.c.b16 %v870, %v866
  %v1231 = vpack.c.b16 %v871, %v867
  %v1232 = vpack.c.b16 %v872, %v868
  %v1233 = vpack.c.b16 %v873, %v869
  %v1234 = vpack.c.b16 %v878, %v874
  %v1235 = vpack.c.b16 %v879, %v875
  %v1236 = vpack.c.b16 %v880, %v876
  %v1237 = vpack.c.b16 %v881, %v877
  %v1238 = vpack.c.b16 %v886, %v882
  %v1239 = vpack.c.b16 %v887, %v883
  %v1240 = vpack.c.b16 %v888, %v884
  %v1241 = vpack.c.b16 %v889, %v885
  %v1242 = vpack.c.b16 %v894, %v890
  %v1243 = vpack.c.b16 %v895, %v891
  %v1244 = vpack.c.b16 %v896, %v892
  %v1245 = vpack.c.b16 %v897, %v893
  %v1246 = vpack.c.b16 %v902, %v898
  %v1247 = vpack.c.b16 %v903, %v899
  %v1248 = vpack.c.b16 %v904, %v900
  %v1249 = vpack.c.b16 %v905, %v901
  %v1250 = vpack.c.b16 %v910, %v906
  %v1251 = vpack.c.b16 %v911, %v907
  %v1252 = vpack.c.b16 %v912, %v908
  %v1253 = vpack.c.b16 %v913, %v909
  %v1254 = vpack.c.b16 %v918, %v914
  %v1255 = vpack.c.b16 %v919, %v915
  %v1256 = vpack.c.b16 %v920, %v916
  %v1257 = vpack.c.b16 %v921, %v917
  %v1258 = vpack.c.b16 %v926, %v922
  %v1259 = vpack.c.b16 %v927, %v923
  %v1260 = vpack.c.b16 %v928, %v924
  %v1261 = vpack.c.b16 %v929, %v925
  %v1262 = vpack.c.b16 %v934, %v930
  %v1263 = vpack.c.b16 %v935, %v931
  %v1264 = vpack.c.b16 %v936, %v932
  %v1265 = vpack.c.b16 %v937, %v933
  %v1266 = vpack.c.b16 %v942, %v938
  %v1267 = vpack.c.b16 %v943, %v939
  %v1268 = vpack.c.b16 %v944, %v940
  %v1269 = vpack.c.b16 %v945, %v941
  %v1270 = vpack.c.b16 %v950, %v946
  %v1271 = vpack.c.b16 %v951, %v947
  %v1272 = vpack.c.b16 %v952, %v948
  %v1273 = vpack.c.b16 %v953, %v949
  %v1274 = vpack.c.b16 %v958, %v954
  %v1275 = vpack.c.b16 %v959, %v955
  %v1276 = vpack.c.b16 %v960, %v956
  %v1277 = vpack.c.b16 %v961, %v957
  %v1278 = vpack.c.b16 %v966, %v962
  %v1279 = vpack.c.b16 %v967, %v963
  %v1280 = vpack.c.b16 %v968, %v964
  %v1281 = vpack.c.b16 %v969, %v965
  %v1282 = vpack.c.b16 %v974, %v970
  %v1283 = vpack.c.b16 %v975, %v971
  %v1284 = vpack.c.b16 %v976, %v972
  %v1285 = vpack.c.b16 %v977, %v973
  %v1286 = vpack.c.b16 %v982, %v978
  %v1287 = vpack.c.b16 %v983, %v979
  %v1288 = vpack.c.b16 %v984, %v980
  %v1289 = vpack.c.b16 %v985, %v981
  %v1290 = vpack.c.b16 %v990, %v986
  %v1291 = vpack.c.b16 %v991, %v987
  %v1292 = vpack.c.b16 %v992, %v988
  %v1293 = vpack.c.b16 %v993, %v989
  %v1294 = vpack.c.b16 %v998, %v994
  %v1295 = vpack.c.b16 %v999, %v995
  %v1296 = vpack.c.b16 %v1000, %v996
  %v1297 = vpack.c.b16 %v1001, %v997
  %v1298 = vpack.c.b16 %v1006, %v1002
  %v1299 = vpack.c.b16 %v1007, %v1003
  %v1300 = vpack.c.b16 %v1008, %v1004
  %v1301 = vpack.c.b16 %v1009, %v1005
  %v1302 = vpack.c.b16 %v1014, %v1010
  %v1303 = vpack.c.b16 %v1015, %v1011
  %v1304 = vpack.c.b16 %v1016, %v1012
  %v1305 = vpack.c.b16 %v1017, %v1013
  %v1306 = vpack.c.b16 %v1022, %v1018
  %v1307 = vpack.c.b16 %v1023, %v1019
  %v1308 = vpack.c.b16 %v1024, %v1020
  %v1309 = vpack.c.b16 %v1025, %v1021
  %v1310 = vpack.c.b16 %v1030, %v1026
  %v1311 = vpack.c.b16 %v1031, %v1027
  %v1312 = vpack.c.b16 %v1032, %v1028
  %v1313 = vpack.c.b16 %v1033, %v1029
  %v1314 = vpack.c.b16 %v1038, %v1034
  %v1315 = vpack.c.b16 %v1039, %v1035
  %v1316 = vpack.c.b16 %v1040, %v1036
  %v1317 = vpack.c.b16 %v1041, %v1037
  %v1318 = vpack.c.b16 %v1046, %v1042
  %v1319 = vpack.c.b16 %v1047, %v1043
  %v1320 = vpack.c.b16 %v1048, %v1044
  %v1321 = vpack.c.b16 %v1049, %v1045
  %v1322 = vpack.c.b16 %v1054, %v1050
  %v1323 = vpack.c.b16 %v1055, %v1051
  %v1324 = vpack.c.b16 %v1056, %v1052
  %v1325 = vpack.c.b16 %v1057, %v1053
  %v1326 = vpack.c.b16 %v1062, %v1058
  %v1327 = vpack.c.b16 %v1063, %v1059
  %v1328 = vpack.c.b16 %v1064, %v1060
  %v1329 = vpack.c.b16 %v1065, %v1061
  %v1330 = vpack.c.b16 %v1070, %v1066
  %v1331 = vpack.c.b16 %v1071, %v1067
  %v1332 = vpack.c.b16 %v1072, %v1068
  %v1333 = vpack.c.b16 %v1073, %v1069
  %v1334 = vpack.c.b16 %v1078, %v1074
  %v1335 = vpack.c.b16 %v1079, %v1075
  %v1336 = vpack.c.b16 %v1080, %v1076
  %v1337 = vpack.c.b16 %v1081, %v1077
  %1594 = vmatprep.subr.bf16.mxu0 %v1083
  %1595 = vmatpush1.bf16.msra.mxu0 %v1082
  %1596 = vmatprep.subr.bf16.mxu0 %v1087
  %1597 = vmatpush1.bf16.msra.mxu0 %v1086
  %1598 = vmatprep.subr.bf16.mxu0 %v1091
  %1599 = vmatpush1.bf16.msra.mxu0 %v1090
  %1600 = vmatprep.subr.bf16.mxu0 %v1095
  %1601 = vmatpush1.bf16.msra.mxu0 %v1094
  %1602 = vmatprep.subr.bf16.mxu0 %v1099
  %1603 = vmatpush1.bf16.msra.mxu0 %v1098
  %1604 = vmatprep.subr.bf16.mxu0 %v1103
  %1605 = vmatpush1.bf16.msra.mxu0 %v1102
  %1606 = vmatprep.subr.bf16.mxu0 %v1107
  %1607 = vmatpush1.bf16.msra.mxu0 %v1106
  %1608 = vmatprep.subr.bf16.mxu0 %v1111
  %1609 = vmatpush1.bf16.msra.mxu0 %v1110
  %1610 = vmatprep.subr.bf16.mxu0 %v1115
  %1611 = vmatpush1.bf16.msra.mxu0 %v1114
  %1612 = vmatprep.subr.bf16.mxu0 %v1119
  %1613 = vmatpush1.bf16.msra.mxu0 %v1118
  %1614 = vmatprep.subr.bf16.mxu0 %v1123
  %1615 = vmatpush1.bf16.msra.mxu0 %v1122
  %1616 = vmatprep.subr.bf16.mxu0 %v1127
  %1617 = vmatpush1.bf16.msra.mxu0 %v1126
  %1618 = vmatprep.subr.bf16.mxu0 %v1131
  %1619 = vmatpush1.bf16.msra.mxu0 %v1130
  %1620 = vmatprep.subr.bf16.mxu0 %v1135
  %1621 = vmatpush1.bf16.msra.mxu0 %v1134
  %1622 = vmatprep.subr.bf16.mxu0 %v1139
  %1623 = vmatpush1.bf16.msra.mxu0 %v1138
  %1624 = vmatprep.subr.bf16.mxu0 %v1143
  %1625 = vmatpush1.bf16.msra.mxu0 %v1142
  %1626 = vmatprep.mubr.bf16.mxu0 %v29
  %1627 = vmatmul.mubr.bf16.gmra.mrb[0].mxu0 %v28
  %v1628 = vpop.f32.mrb[0].mxu0
  %v1629 = vadd.f32 %v297, %v1628
  %v1630 = vpop.f32.mrb[0].mxu0
  %v1631 = vadd.f32 %v301, %v1630
  %v1632 = vpop.f32.mrb[0].mxu0
  %v1633 = vpop.f32.mrb[0].mxu0
  %1634 = vdwg.mxu0
  %1635 = vmatprep.subr.bf16.mxu0 %v1147
  %1636 = vmatpush1.bf16.msra.mxu0 %v1146
  %1637 = vmatprep.subr.bf16.mxu0 %v1151
  %1638 = vmatpush1.bf16.msra.mxu0 %v1150
  %1639 = vmatprep.subr.bf16.mxu0 %v1155
  %1640 = vmatpush1.bf16.msra.mxu0 %v1154
  %1641 = vmatprep.subr.bf16.mxu0 %v1159
  %1642 = vmatpush1.bf16.msra.mxu0 %v1158
  %1643 = vmatprep.subr.bf16.mxu0 %v1163
  %1644 = vmatpush1.bf16.msra.mxu0 %v1162
  %1645 = vmatprep.subr.bf16.mxu0 %v1167
  %1646 = vmatpush1.bf16.msra.mxu0 %v1166
  %1647 = vmatprep.subr.bf16.mxu0 %v1171
  %1648 = vmatpush1.bf16.msra.mxu0 %v1170
  %1649 = vmatprep.subr.bf16.mxu0 %v1175
  %1650 = vmatpush1.bf16.msra.mxu0 %v1174
  %1651 = vmatprep.subr.bf16.mxu0 %v1179
  %1652 = vmatpush1.bf16.msra.mxu0 %v1178
  %1653 = vmatprep.subr.bf16.mxu0 %v1183
  %1654 = vmatpush1.bf16.msra.mxu0 %v1182
  %1655 = vmatprep.subr.bf16.mxu0 %v1187
  %1656 = vmatpush1.bf16.msra.mxu0 %v1186
  %1657 = vmatprep.subr.bf16.mxu0 %v1191
  %1658 = vmatpush1.bf16.msra.mxu0 %v1190
  %1659 = vmatprep.subr.bf16.mxu0 %v1195
  %1660 = vmatpush1.bf16.msra.mxu0 %v1194
  %1661 = vmatprep.subr.bf16.mxu0 %v1199
  %1662 = vmatpush1.bf16.msra.mxu0 %v1198
  %1663 = vmatprep.subr.bf16.mxu0 %v1203
  %1664 = vmatpush1.bf16.msra.mxu0 %v1202
  %1665 = vmatprep.subr.bf16.mxu0 %v1207
  %1666 = vmatpush1.bf16.msra.mxu0 %v1206
  %1667 = vmatprep.mubr.bf16.mxu0 %v31
  %1668 = vmatmul.mubr.bf16.gmra.mrb[0].mxu0 %v30
  %v1669 = vpop.f32.mrb[0].mxu0
  %v1670 = vadd.f32 %v1629, %v1669
  %v1671 = vpop.f32.mrb[0].mxu0
  %v1672 = vadd.f32 %v1631, %v1671
  %v1673 = vpop.f32.mrb[0].mxu0
  %v1674 = vpop.f32.mrb[0].mxu0
  %1675 = vdwg.mxu0
  %1676 = vmatprep.subr.bf16.mxu0 %v1211
  %1677 = vmatpush1.bf16.msra.mxu0 %v1210
  %1678 = vmatprep.subr.bf16.mxu0 %v1215
  %1679 = vmatpush1.bf16.msra.mxu0 %v1214
  %1680 = vmatprep.subr.bf16.mxu0 %v1219
  %1681 = vmatpush1.bf16.msra.mxu0 %v1218
  %1682 = vmatprep.subr.bf16.mxu0 %v1223
  %1683 = vmatpush1.bf16.msra.mxu0 %v1222
  %1684 = vmatprep.subr.bf16.mxu0 %v1227
  %1685 = vmatpush1.bf16.msra.mxu0 %v1226
  %1686 = vmatprep.subr.bf16.mxu0 %v1231
  %1687 = vmatpush1.bf16.msra.mxu0 %v1230
  %1688 = vmatprep.subr.bf16.mxu0 %v1235
  %1689 = vmatpush1.bf16.msra.mxu0 %v1234
  %1690 = vmatprep.subr.bf16.mxu0 %v1239
  %1691 = vmatpush1.bf16.msra.mxu0 %v1238
  %1692 = vmatprep.subr.bf16.mxu0 %v1243
  %1693 = vmatpush1.bf16.msra.mxu0 %v1242
  %1694 = vmatprep.subr.bf16.mxu0 %v1247
  %1695 = vmatpush1.bf16.msra.mxu0 %v1246
  %1696 = vmatprep.subr.bf16.mxu0 %v1251
  %1697 = vmatpush1.bf16.msra.mxu0 %v1250
  %1698 = vmatprep.subr.bf16.mxu0 %v1255
  %1699 = vmatpush1.bf16.msra.mxu0 %v1254
  %1700 = vmatprep.subr.bf16.mxu0 %v1259
  %1701 = vmatpush1.bf16.msra.mxu0 %v1258
  %1702 = vmatprep.subr.bf16.mxu0 %v1263
  %1703 = vmatpush1.bf16.msra.mxu0 %v1262
  %1704 = vmatprep.subr.bf16.mxu0 %v1267
  %1705 = vmatpush1.bf16.msra.mxu0 %v1266
  %1706 = vmatprep.subr.bf16.mxu0 %v1271
  %1707 = vmatpush1.bf16.msra.mxu0 %v1270
  %1708 = vmatprep.mubr.bf16.mxu0 %v33
  %1709 = vmatmul.mubr.bf16.gmra.mrb[0].mxu0 %v32
  %v1710 = vpop.f32.mrb[0].mxu0
  %v1711 = vadd.f32 %v1670, %v1710
  %v1712 = vpop.f32.mrb[0].mxu0
  %v1713 = vadd.f32 %v1672, %v1712
  %v1714 = vpop.f32.mrb[0].mxu0
  %v1715 = vpop.f32.mrb[0].mxu0
  %1716 = vdwg.mxu0
  %1717 = vmatprep.subr.bf16.mxu0 %v1275
  %1718 = vmatpush1.bf16.msra.mxu0 %v1274
  %1719 = vmatprep.subr.bf16.mxu0 %v1279
  %1720 = vmatpush1.bf16.msra.mxu0 %v1278
  %1721 = vmatprep.subr.bf16.mxu0 %v1283
  %1722 = vmatpush1.bf16.msra.mxu0 %v1282
  %1723 = vmatprep.subr.bf16.mxu0 %v1287
  %1724 = vmatpush1.bf16.msra.mxu0 %v1286
  %1725 = vmatprep.subr.bf16.mxu0 %v1291
  %1726 = vmatpush1.bf16.msra.mxu0 %v1290
  %1727 = vmatprep.subr.bf16.mxu0 %v1295
  %1728 = vmatpush1.bf16.msra.mxu0 %v1294
  %1729 = vmatprep.subr.bf16.mxu0 %v1299
  %1730 = vmatpush1.bf16.msra.mxu0 %v1298
  %1731 = vmatprep.subr.bf16.mxu0 %v1303
  %1732 = vmatpush1.bf16.msra.mxu0 %v1302
  %1733 = vmatprep.subr.bf16.mxu0 %v1307
  %1734 = vmatpush1.bf16.msra.mxu0 %v1306
  %1735 = vmatprep.subr.bf16.mxu0 %v1311
  %1736 = vmatpush1.bf16.msra.mxu0 %v1310
  %1737 = vmatprep.subr.bf16.mxu0 %v1315
  %1738 = vmatpush1.bf16.msra.mxu0 %v1314
  %1739 = vmatprep.subr.bf16.mxu0 %v1319
  %1740 = vmatpush1.bf16.msra.mxu0 %v1318
  %1741 = vmatprep.subr.bf16.mxu0 %v1323
  %1742 = vmatpush1.bf16.msra.mxu0 %v1322
  %1743 = vmatprep.subr.bf16.mxu0 %v1327
  %1744 = vmatpush1.bf16.msra.mxu0 %v1326
  %1745 = vmatprep.subr.bf16.mxu0 %v1331
  %1746 = vmatpush1.bf16.msra.mxu0 %v1330
  %1747 = vmatprep.subr.bf16.mxu0 %v1335
  %1748 = vmatpush1.bf16.msra.mxu0 %v1334
  %1749 = vmatprep.mubr.bf16.mxu0 %v35
  %1750 = vmatmul.mubr.bf16.gmra.mrb[0].mxu0 %v34
  %v1751 = vpop.f32.mrb[0].mxu0
  %v1752 = vadd.f32 %v1711, %v1751
  %v1753 = vpop.f32.mrb[0].mxu0
  %v1754 = vadd.f32 %v1713, %v1753
  %v1755 = vpop.f32.mrb[0].mxu0
  %v1756 = vpop.f32.mrb[0].mxu0
  %1757 = vdwg.mxu0
  %1758 = vmatprep.subr.bf16.mxu0 %v1085
  %1759 = vmatpush1.bf16.msra.mxu0 %v1084
  %1760 = vmatprep.subr.bf16.mxu0 %v1089
  %1761 = vmatpush1.bf16.msra.mxu0 %v1088
  %1762 = vmatprep.subr.bf16.mxu0 %v1093
  %1763 = vmatpush1.bf16.msra.mxu0 %v1092
  %1764 = vmatprep.subr.bf16.mxu0 %v1097
  %1765 = vmatpush1.bf16.msra.mxu0 %v1096
  %1766 = vmatprep.subr.bf16.mxu0 %v1101
  %1767 = vmatpush1.bf16.msra.mxu0 %v1100
  %1768 = vmatprep.subr.bf16.mxu0 %v1105
  %1769 = vmatpush1.bf16.msra.mxu0 %v1104
  %1770 = vmatprep.subr.bf16.mxu0 %v1109
  %1771 = vmatpush1.bf16.msra.mxu0 %v1108
  %1772 = vmatprep.subr.bf16.mxu0 %v1113
  %1773 = vmatpush1.bf16.msra.mxu0 %v1112
  %1774 = vmatprep.subr.bf16.mxu0 %v1117
  %1775 = vmatpush1.bf16.msra.mxu0 %v1116
  %1776 = vmatprep.subr.bf16.mxu0 %v1121
  %1777 = vmatpush1.bf16.msra.mxu0 %v1120
  %1778 = vmatprep.subr.bf16.mxu0 %v1125
  %1779 = vmatpush1.bf16.msra.mxu0 %v1124
  %1780 = vmatprep.subr.bf16.mxu0 %v1129
  %1781 = vmatpush1.bf16.msra.mxu0 %v1128
  %1782 = vmatprep.subr.bf16.mxu0 %v1133
  %1783 = vmatpush1.bf16.msra.mxu0 %v1132
  %1784 = vmatprep.subr.bf16.mxu0 %v1137
  %1785 = vmatpush1.bf16.msra.mxu0 %v1136
  %1786 = vmatprep.subr.bf16.mxu0 %v1141
  %1787 = vmatpush1.bf16.msra.mxu0 %v1140
  %1788 = vmatprep.subr.bf16.mxu0 %v1145
  %1789 = vmatpush1.bf16.msra.mxu0 %v1144
  %1790 = vmatprep.mubr.bf16.mxu0 %v29
  %1791 = vmatmul.mubr.bf16.gmra.mrb[0].mxu0 %v28
  %v1792 = vpop.f32.mrb[0].mxu0
  %v1793 = vadd.f32 %v305, %v1792
  %v1794 = vpop.f32.mrb[0].mxu0
  %v1795 = vadd.f32 %v309, %v1794
  %v1796 = vpop.f32.mrb[0].mxu0
  %v1797 = vpop.f32.mrb[0].mxu0
  %1798 = vdwg.mxu0
  %1799 = vmatprep.subr.bf16.mxu0 %v1149
  %1800 = vmatpush1.bf16.msra.mxu0 %v1148
  %1801 = vmatprep.subr.bf16.mxu0 %v1153
  %1802 = vmatpush1.bf16.msra.mxu0 %v1152
  %1803 = vmatprep.subr.bf16.mxu0 %v1157
  %1804 = vmatpush1.bf16.msra.mxu0 %v1156
  %1805 = vmatprep.subr.bf16.mxu0 %v1161
  %1806 = vmatpush1.bf16.msra.mxu0 %v1160
  %1807 = vmatprep.subr.bf16.mxu0 %v1165
  %1808 = vmatpush1.bf16.msra.mxu0 %v1164
  %1809 = vmatprep.subr.bf16.mxu0 %v1169
  %1810 = vmatpush1.bf16.msra.mxu0 %v1168
  %1811 = vmatprep.subr.bf16.mxu0 %v1173
  %1812 = vmatpush1.bf16.msra.mxu0 %v1172
  %1813 = vmatprep.subr.bf16.mxu0 %v1177
  %1814 = vmatpush1.bf16.msra.mxu0 %v1176
  %1815 = vmatprep.subr.bf16.mxu0 %v1181
  %1816 = vmatpush1.bf16.msra.mxu0 %v1180
  %1817 = vmatprep.subr.bf16.mxu0 %v1185
  %1818 = vmatpush1.bf16.msra.mxu0 %v1184
  %1819 = vmatprep.subr.bf16.mxu0 %v1189
  %1820 = vmatpush1.bf16.msra.mxu0 %v1188
  %1821 = vmatprep.subr.bf16.mxu0 %v1193
  %1822 = vmatpush1.bf16.msra.mxu0 %v1192
  %1823 = vmatprep.subr.bf16.mxu0 %v1197
  %1824 = vmatpush1.bf16.msra.mxu0 %v1196
  %1825 = vmatprep.subr.bf16.mxu0 %v1201
  %1826 = vmatpush1.bf16.msra.mxu0 %v1200
  %1827 = vmatprep.subr.bf16.mxu0 %v1205
  %1828 = vmatpush1.bf16.msra.mxu0 %v1204
  %1829 = vmatprep.subr.bf16.mxu0 %v1209
  %1830 = vmatpush1.bf16.msra.mxu0 %v1208
  %1831 = vmatprep.mubr.bf16.mxu0 %v31
  %1832 = vmatmul.mubr.bf16.gmra.mrb[0].mxu0 %v30
  %v1833 = vpop.f32.mrb[0].mxu0
  %v1834 = vadd.f32 %v1793, %v1833
  %v1835 = vpop.f32.mrb[0].mxu0
  %v1836 = vadd.f32 %v1795, %v1835
  %v1837 = vpop.f32.mrb[0].mxu0
  %v1838 = vpop.f32.mrb[0].mxu0
  %1839 = vdwg.mxu0
  %1840 = vmatprep.subr.bf16.mxu0 %v1213
  %1841 = vmatpush1.bf16.msra.mxu0 %v1212
  %1842 = vmatprep.subr.bf16.mxu0 %v1217
  %1843 = vmatpush1.bf16.msra.mxu0 %v1216
  %1844 = vmatprep.subr.bf16.mxu0 %v1221
  %1845 = vmatpush1.bf16.msra.mxu0 %v1220
  %1846 = vmatprep.subr.bf16.mxu0 %v1225
  %1847 = vmatpush1.bf16.msra.mxu0 %v1224
  %1848 = vmatprep.subr.bf16.mxu0 %v1229
  %1849 = vmatpush1.bf16.msra.mxu0 %v1228
  %1850 = vmatprep.subr.bf16.mxu0 %v1233
  %1851 = vmatpush1.bf16.msra.mxu0 %v1232
  %1852 = vmatprep.subr.bf16.mxu0 %v1237
  %1853 = vmatpush1.bf16.msra.mxu0 %v1236
  %1854 = vmatprep.subr.bf16.mxu0 %v1241
  %1855 = vmatpush1.bf16.msra.mxu0 %v1240
  %1856 = vmatprep.subr.bf16.mxu0 %v1245
  %1857 = vmatpush1.bf16.msra.mxu0 %v1244
  %1858 = vmatprep.subr.bf16.mxu0 %v1249
  %1859 = vmatpush1.bf16.msra.mxu0 %v1248
  %1860 = vmatprep.subr.bf16.mxu0 %v1253
  %1861 = vmatpush1.bf16.msra.mxu0 %v1252
  %1862 = vmatprep.subr.bf16.mxu0 %v1257
  %1863 = vmatpush1.bf16.msra.mxu0 %v1256
  %1864 = vmatprep.subr.bf16.mxu0 %v1261
  %1865 = vmatpush1.bf16.msra.mxu0 %v1260
  %1866 = vmatprep.subr.bf16.mxu0 %v1265
  %1867 = vmatpush1.bf16.msra.mxu0 %v1264
  %1868 = vmatprep.subr.bf16.mxu0 %v1269
  %1869 = vmatpush1.bf16.msra.mxu0 %v1268
  %1870 = vmatprep.subr.bf16.mxu0 %v1273
  %1871 = vmatpush1.bf16.msra.mxu0 %v1272
  %1872 = vmatprep.mubr.bf16.mxu0 %v33
  %1873 = vmatmul.mubr.bf16.gmra.mrb[0].mxu0 %v32
  %v1874 = vpop.f32.mrb[0].mxu0
  %v1875 = vadd.f32 %v1834, %v1874
  %v1876 = vpop.f32.mrb[0].mxu0
  %v1877 = vadd.f32 %v1836, %v1876
  %v1878 = vpop.f32.mrb[0].mxu0
  %v1879 = vpop.f32.mrb[0].mxu0
  %1880 = vdwg.mxu0
  %1881 = vmatprep.subr.bf16.mxu0 %v1277
  %1882 = vmatpush1.bf16.msra.mxu0 %v1276
  %1883 = vmatprep.subr.bf16.mxu0 %v1281
  %1884 = vmatpush1.bf16.msra.mxu0 %v1280
  %1885 = vmatprep.subr.bf16.mxu0 %v1285
  %1886 = vmatpush1.bf16.msra.mxu0 %v1284
  %1887 = vmatprep.subr.bf16.mxu0 %v1289
  %1888 = vmatpush1.bf16.msra.mxu0 %v1288
  %1889 = vmatprep.subr.bf16.mxu0 %v1293
  %1890 = vmatpush1.bf16.msra.mxu0 %v1292
  %1891 = vmatprep.subr.bf16.mxu0 %v1297
  %1892 = vmatpush1.bf16.msra.mxu0 %v1296
  %1893 = vmatprep.subr.bf16.mxu0 %v1301
  %1894 = vmatpush1.bf16.msra.mxu0 %v1300
  %1895 = vmatprep.subr.bf16.mxu0 %v1305
  %1896 = vmatpush1.bf16.msra.mxu0 %v1304
  %1897 = vmatprep.subr.bf16.mxu0 %v1309
  %1898 = vmatpush1.bf16.msra.mxu0 %v1308
  %1899 = vmatprep.subr.bf16.mxu0 %v1313
  %1900 = vmatpush1.bf16.msra.mxu0 %v1312
  %1901 = vmatprep.subr.bf16.mxu0 %v1317
  %1902 = vmatpush1.bf16.msra.mxu0 %v1316
  %1903 = vmatprep.subr.bf16.mxu0 %v1321
  %1904 = vmatpush1.bf16.msra.mxu0 %v1320
  %1905 = vmatprep.subr.bf16.mxu0 %v1325
  %1906 = vmatpush1.bf16.msra.mxu0 %v1324
  %1907 = vmatprep.subr.bf16.mxu0 %v1329
  %1908 = vmatpush1.bf16.msra.mxu0 %v1328
  %1909 = vmatprep.subr.bf16.mxu0 %v1333
  %1910 = vmatpush1.bf16.msra.mxu0 %v1332
  %1911 = vmatprep.subr.bf16.mxu0 %v1337
  %1912 = vmatpush1.bf16.msra.mxu0 %v1336
  %1913 = vmatprep.mubr.bf16.mxu0 %v35
  %1914 = vmatmul.mubr.bf16.gmra.mrb[0].mxu0 %v34
  %v1915 = vpop.f32.mrb[0].mxu0
  %v1916 = vadd.f32 %v1875, %v1915
  %v1917 = vpop.f32.mrb[0].mxu0
  %v1918 = vadd.f32 %v1877, %v1917
  %v1919 = vpop.f32.mrb[0].mxu0
  %v1920 = vpop.f32.mrb[0].mxu0
  %1921 = vdwg.mxu0
  %v1922 = vpack.c.bf16 %v1752, %v1752
  %v1923 = vpack.c.bf16 %v1754, %v1754
  %v1924 = vpack.c.bf16 %v1916, %v1916
  %v1925 = vpack.c.bf16 %v1918, %v1918
  %v1926 = vld [vmem:[%s3] sm:$0xff]
  %v1927 = vld [vmem:[%s3 + $0x8] sm:$0xff]
  %v1928 = vld [vmem:[%s3 + $0x10] sm:$0xff]
  %v1929 = vld [vmem:[%s3 + $0x18] sm:$0xff]
  %v1930 = vld [vmem:[%s3 + $0x20] sm:$0xff]
  %v1931 = vld [vmem:[%s3 + $0x28] sm:$0xff]
  %v1932 = vld [vmem:[%s3 + $0x30] sm:$0xff]
  %v1933 = vld [vmem:[%s3 + $0x38] sm:$0xff]
  %v1934 = vld [vmem:[%s3 + $0x40] sm:$0xff]
  %v1935 = vld [vmem:[%s3 + $0x48] sm:$0xff]
  %v1936 = vld [vmem:[%s3 + $0x50] sm:$0xff]
  %v1937 = vld [vmem:[%s3 + $0x58] sm:$0xff]
  %v1938 = vld [vmem:[%s3 + $0x60] sm:$0xff]
  %v1939 = vld [vmem:[%s3 + $0x68] sm:$0xff]
  %v1940 = vld [vmem:[%s3 + $0x70] sm:$0xff]
  %v1941 = vld [vmem:[%s3 + $0x78] sm:$0xff]
  %v1942 = vld [vmem:[%s3 + $0x80] sm:$0xff]
  %v1943 = vld [vmem:[%s3 + $0x88] sm:$0xff]
  %v1944 = vld [vmem:[%s3 + $0x90] sm:$0xff]
  %v1945 = vld [vmem:[%s3 + $0x98] sm:$0xff]
  %v1946 = vld [vmem:[%s3 + $0xa0] sm:$0xff]
  %v1947 = vld [vmem:[%s3 + $0xa8] sm:$0xff]
  %v1948 = vld [vmem:[%s3 + $0xb0] sm:$0xff]
  %v1949 = vld [vmem:[%s3 + $0xb8] sm:$0xff]
  %v1950 = vld [vmem:[%s3 + $0xc0] sm:$0xff]
  %v1951 = vld [vmem:[%s3 + $0xc8] sm:$0xff]
  %v1952 = vld [vmem:[%s3 + $0xd0] sm:$0xff]
  %v1953 = vld [vmem:[%s3 + $0xd8] sm:$0xff]
  %v1954 = vld [vmem:[%s3 + $0xe0] sm:$0xff]
  %v1955 = vld [vmem:[%s3 + $0xe8] sm:$0xff]
  %v1956 = vld [vmem:[%s3 + $0xf0] sm:$0xff]
  %v1957 = vld [vmem:[%s3 + $0xf8] sm:$0xff]
  %v1958 = vld [vmem:[%s3 + $0x100] sm:$0xff]
  %v1959 = vld [vmem:[%s3 + $0x108] sm:$0xff]
  %v1960 = vld [vmem:[%s3 + $0x110] sm:$0xff]
  %v1961 = vld [vmem:[%s3 + $0x118] sm:$0xff]
  %v1962 = vld [vmem:[%s3 + $0x120] sm:$0xff]
  %v1963 = vld [vmem:[%s3 + $0x128] sm:$0xff]
  %v1964 = vld [vmem:[%s3 + $0x130] sm:$0xff]
  %v1965 = vld [vmem:[%s3 + $0x138] sm:$0xff]
  %v1966 = vld [vmem:[%s3 + $0x140] sm:$0xff]
  %v1967 = vld [vmem:[%s3 + $0x148] sm:$0xff]
  %v1968 = vld [vmem:[%s3 + $0x150] sm:$0xff]
  %v1969 = vld [vmem:[%s3 + $0x158] sm:$0xff]
  %v1970 = vld [vmem:[%s3 + $0x160] sm:$0xff]
  %v1971 = vld [vmem:[%s3 + $0x168] sm:$0xff]
  %v1972 = vld [vmem:[%s3 + $0x170] sm:$0xff]
  %v1973 = vld [vmem:[%s3 + $0x178] sm:$0xff]
  %v1974 = vld [vmem:[%s3 + $0x180] sm:$0xff]
  %v1975 = vld [vmem:[%s3 + $0x188] sm:$0xff]
  %v1976 = vld [vmem:[%s3 + $0x190] sm:$0xff]
  %v1977 = vld [vmem:[%s3 + $0x198] sm:$0xff]
  %v1978 = vld [vmem:[%s3 + $0x1a0] sm:$0xff]
  %v1979 = vld [vmem:[%s3 + $0x1a8] sm:$0xff]
  %v1980 = vld [vmem:[%s3 + $0x1b0] sm:$0xff]
  %v1981 = vld [vmem:[%s3 + $0x1b8] sm:$0xff]
  %v1982 = vld [vmem:[%s3 + $0x1c0] sm:$0xff]
  %v1983 = vld [vmem:[%s3 + $0x1c8] sm:$0xff]
  %v1984 = vld [vmem:[%s3 + $0x1d0] sm:$0xff]
  %v1985 = vld [vmem:[%s3 + $0x1d8] sm:$0xff]
  %v1986 = vld [vmem:[%s3 + $0x1e0] sm:$0xff]
  %v1987 = vld [vmem:[%s3 + $0x1e8] sm:$0xff]
  %v1988 = vld [vmem:[%s3 + $0x1f0] sm:$0xff]
  %v1989 = vld [vmem:[%s3 + $0x1f8] sm:$0xff]
  %v1990 = vld [vmem:[%s3 + $0x200] sm:$0xff]
  %v1991 = vld [vmem:[%s3 + $0x208] sm:$0xff]
  %v1992 = vld [vmem:[%s3 + $0x210] sm:$0xff]
  %v1993 = vld [vmem:[%s3 + $0x218] sm:$0xff]
  %v1994 = vld [vmem:[%s3 + $0x220] sm:$0xff]
  %v1995 = vld [vmem:[%s3 + $0x228] sm:$0xff]
  %v1996 = vld [vmem:[%s3 + $0x230] sm:$0xff]
  %v1997 = vld [vmem:[%s3 + $0x238] sm:$0xff]
  %v1998 = vld [vmem:[%s3 + $0x240] sm:$0xff]
  %v1999 = vld [vmem:[%s3 + $0x248] sm:$0xff]
  %v2000 = vld [vmem:[%s3 + $0x250] sm:$0xff]
  %v2001 = vld [vmem:[%s3 + $0x258] sm:$0xff]
  %v2002 = vld [vmem:[%s3 + $0x260] sm:$0xff]
  %v2003 = vld [vmem:[%s3 + $0x268] sm:$0xff]
  %v2004 = vld [vmem:[%s3 + $0x270] sm:$0xff]
  %v2005 = vld [vmem:[%s3 + $0x278] sm:$0xff]
  %v2006 = vld [vmem:[%s3 + $0x280] sm:$0xff]
  %v2007 = vld [vmem:[%s3 + $0x288] sm:$0xff]
  %v2008 = vld [vmem:[%s3 + $0x290] sm:$0xff]
  %v2009 = vld [vmem:[%s3 + $0x298] sm:$0xff]
  %v2010 = vld [vmem:[%s3 + $0x2a0] sm:$0xff]
  %v2011 = vld [vmem:[%s3 + $0x2a8] sm:$0xff]
  %v2012 = vld [vmem:[%s3 + $0x2b0] sm:$0xff]
  %v2013 = vld [vmem:[%s3 + $0x2b8] sm:$0xff]
  %v2014 = vld [vmem:[%s3 + $0x2c0] sm:$0xff]
  %v2015 = vld [vmem:[%s3 + $0x2c8] sm:$0xff]
  %v2016 = vld [vmem:[%s3 + $0x2d0] sm:$0xff]
  %v2017 = vld [vmem:[%s3 + $0x2d8] sm:$0xff]
  %v2018 = vld [vmem:[%s3 + $0x2e0] sm:$0xff]
  %v2019 = vld [vmem:[%s3 + $0x2e8] sm:$0xff]
  %v2020 = vld [vmem:[%s3 + $0x2f0] sm:$0xff]
  %v2021 = vld [vmem:[%s3 + $0x2f8] sm:$0xff]
  %v2022 = vld [vmem:[%s3 + $0x300] sm:$0xff]
  %v2023 = vld [vmem:[%s3 + $0x308] sm:$0xff]
  %v2024 = vld [vmem:[%s3 + $0x310] sm:$0xff]
  %v2025 = vld [vmem:[%s3 + $0x318] sm:$0xff]
  %v2026 = vld [vmem:[%s3 + $0x320] sm:$0xff]
  %v2027 = vld [vmem:[%s3 + $0x328] sm:$0xff]
  %v2028 = vld [vmem:[%s3 + $0x330] sm:$0xff]
  %v2029 = vld [vmem:[%s3 + $0x338] sm:$0xff]
  %v2030 = vld [vmem:[%s3 + $0x340] sm:$0xff]
  %v2031 = vld [vmem:[%s3 + $0x348] sm:$0xff]
  %v2032 = vld [vmem:[%s3 + $0x350] sm:$0xff]
  %v2033 = vld [vmem:[%s3 + $0x358] sm:$0xff]
  %v2034 = vld [vmem:[%s3 + $0x360] sm:$0xff]
  %v2035 = vld [vmem:[%s3 + $0x368] sm:$0xff]
  %v2036 = vld [vmem:[%s3 + $0x370] sm:$0xff]
  %v2037 = vld [vmem:[%s3 + $0x378] sm:$0xff]
  %v2038 = vld [vmem:[%s3 + $0x380] sm:$0xff]
  %v2039 = vld [vmem:[%s3 + $0x388] sm:$0xff]
  %v2040 = vld [vmem:[%s3 + $0x390] sm:$0xff]
  %v2041 = vld [vmem:[%s3 + $0x398] sm:$0xff]
  %v2042 = vld [vmem:[%s3 + $0x3a0] sm:$0xff]
  %v2043 = vld [vmem:[%s3 + $0x3a8] sm:$0xff]
  %v2044 = vld [vmem:[%s3 + $0x3b0] sm:$0xff]
  %v2045 = vld [vmem:[%s3 + $0x3b8] sm:$0xff]
  %v2046 = vld [vmem:[%s3 + $0x3c0] sm:$0xff]
  %v2047 = vld [vmem:[%s3 + $0x3c8] sm:$0xff]
  %v2048 = vld [vmem:[%s3 + $0x3d0] sm:$0xff]
  %v2049 = vld [vmem:[%s3 + $0x3d8] sm:$0xff]
  %v2050 = vld [vmem:[%s3 + $0x3e0] sm:$0xff]
  %v2051 = vld [vmem:[%s3 + $0x3e8] sm:$0xff]
  %v2052 = vld [vmem:[%s3 + $0x3f0] sm:$0xff]
  %v2053 = vld [vmem:[%s3 + $0x3f8] sm:$0xff]
  %v2054 = vld [vmem:[%s4] sm:$0xf]
  %v2056 = vlaneseq
  %v2057 = vshrl.u32 %v2056, 7
  %v2058 = vsub.s32 0, %v2057
  %v2059 = vrot.slane %v2054, %v2058
  %v2060 = vlaneseq
  %v2061 = vshrl.u32 %v2060, 7
  %v2062 = vsub.s32 1, %v2061
  %v2063 = vrot.slane %v2054, %v2062
  %v2064 = vlaneseq
  %v2065 = vshrl.u32 %v2064, 7
  %v2066 = vsub.s32 2, %v2065
  %v2067 = vrot.slane %v2054, %v2066
  %v2068 = vlaneseq
  %v2069 = vshrl.u32 %v2068, 7
  %v2070 = vsub.s32 3, %v2069
  %v2071 = vrot.slane %v2054, %v2070
  %v2204 = vunpack.c.l.b16 %v1926
  %v2205 = vunpack.c.h.b16 %v1926
  %v2206 = vunpack.c.l.b16 %v1927
  %v2207 = vunpack.c.h.b16 %v1927
  %v2208 = vunpack.c.l.b16 %v1928
  %v2209 = vunpack.c.h.b16 %v1928
  %v2210 = vunpack.c.l.b16 %v1929
  %v2211 = vunpack.c.h.b16 %v1929
  %v2212 = vunpack.c.l.b16 %v1930
  %v2213 = vunpack.c.h.b16 %v1930
  %v2214 = vunpack.c.l.b16 %v1931
  %v2215 = vunpack.c.h.b16 %v1931
  %v2216 = vunpack.c.l.b16 %v1932
  %v2217 = vunpack.c.h.b16 %v1932
  %v2218 = vunpack.c.l.b16 %v1933
  %v2219 = vunpack.c.h.b16 %v1933
  %v2220 = vunpack.c.l.b16 %v1934
  %v2221 = vunpack.c.h.b16 %v1934
  %v2222 = vunpack.c.l.b16 %v1935
  %v2223 = vunpack.c.h.b16 %v1935
  %v2224 = vunpack.c.l.b16 %v1936
  %v2225 = vunpack.c.h.b16 %v1936
  %v2226 = vunpack.c.l.b16 %v1937
  %v2227 = vunpack.c.h.b16 %v1937
  %v2228 = vunpack.c.l.b16 %v1938
  %v2229 = vunpack.c.h.b16 %v1938
  %v2230 = vunpack.c.l.b16 %v1939
  %v2231 = vunpack.c.h.b16 %v1939
  %v2232 = vunpack.c.l.b16 %v1940
  %v2233 = vunpack.c.h.b16 %v1940
  %v2234 = vunpack.c.l.b16 %v1941
  %v2235 = vunpack.c.h.b16 %v1941
  %v2236 = vunpack.c.l.b16 %v1942
  %v2237 = vunpack.c.h.b16 %v1942
  %v2238 = vunpack.c.l.b16 %v1943
  %v2239 = vunpack.c.h.b16 %v1943
  %v2240 = vunpack.c.l.b16 %v1944
  %v2241 = vunpack.c.h.b16 %v1944
  %v2242 = vunpack.c.l.b16 %v1945
  %v2243 = vunpack.c.h.b16 %v1945
  %v2244 = vunpack.c.l.b16 %v1946
  %v2245 = vunpack.c.h.b16 %v1946
  %v2246 = vunpack.c.l.b16 %v1947
  %v2247 = vunpack.c.h.b16 %v1947
  %v2248 = vunpack.c.l.b16 %v1948
  %v2249 = vunpack.c.h.b16 %v1948
  %v2250 = vunpack.c.l.b16 %v1949
  %v2251 = vunpack.c.h.b16 %v1949
  %v2252 = vunpack.c.l.b16 %v1950
  %v2253 = vunpack.c.h.b16 %v1950
  %v2254 = vunpack.c.l.b16 %v1951
  %v2255 = vunpack.c.h.b16 %v1951
  %v2256 = vunpack.c.l.b16 %v1952
  %v2257 = vunpack.c.h.b16 %v1952
  %v2258 = vunpack.c.l.b16 %v1953
  %v2259 = vunpack.c.h.b16 %v1953
  %v2260 = vunpack.c.l.b16 %v1954
  %v2261 = vunpack.c.h.b16 %v1954
  %v2262 = vunpack.c.l.b16 %v1955
  %v2263 = vunpack.c.h.b16 %v1955
  %v2264 = vunpack.c.l.b16 %v1956
  %v2265 = vunpack.c.h.b16 %v1956
  %v2266 = vunpack.c.l.b16 %v1957
  %v2267 = vunpack.c.h.b16 %v1957
  %v2268 = vunpack.c.l.b16 %v1958
  %v2269 = vunpack.c.h.b16 %v1958
  %v2270 = vunpack.c.l.b16 %v1959
  %v2271 = vunpack.c.h.b16 %v1959
  %v2272 = vunpack.c.l.b16 %v1960
  %v2273 = vunpack.c.h.b16 %v1960
  %v2274 = vunpack.c.l.b16 %v1961
  %v2275 = vunpack.c.h.b16 %v1961
  %v2276 = vunpack.c.l.b16 %v1962
  %v2277 = vunpack.c.h.b16 %v1962
  %v2278 = vunpack.c.l.b16 %v1963
  %v2279 = vunpack.c.h.b16 %v1963
  %v2280 = vunpack.c.l.b16 %v1964
  %v2281 = vunpack.c.h.b16 %v1964
  %v2282 = vunpack.c.l.b16 %v1965
  %v2283 = vunpack.c.h.b16 %v1965
  %v2284 = vunpack.c.l.b16 %v1966
  %v2285 = vunpack.c.h.b16 %v1966
  %v2286 = vunpack.c.l.b16 %v1967
  %v2287 = vunpack.c.h.b16 %v1967
  %v2288 = vunpack.c.l.b16 %v1968
  %v2289 = vunpack.c.h.b16 %v1968
  %v2290 = vunpack.c.l.b16 %v1969
  %v2291 = vunpack.c.h.b16 %v1969
  %v2292 = vunpack.c.l.b16 %v1970
  %v2293 = vunpack.c.h.b16 %v1970
  %v2294 = vunpack.c.l.b16 %v1971
  %v2295 = vunpack.c.h.b16 %v1971
  %v2296 = vunpack.c.l.b16 %v1972
  %v2297 = vunpack.c.h.b16 %v1972
  %v2298 = vunpack.c.l.b16 %v1973
  %v2299 = vunpack.c.h.b16 %v1973
  %v2300 = vunpack.c.l.b16 %v1974
  %v2301 = vunpack.c.h.b16 %v1974
  %v2302 = vunpack.c.l.b16 %v1975
  %v2303 = vunpack.c.h.b16 %v1975
  %v2304 = vunpack.c.l.b16 %v1976
  %v2305 = vunpack.c.h.b16 %v1976
  %v2306 = vunpack.c.l.b16 %v1977
  %v2307 = vunpack.c.h.b16 %v1977
  %v2308 = vunpack.c.l.b16 %v1978
  %v2309 = vunpack.c.h.b16 %v1978
  %v2310 = vunpack.c.l.b16 %v1979
  %v2311 = vunpack.c.h.b16 %v1979
  %v2312 = vunpack.c.l.b16 %v1980
  %v2313 = vunpack.c.h.b16 %v1980
  %v2314 = vunpack.c.l.b16 %v1981
  %v2315 = vunpack.c.h.b16 %v1981
  %v2316 = vunpack.c.l.b16 %v1982
  %v2317 = vunpack.c.h.b16 %v1982
  %v2318 = vunpack.c.l.b16 %v1983
  %v2319 = vunpack.c.h.b16 %v1983
  %v2320 = vunpack.c.l.b16 %v1984
  %v2321 = vunpack.c.h.b16 %v1984
  %v2322 = vunpack.c.l.b16 %v1985
  %v2323 = vunpack.c.h.b16 %v1985
  %v2324 = vunpack.c.l.b16 %v1986
  %v2325 = vunpack.c.h.b16 %v1986
  %v2326 = vunpack.c.l.b16 %v1987
  %v2327 = vunpack.c.h.b16 %v1987
  %v2328 = vunpack.c.l.b16 %v1988
  %v2329 = vunpack.c.h.b16 %v1988
  %v2330 = vunpack.c.l.b16 %v1989
  %v2331 = vunpack.c.h.b16 %v1989
  %v2332 = vunpack.c.l.b16 %v1990
  %v2333 = vunpack.c.h.b16 %v1990
  %v2334 = vunpack.c.l.b16 %v1991
  %v2335 = vunpack.c.h.b16 %v1991
  %v2336 = vunpack.c.l.b16 %v1992
  %v2337 = vunpack.c.h.b16 %v1992
  %v2338 = vunpack.c.l.b16 %v1993
  %v2339 = vunpack.c.h.b16 %v1993
  %v2340 = vunpack.c.l.b16 %v1994
  %v2341 = vunpack.c.h.b16 %v1994
  %v2342 = vunpack.c.l.b16 %v1995
  %v2343 = vunpack.c.h.b16 %v1995
  %v2344 = vunpack.c.l.b16 %v1996
  %v2345 = vunpack.c.h.b16 %v1996
  %v2346 = vunpack.c.l.b16 %v1997
  %v2347 = vunpack.c.h.b16 %v1997
  %v2348 = vunpack.c.l.b16 %v1998
  %v2349 = vunpack.c.h.b16 %v1998
  %v2350 = vunpack.c.l.b16 %v1999
  %v2351 = vunpack.c.h.b16 %v1999
  %v2352 = vunpack.c.l.b16 %v2000
  %v2353 = vunpack.c.h.b16 %v2000
  %v2354 = vunpack.c.l.b16 %v2001
  %v2355 = vunpack.c.h.b16 %v2001
  %v2356 = vunpack.c.l.b16 %v2002
  %v2357 = vunpack.c.h.b16 %v2002
  %v2358 = vunpack.c.l.b16 %v2003
  %v2359 = vunpack.c.h.b16 %v2003
  %v2360 = vunpack.c.l.b16 %v2004
  %v2361 = vunpack.c.h.b16 %v2004
  %v2362 = vunpack.c.l.b16 %v2005
  %v2363 = vunpack.c.h.b16 %v2005
  %v2364 = vunpack.c.l.b16 %v2006
  %v2365 = vunpack.c.h.b16 %v2006
  %v2366 = vunpack.c.l.b16 %v2007
  %v2367 = vunpack.c.h.b16 %v2007
  %v2368 = vunpack.c.l.b16 %v2008
  %v2369 = vunpack.c.h.b16 %v2008
  %v2370 = vunpack.c.l.b16 %v2009
  %v2371 = vunpack.c.h.b16 %v2009
  %v2372 = vunpack.c.l.b16 %v2010
  %v2373 = vunpack.c.h.b16 %v2010
  %v2374 = vunpack.c.l.b16 %v2011
  %v2375 = vunpack.c.h.b16 %v2011
  %v2376 = vunpack.c.l.b16 %v2012
  %v2377 = vunpack.c.h.b16 %v2012
  %v2378 = vunpack.c.l.b16 %v2013
  %v2379 = vunpack.c.h.b16 %v2013
  %v2380 = vunpack.c.l.b16 %v2014
  %v2381 = vunpack.c.h.b16 %v2014
  %v2382 = vunpack.c.l.b16 %v2015
  %v2383 = vunpack.c.h.b16 %v2015
  %v2384 = vunpack.c.l.b16 %v2016
  %v2385 = vunpack.c.h.b16 %v2016
  %v2386 = vunpack.c.l.b16 %v2017
  %v2387 = vunpack.c.h.b16 %v2017
  %v2388 = vunpack.c.l.b16 %v2018
  %v2389 = vunpack.c.h.b16 %v2018
  %v2390 = vunpack.c.l.b16 %v2019
  %v2391 = vunpack.c.h.b16 %v2019
  %v2392 = vunpack.c.l.b16 %v2020
  %v2393 = vunpack.c.h.b16 %v2020
  %v2394 = vunpack.c.l.b16 %v2021
  %v2395 = vunpack.c.h.b16 %v2021
  %v2396 = vunpack.c.l.b16 %v2022
  %v2397 = vunpack.c.h.b16 %v2022
  %v2398 = vunpack.c.l.b16 %v2023
  %v2399 = vunpack.c.h.b16 %v2023
  %v2400 = vunpack.c.l.b16 %v2024
  %v2401 = vunpack.c.h.b16 %v2024
  %v2402 = vunpack.c.l.b16 %v2025
  %v2403 = vunpack.c.h.b16 %v2025
  %v2404 = vunpack.c.l.b16 %v2026
  %v2405 = vunpack.c.h.b16 %v2026
  %v2406 = vunpack.c.l.b16 %v2027
  %v2407 = vunpack.c.h.b16 %v2027
  %v2408 = vunpack.c.l.b16 %v2028
  %v2409 = vunpack.c.h.b16 %v2028
  %v2410 = vunpack.c.l.b16 %v2029
  %v2411 = vunpack.c.h.b16 %v2029
  %v2412 = vunpack.c.l.b16 %v2030
  %v2413 = vunpack.c.h.b16 %v2030
  %v2414 = vunpack.c.l.b16 %v2031
  %v2415 = vunpack.c.h.b16 %v2031
  %v2416 = vunpack.c.l.b16 %v2032
  %v2417 = vunpack.c.h.b16 %v2032
  %v2418 = vunpack.c.l.b16 %v2033
  %v2419 = vunpack.c.h.b16 %v2033
  %v2420 = vunpack.c.l.b16 %v2034
  %v2421 = vunpack.c.h.b16 %v2034
  %v2422 = vunpack.c.l.b16 %v2035
  %v2423 = vunpack.c.h.b16 %v2035
  %v2424 = vunpack.c.l.b16 %v2036
  %v2425 = vunpack.c.h.b16 %v2036
  %v2426 = vunpack.c.l.b16 %v2037
  %v2427 = vunpack.c.h.b16 %v2037
  %v2428 = vunpack.c.l.b16 %v2038
  %v2429 = vunpack.c.h.b16 %v2038
  %v2430 = vunpack.c.l.b16 %v2039
  %v2431 = vunpack.c.h.b16 %v2039
  %v2432 = vunpack.c.l.b16 %v2040
  %v2433 = vunpack.c.h.b16 %v2040
  %v2434 = vunpack.c.l.b16 %v2041
  %v2435 = vunpack.c.h.b16 %v2041
  %v2436 = vunpack.c.l.b16 %v2042
  %v2437 = vunpack.c.h.b16 %v2042
  %v2438 = vunpack.c.l.b16 %v2043
  %v2439 = vunpack.c.h.b16 %v2043
  %v2440 = vunpack.c.l.b16 %v2044
  %v2441 = vunpack.c.h.b16 %v2044
  %v2442 = vunpack.c.l.b16 %v2045
  %v2443 = vunpack.c.h.b16 %v2045
  %v2444 = vunpack.c.l.b16 %v2046
  %v2445 = vunpack.c.h.b16 %v2046
  %v2446 = vunpack.c.l.b16 %v2047
  %v2447 = vunpack.c.h.b16 %v2047
  %v2448 = vunpack.c.l.b16 %v2048
  %v2449 = vunpack.c.h.b16 %v2048
  %v2450 = vunpack.c.l.b16 %v2049
  %v2451 = vunpack.c.h.b16 %v2049
  %v2452 = vunpack.c.l.b16 %v2050
  %v2453 = vunpack.c.h.b16 %v2050
  %v2454 = vunpack.c.l.b16 %v2051
  %v2455 = vunpack.c.h.b16 %v2051
  %v2456 = vunpack.c.l.b16 %v2052
  %v2457 = vunpack.c.h.b16 %v2052
  %v2458 = vunpack.c.l.b16 %v2053
  %v2459 = vunpack.c.h.b16 %v2053
  %v2460 = vpack.c.b16 %v2208, %v2204
  %v2461 = vpack.c.b16 %v2209, %v2205
  %v2462 = vpack.c.b16 %v2210, %v2206
  %v2463 = vpack.c.b16 %v2211, %v2207
  %v2464 = vpack.c.b16 %v2216, %v2212
  %v2465 = vpack.c.b16 %v2217, %v2213
  %v2466 = vpack.c.b16 %v2218, %v2214
  %v2467 = vpack.c.b16 %v2219, %v2215
  %v2468 = vpack.c.b16 %v2224, %v2220
  %v2469 = vpack.c.b16 %v2225, %v2221
  %v2470 = vpack.c.b16 %v2226, %v2222
  %v2471 = vpack.c.b16 %v2227, %v2223
  %v2472 = vpack.c.b16 %v2232, %v2228
  %v2473 = vpack.c.b16 %v2233, %v2229
  %v2474 = vpack.c.b16 %v2234, %v2230
  %v2475 = vpack.c.b16 %v2235, %v2231
  %v2476 = vpack.c.b16 %v2240, %v2236
  %v2477 = vpack.c.b16 %v2241, %v2237
  %v2478 = vpack.c.b16 %v2242, %v2238
  %v2479 = vpack.c.b16 %v2243, %v2239
  %v2480 = vpack.c.b16 %v2248, %v2244
  %v2481 = vpack.c.b16 %v2249, %v2245
  %v2482 = vpack.c.b16 %v2250, %v2246
  %v2483 = vpack.c.b16 %v2251, %v2247
  %v2484 = vpack.c.b16 %v2256, %v2252
  %v2485 = vpack.c.b16 %v2257, %v2253
  %v2486 = vpack.c.b16 %v2258, %v2254
  %v2487 = vpack.c.b16 %v2259, %v2255
  %v2488 = vpack.c.b16 %v2264, %v2260
  %v2489 = vpack.c.b16 %v2265, %v2261
  %v2490 = vpack.c.b16 %v2266, %v2262
  %v2491 = vpack.c.b16 %v2267, %v2263
  %v2492 = vpack.c.b16 %v2272, %v2268
  %v2493 = vpack.c.b16 %v2273, %v2269
  %v2494 = vpack.c.b16 %v2274, %v2270
  %v2495 = vpack.c.b16 %v2275, %v2271
  %v2496 = vpack.c.b16 %v2280, %v2276
  %v2497 = vpack.c.b16 %v2281, %v2277
  %v2498 = vpack.c.b16 %v2282, %v2278
  %v2499 = vpack.c.b16 %v2283, %v2279
  %v2500 = vpack.c.b16 %v2288, %v2284
  %v2501 = vpack.c.b16 %v2289, %v2285
  %v2502 = vpack.c.b16 %v2290, %v2286
  %v2503 = vpack.c.b16 %v2291, %v2287
  %v2504 = vpack.c.b16 %v2296, %v2292
  %v2505 = vpack.c.b16 %v2297, %v2293
  %v2506 = vpack.c.b16 %v2298, %v2294
  %v2507 = vpack.c.b16 %v2299, %v2295
  %v2508 = vpack.c.b16 %v2304, %v2300
  %v2509 = vpack.c.b16 %v2305, %v2301
  %v2510 = vpack.c.b16 %v2306, %v2302
  %v2511 = vpack.c.b16 %v2307, %v2303
  %v2512 = vpack.c.b16 %v2312, %v2308
  %v2513 = vpack.c.b16 %v2313, %v2309
  %v2514 = vpack.c.b16 %v2314, %v2310
  %v2515 = vpack.c.b16 %v2315, %v2311
  %v2516 = vpack.c.b16 %v2320, %v2316
  %v2517 = vpack.c.b16 %v2321, %v2317
  %v2518 = vpack.c.b16 %v2322, %v2318
  %v2519 = vpack.c.b16 %v2323, %v2319
  %v2520 = vpack.c.b16 %v2328, %v2324
  %v2521 = vpack.c.b16 %v2329, %v2325
  %v2522 = vpack.c.b16 %v2330, %v2326
  %v2523 = vpack.c.b16 %v2331, %v2327
  %v2524 = vpack.c.b16 %v2336, %v2332
  %v2525 = vpack.c.b16 %v2337, %v2333
  %v2526 = vpack.c.b16 %v2338, %v2334
  %v2527 = vpack.c.b16 %v2339, %v2335
  %v2528 = vpack.c.b16 %v2344, %v2340
  %v2529 = vpack.c.b16 %v2345, %v2341
  %v2530 = vpack.c.b16 %v2346, %v2342
  %v2531 = vpack.c.b16 %v2347, %v2343
  %v2532 = vpack.c.b16 %v2352, %v2348
  %v2533 = vpack.c.b16 %v2353, %v2349
  %v2534 = vpack.c.b16 %v2354, %v2350
  %v2535 = vpack.c.b16 %v2355, %v2351
  %v2536 = vpack.c.b16 %v2360, %v2356
  %v2537 = vpack.c.b16 %v2361, %v2357
  %v2538 = vpack.c.b16 %v2362, %v2358
  %v2539 = vpack.c.b16 %v2363, %v2359
  %v2540 = vpack.c.b16 %v2368, %v2364
  %v2541 = vpack.c.b16 %v2369, %v2365
  %v2542 = vpack.c.b16 %v2370, %v2366
  %v2543 = vpack.c.b16 %v2371, %v2367
  %v2544 = vpack.c.b16 %v2376, %v2372
  %v2545 = vpack.c.b16 %v2377, %v2373
  %v2546 = vpack.c.b16 %v2378, %v2374
  %v2547 = vpack.c.b16 %v2379, %v2375
  %v2548 = vpack.c.b16 %v2384, %v2380
  %v2549 = vpack.c.b16 %v2385, %v2381
  %v2550 = vpack.c.b16 %v2386, %v2382
  %v2551 = vpack.c.b16 %v2387, %v2383
  %v2552 = vpack.c.b16 %v2392, %v2388
  %v2553 = vpack.c.b16 %v2393, %v2389
  %v2554 = vpack.c.b16 %v2394, %v2390
  %v2555 = vpack.c.b16 %v2395, %v2391
  %v2556 = vpack.c.b16 %v2400, %v2396
  %v2557 = vpack.c.b16 %v2401, %v2397
  %v2558 = vpack.c.b16 %v2402, %v2398
  %v2559 = vpack.c.b16 %v2403, %v2399
  %v2560 = vpack.c.b16 %v2408, %v2404
  %v2561 = vpack.c.b16 %v2409, %v2405
  %v2562 = vpack.c.b16 %v2410, %v2406
  %v2563 = vpack.c.b16 %v2411, %v2407
  %v2564 = vpack.c.b16 %v2416, %v2412
  %v2565 = vpack.c.b16 %v2417, %v2413
  %v2566 = vpack.c.b16 %v2418, %v2414
  %v2567 = vpack.c.b16 %v2419, %v2415
  %v2568 = vpack.c.b16 %v2424, %v2420
  %v2569 = vpack.c.b16 %v2425, %v2421
  %v2570 = vpack.c.b16 %v2426, %v2422
  %v2571 = vpack.c.b16 %v2427, %v2423
  %v2572 = vpack.c.b16 %v2432, %v2428
  %v2573 = vpack.c.b16 %v2433, %v2429
  %v2574 = vpack.c.b16 %v2434, %v2430
  %v2575 = vpack.c.b16 %v2435, %v2431
  %v2576 = vpack.c.b16 %v2440, %v2436
  %v2577 = vpack.c.b16 %v2441, %v2437
  %v2578 = vpack.c.b16 %v2442, %v2438
  %v2579 = vpack.c.b16 %v2443, %v2439
  %v2580 = vpack.c.b16 %v2448, %v2444
  %v2581 = vpack.c.b16 %v2449, %v2445
  %v2582 = vpack.c.b16 %v2450, %v2446
  %v2583 = vpack.c.b16 %v2451, %v2447
  %v2584 = vpack.c.b16 %v2456, %v2452
  %v2585 = vpack.c.b16 %v2457, %v2453
  %v2586 = vpack.c.b16 %v2458, %v2454
  %v2587 = vpack.c.b16 %v2459, %v2455
  %2716 = vmatprep.subr.bf16.mxu0 %v2461
  %2717 = vmatpush1.bf16.msra.mxu0 %v2460
  %2718 = vmatprep.subr.bf16.mxu0 %v2465
  %2719 = vmatpush1.bf16.msra.mxu0 %v2464
  %2720 = vmatprep.subr.bf16.mxu0 %v2469
  %2721 = vmatpush1.bf16.msra.mxu0 %v2468
  %2722 = vmatprep.subr.bf16.mxu0 %v2473
  %2723 = vmatpush1.bf16.msra.mxu0 %v2472
  %2724 = vmatprep.subr.bf16.mxu0 %v2477
  %2725 = vmatpush1.bf16.msra.mxu0 %v2476
  %2726 = vmatprep.subr.bf16.mxu0 %v2481
  %2727 = vmatpush1.bf16.msra.mxu0 %v2480
  %2728 = vmatprep.subr.bf16.mxu0 %v2485
  %2729 = vmatpush1.bf16.msra.mxu0 %v2484
  %2730 = vmatprep.subr.bf16.mxu0 %v2489
  %2731 = vmatpush1.bf16.msra.mxu0 %v2488
  %2732 = vmatprep.subr.bf16.mxu0 %v2493
  %2733 = vmatpush1.bf16.msra.mxu0 %v2492
  %2734 = vmatprep.subr.bf16.mxu0 %v2497
  %2735 = vmatpush1.bf16.msra.mxu0 %v2496
  %2736 = vmatprep.subr.bf16.mxu0 %v2501
  %2737 = vmatpush1.bf16.msra.mxu0 %v2500
  %2738 = vmatprep.subr.bf16.mxu0 %v2505
  %2739 = vmatpush1.bf16.msra.mxu0 %v2504
  %2740 = vmatprep.subr.bf16.mxu0 %v2509
  %2741 = vmatpush1.bf16.msra.mxu0 %v2508
  %2742 = vmatprep.subr.bf16.mxu0 %v2513
  %2743 = vmatpush1.bf16.msra.mxu0 %v2512
  %2744 = vmatprep.subr.bf16.mxu0 %v2517
  %2745 = vmatpush1.bf16.msra.mxu0 %v2516
  %2746 = vmatprep.subr.bf16.mxu0 %v2521
  %2747 = vmatpush1.bf16.msra.mxu0 %v2520
  %2748 = vmatprep.mubr.bf16.mxu0 %v1923
  %2749 = vmatmul.mubr.bf16.gmra.mrb[0].mxu0 %v1922
  %v2750 = vpop.f32.mrb[0].mxu0
  %v2751 = vadd.f32 %v2059, %v2750
  %v2752 = vpop.f32.mrb[0].mxu0
  %v2753 = vadd.f32 %v2063, %v2752
  %v2754 = vpop.f32.mrb[0].mxu0
  %v2755 = vpop.f32.mrb[0].mxu0
  %2756 = vdwg.mxu0
  %2757 = vmatprep.subr.bf16.mxu0 %v2525
  %2758 = vmatpush1.bf16.msra.mxu0 %v2524
  %2759 = vmatprep.subr.bf16.mxu0 %v2529
  %2760 = vmatpush1.bf16.msra.mxu0 %v2528
  %2761 = vmatprep.subr.bf16.mxu0 %v2533
  %2762 = vmatpush1.bf16.msra.mxu0 %v2532
  %2763 = vmatprep.subr.bf16.mxu0 %v2537
  %2764 = vmatpush1.bf16.msra.mxu0 %v2536
  %2765 = vmatprep.subr.bf16.mxu0 %v2541
  %2766 = vmatpush1.bf16.msra.mxu0 %v2540
  %2767 = vmatprep.subr.bf16.mxu0 %v2545
  %2768 = vmatpush1.bf16.msra.mxu0 %v2544
  %2769 = vmatprep.subr.bf16.mxu0 %v2549
  %2770 = vmatpush1.bf16.msra.mxu0 %v2548
  %2771 = vmatprep.subr.bf16.mxu0 %v2553
  %2772 = vmatpush1.bf16.msra.mxu0 %v2552
  %2773 = vmatprep.subr.bf16.mxu0 %v2557
  %2774 = vmatpush1.bf16.msra.mxu0 %v2556
  %2775 = vmatprep.subr.bf16.mxu0 %v2561
  %2776 = vmatpush1.bf16.msra.mxu0 %v2560
  %2777 = vmatprep.subr.bf16.mxu0 %v2565
  %2778 = vmatpush1.bf16.msra.mxu0 %v2564
  %2779 = vmatprep.subr.bf16.mxu0 %v2569
  %2780 = vmatpush1.bf16.msra.mxu0 %v2568
  %2781 = vmatprep.subr.bf16.mxu0 %v2573
  %2782 = vmatpush1.bf16.msra.mxu0 %v2572
  %2783 = vmatprep.subr.bf16.mxu0 %v2577
  %2784 = vmatpush1.bf16.msra.mxu0 %v2576
  %2785 = vmatprep.subr.bf16.mxu0 %v2581
  %2786 = vmatpush1.bf16.msra.mxu0 %v2580
  %2787 = vmatprep.subr.bf16.mxu0 %v2585
  %2788 = vmatpush1.bf16.msra.mxu0 %v2584
  %2789 = vmatprep.mubr.bf16.mxu0 %v1925
  %2790 = vmatmul.mubr.bf16.gmra.mrb[0].mxu0 %v1924
  %v2791 = vpop.f32.mrb[0].mxu0
  %v2792 = vadd.f32 %v2751, %v2791
  %v2793 = vpop.f32.mrb[0].mxu0
  %v2794 = vadd.f32 %v2753, %v2793
  %v2795 = vpop.f32.mrb[0].mxu0
  %v2796 = vpop.f32.mrb[0].mxu0
  %2797 = vdwg.mxu0
  %2798 = vmatprep.subr.bf16.mxu0 %v2463
  %2799 = vmatpush1.bf16.msra.mxu0 %v2462
  %2800 = vmatprep.subr.bf16.mxu0 %v2467
  %2801 = vmatpush1.bf16.msra.mxu0 %v2466
  %2802 = vmatprep.subr.bf16.mxu0 %v2471
  %2803 = vmatpush1.bf16.msra.mxu0 %v2470
  %2804 = vmatprep.subr.bf16.mxu0 %v2475
  %2805 = vmatpush1.bf16.msra.mxu0 %v2474
  %2806 = vmatprep.subr.bf16.mxu0 %v2479
  %2807 = vmatpush1.bf16.msra.mxu0 %v2478
  %2808 = vmatprep.subr.bf16.mxu0 %v2483
  %2809 = vmatpush1.bf16.msra.mxu0 %v2482
  %2810 = vmatprep.subr.bf16.mxu0 %v2487
  %2811 = vmatpush1.bf16.msra.mxu0 %v2486
  %2812 = vmatprep.subr.bf16.mxu0 %v2491
  %2813 = vmatpush1.bf16.msra.mxu0 %v2490
  %2814 = vmatprep.subr.bf16.mxu0 %v2495
  %2815 = vmatpush1.bf16.msra.mxu0 %v2494
  %2816 = vmatprep.subr.bf16.mxu0 %v2499
  %2817 = vmatpush1.bf16.msra.mxu0 %v2498
  %2818 = vmatprep.subr.bf16.mxu0 %v2503
  %2819 = vmatpush1.bf16.msra.mxu0 %v2502
  %2820 = vmatprep.subr.bf16.mxu0 %v2507
  %2821 = vmatpush1.bf16.msra.mxu0 %v2506
  %2822 = vmatprep.subr.bf16.mxu0 %v2511
  %2823 = vmatpush1.bf16.msra.mxu0 %v2510
  %2824 = vmatprep.subr.bf16.mxu0 %v2515
  %2825 = vmatpush1.bf16.msra.mxu0 %v2514
  %2826 = vmatprep.subr.bf16.mxu0 %v2519
  %2827 = vmatpush1.bf16.msra.mxu0 %v2518
  %2828 = vmatprep.subr.bf16.mxu0 %v2523
  %2829 = vmatpush1.bf16.msra.mxu0 %v2522
  %2830 = vmatprep.mubr.bf16.mxu0 %v1923
  %2831 = vmatmul.mubr.bf16.gmra.mrb[0].mxu0 %v1922
  %v2832 = vpop.f32.mrb[0].mxu0
  %v2833 = vadd.f32 %v2067, %v2832
  %v2834 = vpop.f32.mrb[0].mxu0
  %v2835 = vadd.f32 %v2071, %v2834
  %v2836 = vpop.f32.mrb[0].mxu0
  %v2837 = vpop.f32.mrb[0].mxu0
  %2838 = vdwg.mxu0
  %2839 = vmatprep.subr.bf16.mxu0 %v2527
  %2840 = vmatpush1.bf16.msra.mxu0 %v2526
  %2841 = vmatprep.subr.bf16.mxu0 %v2531
  %2842 = vmatpush1.bf16.msra.mxu0 %v2530
  %2843 = vmatprep.subr.bf16.mxu0 %v2535
  %2844 = vmatpush1.bf16.msra.mxu0 %v2534
  %2845 = vmatprep.subr.bf16.mxu0 %v2539
  %2846 = vmatpush1.bf16.msra.mxu0 %v2538
  %2847 = vmatprep.subr.bf16.mxu0 %v2543
  %2848 = vmatpush1.bf16.msra.mxu0 %v2542
  %2849 = vmatprep.subr.bf16.mxu0 %v2547
  %2850 = vmatpush1.bf16.msra.mxu0 %v2546
  %2851 = vmatprep.subr.bf16.mxu0 %v2551
  %2852 = vmatpush1.bf16.msra.mxu0 %v2550
  %2853 = vmatprep.subr.bf16.mxu0 %v2555
  %2854 = vmatpush1.bf16.msra.mxu0 %v2554
  %2855 = vmatprep.subr.bf16.mxu0 %v2559
  %2856 = vmatpush1.bf16.msra.mxu0 %v2558
  %2857 = vmatprep.subr.bf16.mxu0 %v2563
  %2858 = vmatpush1.bf16.msra.mxu0 %v2562
  %2859 = vmatprep.subr.bf16.mxu0 %v2567
  %2860 = vmatpush1.bf16.msra.mxu0 %v2566
  %2861 = vmatprep.subr.bf16.mxu0 %v2571
  %2862 = vmatpush1.bf16.msra.mxu0 %v2570
  %2863 = vmatprep.subr.bf16.mxu0 %v2575
  %2864 = vmatpush1.bf16.msra.mxu0 %v2574
  %2865 = vmatprep.subr.bf16.mxu0 %v2579
  %2866 = vmatpush1.bf16.msra.mxu0 %v2578
  %2867 = vmatprep.subr.bf16.mxu0 %v2583
  %2868 = vmatpush1.bf16.msra.mxu0 %v2582
  %2869 = vmatprep.subr.bf16.mxu0 %v2587
  %2870 = vmatpush1.bf16.msra.mxu0 %v2586
  %2871 = vmatprep.mubr.bf16.mxu0 %v1925
  %2872 = vmatmul.mubr.bf16.gmra.mrb[0].mxu0 %v1924
  %v2873 = vpop.f32.mrb[0].mxu0
  %v2874 = vadd.f32 %v2833, %v2873
  %v2875 = vpop.f32.mrb[0].mxu0
  %v2876 = vadd.f32 %v2835, %v2875
  %v2877 = vpop.f32.mrb[0].mxu0
  %v2878 = vpop.f32.mrb[0].mxu0
  %2879 = vdwg.mxu0
  %2880 = vst [vmem:[%s5] sm:$0xff] %v2792
  %2881 = vst [vmem:[%s5 + $0x8] sm:$0xff] %v2794
  %2882 = vst [vmem:[%s5 + $0x10] sm:$0xff] %v2874
  %2883 = vst [vmem:[%s5 + $0x18] sm:$0xff] %v2876
  // Predicated region
  $region22: #{upsampler_forward.3} parent=0 // pred_check
    _
  $region23: #{upsampler_forward.3} parent=0 // pred_check_branch
    %2885 = sbr.rel (0) target = $region25
  $region24: #{upsampler_forward.3} parent=0 // pred_region
    _
  $region25: #{upsampler_forward.3} parent=0 // pred_fallthru
    _
  // Predicated region
  $region26: #{upsampler_forward.3} parent=0 // pred_check
    _
  $region27: #{upsampler_forward.3} parent=0 // pred_check_branch
    %2887 = sbr.rel (0) target = $region29
  $region28: #{upsampler_forward.3} parent=0 // pred_region
    _
  $region29: #{upsampler_forward.3} parent=0 // pred_fallthru
    _

</llo_original>
